<compile_context>
chip_gen: v7x
topology: tpu7x:2x2x1
jax: 0.10.0
libtpu: 0.0.40
codegen_flags: <defaults>
</compile_context>

<pallas_src>
import functools

import jax
import jax.numpy as jnp
from jax.experimental import pallas as pl
from jax.experimental.pallas import tpu as pltpu


# ----------------------------------------------------------------------------
# Fused Pallas kernel
# ----------------------------------------------------------------------------
def _lstm_cell(gates, c_prev, H):
    """PyTorch gate order i, f, g, o.  Transcendentals computed over the full
    (N, 4H) tile (one sigmoid pass covers i/f/o, one tanh pass covers g)."""
    sg = jax.nn.sigmoid(gates)
    th = jnp.tanh(gates)
    i = sg[:, 0 * H:1 * H]
    f = sg[:, 1 * H:2 * H]
    g = th[:, 2 * H:3 * H]
    o = sg[:, 3 * H:4 * H]
    c = f * c_prev + i * g
    h = o * jnp.tanh(c)
    return h, c


def _fused_lstm_classifier_kernel(*refs, T, N, L):
    """Whole network in one kernel.

    refs layout:
      [0]                 ex_ref      (T*N, E)   embedded tokens (flattened)
      [1 : 1+4L]          per layer:  wih (I,8H) [fwd|bwd], whh_f (H,4H),
                                      whh_b (H,4H), bias (1,8H) (= b_ih+b_hh)
      [1+4L : 5+4L]       head:       w1 (2H,H), b1 (1,H), w2_row (1,H), b2 (1,1)
      [5+4L]              out_ref     (T, 1)
      [6+4L]              scratch:    xproj (T*N, 8H)
    """
    ex_ref = refs[0]
    layer_refs = refs[1:1 + 4 * L]
    hw1_ref, hb1_ref, hw2_ref, hb2_ref = refs[1 + 4 * L:5 + 4 * L]
    out_ref = refs[5 + 4 * L]
    xproj_scr = refs[6 + 4 * L]

    H = layer_refs[1].shape[0]     # whh_f is (H, 4H)
    G = 4 * H

    seq_f_v = None                 # previous layer's (T*N, H) fwd outputs (registers)
    seq_b_v = None                 # previous layer's (T*N, H) bwd outputs (registers)
    last_f_v = None                # final layer, LSTM-batch column N-1, per step (T, H)
    last_b_v = None

    for l in range(L):
        wih_ref, whhf_ref, whhb_ref, bg_ref = layer_refs[4 * l:4 * (l + 1)]
        last_layer = (l == L - 1)

        # Hoisted input projection for BOTH directions, bias folded in.  For
        # layers > 0, the [fwd | bwd] feature concat is avoided: two matmuls
        # on sublane-aligned H-row slices of W_ih are summed instead.
        if l == 0:
            xproj_scr[...] = (
                jnp.dot(ex_ref[...], wih_ref[...],
                        preferred_element_type=jnp.float32)
                + bg_ref[...]
            )
        else:
            wih = wih_ref[...]                                  # (2H, 8H)
            xproj_scr[...] = (
                jnp.dot(seq_f_v, wih[0:H, :],
                        preferred_element_type=jnp.float32)
                + jnp.dot(seq_b_v, wih[H:2 * H, :],
                          preferred_element_type=jnp.float32)
                + bg_ref[...]
            )

        whh_f = whhf_ref[...]
        whh_b = whhb_ref[...]
        h_f = jnp.zeros((N, H), jnp.float32)
        c_f = jnp.zeros((N, H), jnp.float32)
        h_b = jnp.zeros((N, H), jnp.float32)
        c_b = jnp.zeros((N, H), jnp.float32)

        if last_layer:
            last_f = [None] * T
            last_b = [None] * T
        else:
            seq_f = [None] * T
            seq_b = [None] * T

        # Fully unrolled time loop (T is static & tiny).  Forward/backward
        # recurrences interleaved so their independent MXU ops overlap; h/c
        # and all per-step outputs stay in registers (no per-step stores).
        for step in range(T):
            tf = step
            tb = T - 1 - step
            gates_f = xproj_scr[tf * N:(tf + 1) * N, 0:G] + jnp.dot(
                h_f, whh_f, preferred_element_type=jnp.float32)
            gates_b = xproj_scr[tb * N:(tb + 1) * N, G:2 * G] + jnp.dot(
                h_b, whh_b, preferred_element_type=jnp.float32)
            h_f, c_f = _lstm_cell(gates_f, c_f, H)
            h_b, c_b = _lstm_cell(gates_b, c_b, H)
            if last_layer:
                # Head only reads output[:, -1, :] == LSTM-batch column N-1;
                # keeping the other columns of the final layer is dead work.
                last_f[tf] = h_f[N - 1:N, :]
                last_b[tb] = h_b[N - 1:N, :]
            else:
                seq_f[tf] = h_f
                seq_b[tb] = h_b

        if last_layer:
            last_f_v = jnp.concatenate(last_f, axis=0)          # (T, H)
            last_b_v = jnp.concatenate(last_b, axis=0)          # (T, H)
        else:
            seq_f_v = jnp.concatenate(seq_f, axis=0)            # (T*N, H)
            seq_b_v = jnp.concatenate(seq_b, axis=0)            # (T*N, H)
        # TODO(synk): inter-layer Dropout(0.5) is train-mode only; eval-mode identity here.

    # Head: Linear(2H->H) -> [Dropout: identity in eval] -> LeakyReLU(0.01)
    #       -> (H->1 as VPU multiply + lane reduction) -> Sigmoid.
    hw1 = hw1_ref[...]                                          # (2H, H)
    h1 = (jnp.dot(last_f_v, hw1[0:H, :], preferred_element_type=jnp.float32)
          + jnp.dot(last_b_v, hw1[H:2 * H, :], preferred_element_type=jnp.float32)
          + hb1_ref[...])
    h1 = jnp.where(h1 >= 0, h1, 0.01 * h1)
    y = jnp.sum(h1 * hw2_ref[...], axis=-1, keepdims=True) + hb2_ref[...]
    out_ref[...] = jax.nn.sigmoid(y)


# ----------------------------------------------------------------------------
# Wrapper
# ----------------------------------------------------------------------------
def lstm_classifier_forward(x, params):
    emb = params["embedding"]
    layers = params["lstm"]
    L = len(layers)
    H = layers[0][1].shape[0]
    B, S = x.shape
    E = emb.shape[1]
    T, N = B, S      # batch_first=False: axis 0 is "time", axis 1 is the LSTM batch

    # Embedding lookup: data-dependent row gather, kept as a single XLA op.
    ex = jnp.take(emb, x.reshape(-1), axis=0)              # (T*N, E)

    flat_inputs = [ex]
    for (wih, whh_f, whh_b, bg) in layers:
        flat_inputs += [wih, whh_f, whh_b, bg]
    flat_inputs += [params["head_w1"], params["head_b1"],
                    params["head_w2_row"], params["head_b2"]]

    kernel = functools.partial(_fused_lstm_classifier_kernel, T=T, N=N, L=L)

    # Advisory cost estimate so XLA schedules the tiny custom call tightly.
    flops = 0
    in_sz = E
    for _ in range(L):
        flops += 2 * T * N * in_sz * (8 * H)          # hoisted input projections
        flops += 2 * (2 * T) * N * H * (4 * H)        # recurrent h@W_hh matmuls
        flops += 12 * T * N * (4 * H)                 # gate elementwise (rough)
        in_sz = 2 * H
    flops += 2 * T * (2 * H) * H + 4 * T * H          # head
    transc = L * (2 * T) * (2 * N * (4 * H) + N * H) + T
    bytes_accessed = sum(int(a.size) * 4 for a in flat_inputs) + T * 4

    return pl.pallas_call(
        kernel,
        out_shape=jax.ShapeDtypeStruct((T, 1), jnp.float32),
        in_specs=[pl.BlockSpec(memory_space=pltpu.MemorySpace.VMEM)] * len(flat_inputs),
        out_specs=pl.BlockSpec(memory_space=pltpu.MemorySpace.VMEM),
        scratch_shapes=[
            pltpu.VMEM((T * N, 8 * H), jnp.float32),   # per-layer hoisted input projection
        ],
        cost_estimate=pl.CostEstimate(flops=int(flops),
                                      transcendentals=int(transc),
                                      bytes_accessed=int(bytes_accessed)),
    )(*flat_inputs)


# ----------------------------------------------------------------------------
# Parameter init (deterministic; mirrors the PyTorch module's shapes)
# ----------------------------------------------------------------------------
def init_params(key, num_embeddings, embedding_dim, hidden_size, num_layers, pad_idx):
    keys = iter(jax.random.split(key, 1 + 8 * num_layers + 4))
    params = {}

    emb = jax.random.normal(next(keys), (num_embeddings, embedding_dim), jnp.float32)
    emb = emb.at[pad_idx].set(0.0)                      # padding_idx row is zero
    params["embedding"] = emb

    k = 1.0 / float(hidden_size) ** 0.5
    layers = []
    for layer in range(num_layers):
        in_size = embedding_dim if layer == 0 else 2 * hidden_size
        wihs, whhs, biases = [], [], []
        for _direction in range(2):                     # forward, backward
            w_ih = jax.random.uniform(next(keys), (in_size, 4 * hidden_size),
                                      jnp.float32, -k, k)
            w_hh = jax.random.uniform(next(keys), (hidden_size, 4 * hidden_size),
                                      jnp.float32, -k, k)
            b_ih = jax.random.uniform(next(keys), (1, 4 * hidden_size),
                                      jnp.float32, -k, k)
            b_hh = jax.random.uniform(next(keys), (1, 4 * hidden_size),
                                      jnp.float32, -k, k)
            wihs.append(w_ih)
            whhs.append(w_hh)
            biases.append(b_ih + b_hh)
        wih = jnp.concatenate(wihs, axis=1)             # (in, 8H) = [fwd | bwd]
        bg = jnp.concatenate(biases, axis=1)            # (1, 8H)
        layers.append((wih, whhs[0], whhs[1], bg))
    params["lstm"] = tuple(layers)

    k1 = 1.0 / float(2 * hidden_size) ** 0.5
    params["head_w1"] = jax.random.uniform(next(keys), (2 * hidden_size, hidden_size),
                                           jnp.float32, -k1, k1)
    params["head_b1"] = jax.random.uniform(next(keys), (1, hidden_size),
                                           jnp.float32, -k1, k1)
    k2 = 1.0 / float(hidden_size) ** 0.5
    params["head_w2_row"] = jax.random.uniform(next(keys), (1, hidden_size),
                                               jnp.float32, -k2, k2)
    params["head_b2"] = jax.random.uniform(next(keys), (1, 1), jnp.float32, -k2, k2)
    return params


# ----------------------------------------------------------------------------
# Pure-JAX reference (same batch_first=False semantics) for a sanity check
# ----------------------------------------------------------------------------
def _reference_forward(x, params):
    prec = jax.lax.Precision.HIGHEST
    emb = params["embedding"]
    B, S = x.shape
    seq = jnp.take(emb, x.reshape(-1), axis=0).reshape(B, S, -1)     # (T, N, E)
    T, N, _ = seq.shape
    for (wih, whh_f, whh_b, bg) in params["lstm"]:
        H = whh_f.shape[0]
        G = 4 * H
        proj = (jnp.dot(seq.reshape(T * N, -1), wih, precision=prec) + bg
                ).reshape(T, N, 2 * G)

        def run_dir(gx, whh, reverse):
            h = jnp.zeros((N, H), jnp.float32)
            c = jnp.zeros((N, H), jnp.float32)
            outs = [None] * T
            times = range(T - 1, -1, -1) if reverse else range(T)
            for t in times:
                gates = gx[t] + jnp.dot(h, whh, precision=prec)
                i = jax.nn.sigmoid(gates[:, 0:H])
                f = jax.nn.sigmoid(gates[:, H:2 * H])
                g = jnp.tanh(gates[:, 2 * H:3 * H])
                o = jax.nn.sigmoid(gates[:, 3 * H:4 * H])
                c = f * c + i * g
                h = o * jnp.tanh(c)
                outs[t] = h
            return jnp.stack(outs, axis=0)

        of = run_dir(proj[:, :, 0:G], whh_f, False)
        ob = run_dir(proj[:, :, G:2 * G], whh_b, True)
        seq = jnp.concatenate([of, ob], axis=-1)
    last = seq[:, -1, :]
    h1 = jnp.dot(last, params["head_w1"], precision=prec) + params["head_b1"]
    h1 = jnp.where(h1 >= 0, h1, 0.01 * h1)
    y = jnp.dot(h1, params["head_w2_row"].T, precision=prec) + params["head_b2"]
    return jax.nn.sigmoid(y)


# ----------------------------------------------------------------------------
if __name__ == "__main__":
    num_embeddings = 50
    embedding_dim = 32
    hidden_size = 32
    num_layers = 2
    pad_idx = 0
    B, S = 8, 16

    key = jax.random.PRNGKey(0)
    kx, kp = jax.random.split(key)
    x = jax.random.randint(kx, (B, S), 0, num_embeddings, dtype=jnp.int32)
    params = init_params(kp, num_embeddings, embedding_dim, hidden_size,
                         num_layers, pad_idx)

    fwd = jax.jit(functools.partial(lstm_classifier_forward, params=params))
    out = jax.block_until_ready(fwd(x))

    ref = jax.block_until_ready(
        jax.jit(functools.partial(_reference_forward, params=params))(x))

    assert out.shape == (B, 1), out.shape
    assert bool(jnp.all(jnp.isfinite(out)))
    assert bool(jnp.all((out >= 0.0) & (out <= 1.0)))        # sigmoid output
    max_err = float(jnp.max(jnp.abs(out - ref)))
    assert max_err < 1e-3, f"mismatch vs reference: {max_err}"
    print("KERNEL_OK")
</pallas_src>

<mosaic_0001>
module attributes {stable_mosaic.version = 11 : i64} {
  func.func @_fused_lstm_classifier_kernel(%arg0: memref<128x32xf32, #tpu.memory_space<vmem>>, %arg1: memref<32x256xf32, #tpu.memory_space<vmem>>, %arg2: memref<32x128xf32, #tpu.memory_space<vmem>>, %arg3: memref<32x128xf32, #tpu.memory_space<vmem>>, %arg4: memref<1x256xf32, #tpu.memory_space<vmem>>, %arg5: memref<64x256xf32, #tpu.memory_space<vmem>>, %arg6: memref<32x128xf32, #tpu.memory_space<vmem>>, %arg7: memref<32x128xf32, #tpu.memory_space<vmem>>, %arg8: memref<1x256xf32, #tpu.memory_space<vmem>>, %arg9: memref<64x32xf32, #tpu.memory_space<vmem>>, %arg10: memref<1x32xf32, #tpu.memory_space<vmem>>, %arg11: memref<1x32xf32, #tpu.memory_space<vmem>>, %arg12: memref<1x1xf32, #tpu.memory_space<vmem>>, %arg13: memref<8x1xf32, #tpu.memory_space<vmem>>, %arg14: memref<128x256xf32, #tpu.memory_space<vmem>>) attributes {dimension_semantics = [], scalar_prefetch = 0 : i64, scratch_operands = 1 : i64, tpu.core_type = #tpu.core_type<tc>} {
    %c0 = arith.constant 0 : index
    %c0_0 = arith.constant 0 : index
    %0 = vector.load %arg0[%c0, %c0_0] : memref<128x32xf32, #tpu.memory_space<vmem>>, vector<128x32xf32>
    %c0_1 = arith.constant 0 : index
    %c0_2 = arith.constant 0 : index
    %1 = vector.load %arg1[%c0_1, %c0_2] : memref<32x256xf32, #tpu.memory_space<vmem>>, vector<32x256xf32>
    %cst = arith.constant dense<0.000000e+00> : vector<128x256xf32>
    %2 = tpu.matmul %0, %1, %cst {dimension_numbers = #tpu.dot_dimension_numbers<[1], [0], [0], [1], [0, 0, 1, 1], [], []>} : vector<128x32xf32>, vector<32x256xf32>, vector<128x256xf32> -> vector<128x256xf32>
    %c0_3 = arith.constant 0 : index
    %c0_4 = arith.constant 0 : index
    %3 = vector.load %arg4[%c0_3, %c0_4] : memref<1x256xf32, #tpu.memory_space<vmem>>, vector<1x256xf32>
    %4 = vector.broadcast %3 : vector<1x256xf32> to vector<128x256xf32>
    %5 = arith.addf %2, %4 : vector<128x256xf32>
    %c0_5 = arith.constant 0 : index
    %c0_6 = arith.constant 0 : index
    %6 = vector.load %arg14[%c0_5, %c0_6] : memref<128x256xf32, #tpu.memory_space<vmem>>, vector<128x256xf32>
    tpu.vector_store %arg14[%c0_5, %c0_6], %5 {strides = array<i32>} : memref<128x256xf32, #tpu.memory_space<vmem>>, vector<128x256xf32>,
    %c0_7 = arith.constant 0 : index
    %c0_8 = arith.constant 0 : index
    %7 = vector.load %arg2[%c0_7, %c0_8] : memref<32x128xf32, #tpu.memory_space<vmem>>, vector<32x128xf32>
    %c0_9 = arith.constant 0 : index
    %c0_10 = arith.constant 0 : index
    %8 = vector.load %arg3[%c0_9, %c0_10] : memref<32x128xf32, #tpu.memory_space<vmem>>, vector<32x128xf32>
    %cst_11 = arith.constant 0.000000e+00 : f32
    %9 = vector.broadcast %cst_11 : f32 to vector<16x32xf32>
    %cst_12 = arith.constant 0.000000e+00 : f32
    %10 = vector.broadcast %cst_12 : f32 to vector<16x32xf32>
    %cst_13 = arith.constant 0.000000e+00 : f32
    %11 = vector.broadcast %cst_13 : f32 to vector<16x32xf32>
    %cst_14 = arith.constant 0.000000e+00 : f32
    %12 = vector.broadcast %cst_14 : f32 to vector<16x32xf32>
    %c0_15 = arith.constant 0 : index
    %c0_16 = arith.constant 0 : index
    %13 = vector.load %arg14[%c0_15, %c0_16] : memref<128x256xf32, #tpu.memory_space<vmem>>, vector<16x128xf32>
    %cst_17 = arith.constant dense<0.000000e+00> : vector<16x128xf32>
    %14 = tpu.matmul %9, %7, %cst_17 {dimension_numbers = #tpu.dot_dimension_numbers<[1], [0], [0], [1], [0, 0, 1, 1], [], []>} : vector<16x32xf32>, vector<32x128xf32>, vector<16x128xf32> -> vector<16x128xf32>
    %15 = arith.addf %13, %14 : vector<16x128xf32>
    %c112 = arith.constant 112 : index
    %c128 = arith.constant 128 : index
    %16 = vector.load %arg14[%c112, %c128] : memref<128x256xf32, #tpu.memory_space<vmem>>, vector<16x128xf32>
    %cst_18 = arith.constant dense<0.000000e+00> : vector<16x128xf32>
    %17 = tpu.matmul %11, %8, %cst_18 {dimension_numbers = #tpu.dot_dimension_numbers<[1], [0], [0], [1], [0, 0, 1, 1], [], []>} : vector<16x32xf32>, vector<32x128xf32>, vector<16x128xf32> -> vector<16x128xf32>
    %18 = arith.addf %16, %17 : vector<16x128xf32>
    %19 = arith.negf %15 : vector<16x128xf32>
    %20 = math.exp %19 : vector<16x128xf32>
    %cst_19 = arith.constant 1.000000e+00 : f32
    %21 = vector.broadcast %cst_19 : f32 to vector<16x128xf32>
    %22 = arith.addf %21, %20 : vector<16x128xf32>
    %23 = arith.divf %21, %22 : vector<16x128xf32>
    %24 = math.tanh %15 : vector<16x128xf32>
    %25 = vector.extract_strided_slice %23 {offsets = [0, 0], sizes = [16, 32], strides = [1, 1]} : vector<16x128xf32> to vector<16x32xf32>
    %26 = vector.extract_strided_slice %23 {offsets = [0, 32], sizes = [16, 32], strides = [1, 1]} : vector<16x128xf32> to vector<16x32xf32>
    %27 = vector.extract_strided_slice %24 {offsets = [0, 64], sizes = [16, 32], strides = [1, 1]} : vector<16x128xf32> to vector<16x32xf32>
    %28 = vector.extract_strided_slice %23 {offsets = [0, 96], sizes = [16, 32], strides = [1, 1]} : vector<16x128xf32> to vector<16x32xf32>
    %29 = arith.mulf %26, %10 : vector<16x32xf32>
    %30 = arith.mulf %25, %27 : vector<16x32xf32>
    %31 = arith.addf %29, %30 : vector<16x32xf32>
    %32 = math.tanh %31 : vector<16x32xf32>
    %33 = arith.mulf %28, %32 : vector<16x32xf32>
    %34 = arith.negf %18 : vector<16x128xf32>
    %35 = math.exp %34 : vector<16x128xf32>
    %cst_20 = arith.constant 1.000000e+00 : f32
    %36 = vector.broadcast %cst_20 : f32 to vector<16x128xf32>
    %37 = arith.addf %36, %35 : vector<16x128xf32>
    %38 = arith.divf %36, %37 : vector<16x128xf32>
    %39 = math.tanh %18 : vector<16x128xf32>
    %40 = vector.extract_strided_slice %38 {offsets = [0, 0], sizes = [16, 32], strides = [1, 1]} : vector<16x128xf32> to vector<16x32xf32>
    %41 = vector.extract_strided_slice %38 {offsets = [0, 32], sizes = [16, 32], strides = [1, 1]} : vector<16x128xf32> to vector<16x32xf32>
    %42 = vector.extract_strided_slice %39 {offsets = [0, 64], sizes = [16, 32], strides = [1, 1]} : vector<16x128xf32> to vector<16x32xf32>
    %43 = vector.extract_strided_slice %38 {offsets = [0, 96], sizes = [16, 32], strides = [1, 1]} : vector<16x128xf32> to vector<16x32xf32>
    %44 = arith.mulf %41, %12 : vector<16x32xf32>
    %45 = arith.mulf %40, %42 : vector<16x32xf32>
    %46 = arith.addf %44, %45 : vector<16x32xf32>
    %47 = math.tanh %46 : vector<16x32xf32>
    %48 = arith.mulf %43, %47 : vector<16x32xf32>
    %c16 = arith.constant 16 : index
    %c0_21 = arith.constant 0 : index
    %49 = vector.load %arg14[%c16, %c0_21] : memref<128x256xf32, #tpu.memory_space<vmem>>, vector<16x128xf32>
    %cst_22 = arith.constant dense<0.000000e+00> : vector<16x128xf32>
    %50 = tpu.matmul %33, %7, %cst_22 {dimension_numbers = #tpu.dot_dimension_numbers<[1], [0], [0], [1], [0, 0, 1, 1], [], []>} : vector<16x32xf32>, vector<32x128xf32>, vector<16x128xf32> -> vector<16x128xf32>
    %51 = arith.addf %49, %50 : vector<16x128xf32>
    %c96 = arith.constant 96 : index
    %c128_23 = arith.constant 128 : index
    %52 = vector.load %arg14[%c96, %c128_23] : memref<128x256xf32, #tpu.memory_space<vmem>>, vector<16x128xf32>
    %cst_24 = arith.constant dense<0.000000e+00> : vector<16x128xf32>
    %53 = tpu.matmul %48, %8, %cst_24 {dimension_numbers = #tpu.dot_dimension_numbers<[1], [0], [0], [1], [0, 0, 1, 1], [], []>} : vector<16x32xf32>, vector<32x128xf32>, vector<16x128xf32> -> vector<16x128xf32>
    %54 = arith.addf %52, %53 : vector<16x128xf32>
    %55 = arith.negf %51 : vector<16x128xf32>
    %56 = math.exp %55 : vector<16x128xf32>
    %cst_25 = arith.constant 1.000000e+00 : f32
    %57 = vector.broadcast %cst_25 : f32 to vector<16x128xf32>
    %58 = arith.addf %57, %56 : vector<16x128xf32>
    %59 = arith.divf %57, %58 : vector<16x128xf32>
    %60 = math.tanh %51 : vector<16x128xf32>
    %61 = vector.extract_strided_slice %59 {offsets = [0, 0], sizes = [16, 32], strides = [1, 1]} : vector<16x128xf32> to vector<16x32xf32>
    %62 = vector.extract_strided_slice %59 {offsets = [0, 32], sizes = [16, 32], strides = [1, 1]} : vector<16x128xf32> to vector<16x32xf32>
    %63 = vector.extract_strided_slice %60 {offsets = [0, 64], sizes = [16, 32], strides = [1, 1]} : vector<16x128xf32> to vector<16x32xf32>
    %64 = vector.extract_strided_slice %59 {offsets = [0, 96], sizes = [16, 32], strides = [1, 1]} : vector<16x128xf32> to vector<16x32xf32>
    %65 = arith.mulf %62, %31 : vector<16x32xf32>
    %66 = arith.mulf %61, %63 : vector<16x32xf32>
    %67 = arith.addf %65, %66 : vector<16x32xf32>
    %68 = math.tanh %67 : vector<16x32xf32>
    %69 = arith.mulf %64, %68 : vector<16x32xf32>
    %70 = arith.negf %54 : vector<16x128xf32>
    %71 = math.exp %70 : vector<16x128xf32>
    %cst_26 = arith.constant 1.000000e+00 : f32
    %72 = vector.broadcast %cst_26 : f32 to vector<16x128xf32>
    %73 = arith.addf %72, %71 : vector<16x128xf32>
    %74 = arith.divf %72, %73 : vector<16x128xf32>
    %75 = math.tanh %54 : vector<16x128xf32>
    %76 = vector.extract_strided_slice %74 {offsets = [0, 0], sizes = [16, 32], strides = [1, 1]} : vector<16x128xf32> to vector<16x32xf32>
    %77 = vector.extract_strided_slice %74 {offsets = [0, 32], sizes = [16, 32], strides = [1, 1]} : vector<16x128xf32> to vector<16x32xf32>
    %78 = vector.extract_strided_slice %75 {offsets = [0, 64], sizes = [16, 32], strides = [1, 1]} : vector<16x128xf32> to vector<16x32xf32>
    %79 = vector.extract_strided_slice %74 {offsets = [0, 96], sizes = [16, 32], strides = [1, 1]} : vector<16x128xf32> to vector<16x32xf32>
    %80 = arith.mulf %77, %46 : vector<16x32xf32>
    %81 = arith.mulf %76, %78 : vector<16x32xf32>
    %82 = arith.addf %80, %81 : vector<16x32xf32>
    %83 = math.tanh %82 : vector<16x32xf32>
    %84 = arith.mulf %79, %83 : vector<16x32xf32>
    %c32 = arith.constant 32 : index
    %c0_27 = arith.constant 0 : index
    %85 = vector.load %arg14[%c32, %c0_27] : memref<128x256xf32, #tpu.memory_space<vmem>>, vector<16x128xf32>
    %cst_28 = arith.constant dense<0.000000e+00> : vector<16x128xf32>
    %86 = tpu.matmul %69, %7, %cst_28 {dimension_numbers = #tpu.dot_dimension_numbers<[1], [0], [0], [1], [0, 0, 1, 1], [], []>} : vector<16x32xf32>, vector<32x128xf32>, vector<16x128xf32> -> vector<16x128xf32>
    %87 = arith.addf %85, %86 : vector<16x128xf32>
    %c80 = arith.constant 80 : index
    %c128_29 = arith.constant 128 : index
    %88 = vector.load %arg14[%c80, %c128_29] : memref<128x256xf32, #tpu.memory_space<vmem>>, vector<16x128xf32>
    %cst_30 = arith.constant dense<0.000000e+00> : vector<16x128xf32>
    %89 = tpu.matmul %84, %8, %cst_30 {dimension_numbers = #tpu.dot_dimension_numbers<[1], [0], [0], [1], [0, 0, 1, 1], [], []>} : vector<16x32xf32>, vector<32x128xf32>, vector<16x128xf32> -> vector<16x128xf32>
    %90 = arith.addf %88, %89 : vector<16x128xf32>
    %91 = arith.negf %87 : vector<16x128xf32>
    %92 = math.exp %91 : vector<16x128xf32>
    %cst_31 = arith.constant 1.000000e+00 : f32
    %93 = vector.broadcast %cst_31 : f32 to vector<16x128xf32>
    %94 = arith.addf %93, %92 : vector<16x128xf32>
    %95 = arith.divf %93, %94 : vector<16x128xf32>
    %96 = math.tanh %87 : vector<16x128xf32>
    %97 = vector.extract_strided_slice %95 {offsets = [0, 0], sizes = [16, 32], strides = [1, 1]} : vector<16x128xf32> to vector<16x32xf32>
    %98 = vector.extract_strided_slice %95 {offsets = [0, 32], sizes = [16, 32], strides = [1, 1]} : vector<16x128xf32> to vector<16x32xf32>
    %99 = vector.extract_strided_slice %96 {offsets = [0, 64], sizes = [16, 32], strides = [1, 1]} : vector<16x128xf32> to vector<16x32xf32>
    %100 = vector.extract_strided_slice %95 {offsets = [0, 96], sizes = [16, 32], strides = [1, 1]} : vector<16x128xf32> to vector<16x32xf32>
    %101 = arith.mulf %98, %67 : vector<16x32xf32>
    %102 = arith.mulf %97, %99 : vector<16x32xf32>
    %103 = arith.addf %101, %102 : vector<16x32xf32>
    %104 = math.tanh %103 : vector<16x32xf32>
    %105 = arith.mulf %100, %104 : vector<16x32xf32>
    %106 = arith.negf %90 : vector<16x128xf32>
    %107 = math.exp %106 : vector<16x128xf32>
    %cst_32 = arith.constant 1.000000e+00 : f32
    %108 = vector.broadcast %cst_32 : f32 to vector<16x128xf32>
    %109 = arith.addf %108, %107 : vector<16x128xf32>
    %110 = arith.divf %108, %109 : vector<16x128xf32>
    %111 = math.tanh %90 : vector<16x128xf32>
    %112 = vector.extract_strided_slice %110 {offsets = [0, 0], sizes = [16, 32], strides = [1, 1]} : vector<16x128xf32> to vector<16x32xf32>
    %113 = vector.extract_strided_slice %110 {offsets = [0, 32], sizes = [16, 32], strides = [1, 1]} : vector<16x128xf32> to vector<16x32xf32>
    %114 = vector.extract_strided_slice %111 {offsets = [0, 64], sizes = [16, 32], strides = [1, 1]} : vector<16x128xf32> to vector<16x32xf32>
    %115 = vector.extract_strided_slice %110 {offsets = [0, 96], sizes = [16, 32], strides = [1, 1]} : vector<16x128xf32> to vector<16x32xf32>
    %116 = arith.mulf %113, %82 : vector<16x32xf32>
    %117 = arith.mulf %112, %114 : vector<16x32xf32>
    %118 = arith.addf %116, %117 : vector<16x32xf32>
    %119 = math.tanh %118 : vector<16x32xf32>
    %120 = arith.mulf %115, %119 : vector<16x32xf32>
    %c48 = arith.constant 48 : index
    %c0_33 = arith.constant 0 : index
    %121 = vector.load %arg14[%c48, %c0_33] : memref<128x256xf32, #tpu.memory_space<vmem>>, vector<16x128xf32>
    %cst_34 = arith.constant dense<0.000000e+00> : vector<16x128xf32>
    %122 = tpu.matmul %105, %7, %cst_34 {dimension_numbers = #tpu.dot_dimension_numbers<[1], [0], [0], [1], [0, 0, 1, 1], [], []>} : vector<16x32xf32>, vector<32x128xf32>, vector<16x128xf32> -> vector<16x128xf32>
    %123 = arith.addf %121, %122 : vector<16x128xf32>
    %c64 = arith.constant 64 : index
    %c128_35 = arith.constant 128 : index
    %124 = vector.load %arg14[%c64, %c128_35] : memref<128x256xf32, #tpu.memory_space<vmem>>, vector<16x128xf32>
    %cst_36 = arith.constant dense<0.000000e+00> : vector<16x128xf32>
    %125 = tpu.matmul %120, %8, %cst_36 {dimension_numbers = #tpu.dot_dimension_numbers<[1], [0], [0], [1], [0, 0, 1, 1], [], []>} : vector<16x32xf32>, vector<32x128xf32>, vector<16x128xf32> -> vector<16x128xf32>
    %126 = arith.addf %124, %125 : vector<16x128xf32>
    %127 = arith.negf %123 : vector<16x128xf32>
    %128 = math.exp %127 : vector<16x128xf32>
    %cst_37 = arith.constant 1.000000e+00 : f32
    %129 = vector.broadcast %cst_37 : f32 to vector<16x128xf32>
    %130 = arith.addf %129, %128 : vector<16x128xf32>
    %131 = arith.divf %129, %130 : vector<16x128xf32>
    %132 = math.tanh %123 : vector<16x128xf32>
    %133 = vector.extract_strided_slice %131 {offsets = [0, 0], sizes = [16, 32], strides = [1, 1]} : vector<16x128xf32> to vector<16x32xf32>
    %134 = vector.extract_strided_slice %131 {offsets = [0, 32], sizes = [16, 32], strides = [1, 1]} : vector<16x128xf32> to vector<16x32xf32>
    %135 = vector.extract_strided_slice %132 {offsets = [0, 64], sizes = [16, 32], strides = [1, 1]} : vector<16x128xf32> to vector<16x32xf32>
    %136 = vector.extract_strided_slice %131 {offsets = [0, 96], sizes = [16, 32], strides = [1, 1]} : vector<16x128xf32> to vector<16x32xf32>
    %137 = arith.mulf %134, %103 : vector<16x32xf32>
    %138 = arith.mulf %133, %135 : vector<16x32xf32>
    %139 = arith.addf %137, %138 : vector<16x32xf32>
    %140 = math.tanh %139 : vector<16x32xf32>
    %141 = arith.mulf %136, %140 : vector<16x32xf32>
    %142 = arith.negf %126 : vector<16x128xf32>
    %143 = math.exp %142 : vector<16x128xf32>
    %cst_38 = arith.constant 1.000000e+00 : f32
    %144 = vector.broadcast %cst_38 : f32 to vector<16x128xf32>
    %145 = arith.addf %144, %143 : vector<16x128xf32>
    %146 = arith.divf %144, %145 : vector<16x128xf32>
    %147 = math.tanh %126 : vector<16x128xf32>
    %148 = vector.extract_strided_slice %146 {offsets = [0, 0], sizes = [16, 32], strides = [1, 1]} : vector<16x128xf32> to vector<16x32xf32>
    %149 = vector.extract_strided_slice %146 {offsets = [0, 32], sizes = [16, 32], strides = [1, 1]} : vector<16x128xf32> to vector<16x32xf32>
    %150 = vector.extract_strided_slice %147 {offsets = [0, 64], sizes = [16, 32], strides = [1, 1]} : vector<16x128xf32> to vector<16x32xf32>
    %151 = vector.extract_strided_slice %146 {offsets = [0, 96], sizes = [16, 32], strides = [1, 1]} : vector<16x128xf32> to vector<16x32xf32>
    %152 = arith.mulf %149, %118 : vector<16x32xf32>
    %153 = arith.mulf %148, %150 : vector<16x32xf32>
    %154 = arith.addf %152, %153 : vector<16x32xf32>
    %155 = math.tanh %154 : vector<16x32xf32>
    %156 = arith.mulf %151, %155 : vector<16x32xf32>
    %c64_39 = arith.constant 64 : index
    %c0_40 = arith.constant 0 : index
    %157 = vector.load %arg14[%c64_39, %c0_40] : memref<128x256xf32, #tpu.memory_space<vmem>>, vector<16x128xf32>
    %cst_41 = arith.constant dense<0.000000e+00> : vector<16x128xf32>
    %158 = tpu.matmul %141, %7, %cst_41 {dimension_numbers = #tpu.dot_dimension_numbers<[1], [0], [0], [1], [0, 0, 1, 1], [], []>} : vector<16x32xf32>, vector<32x128xf32>, vector<16x128xf32> -> vector<16x128xf32>
    %159 = arith.addf %157, %158 : vector<16x128xf32>
    %c48_42 = arith.constant 48 : index
    %c128_43 = arith.constant 128 : index
    %160 = vector.load %arg14[%c48_42, %c128_43] : memref<128x256xf32, #tpu.memory_space<vmem>>, vector<16x128xf32>
    %cst_44 = arith.constant dense<0.000000e+00> : vector<16x128xf32>
    %161 = tpu.matmul %156, %8, %cst_44 {dimension_numbers = #tpu.dot_dimension_numbers<[1], [0], [0], [1], [0, 0, 1, 1], [], []>} : vector<16x32xf32>, vector<32x128xf32>, vector<16x128xf32> -> vector<16x128xf32>
    %162 = arith.addf %160, %161 : vector<16x128xf32>
    %163 = arith.negf %159 : vector<16x128xf32>
    %164 = math.exp %163 : vector<16x128xf32>
    %cst_45 = arith.constant 1.000000e+00 : f32
    %165 = vector.broadcast %cst_45 : f32 to vector<16x128xf32>
    %166 = arith.addf %165, %164 : vector<16x128xf32>
    %167 = arith.divf %165, %166 : vector<16x128xf32>
    %168 = math.tanh %159 : vector<16x128xf32>
    %169 = vector.extract_strided_slice %167 {offsets = [0, 0], sizes = [16, 32], strides = [1, 1]} : vector<16x128xf32> to vector<16x32xf32>
    %170 = vector.extract_strided_slice %167 {offsets = [0, 32], sizes = [16, 32], strides = [1, 1]} : vector<16x128xf32> to vector<16x32xf32>
    %171 = vector.extract_strided_slice %168 {offsets = [0, 64], sizes = [16, 32], strides = [1, 1]} : vector<16x128xf32> to vector<16x32xf32>
    %172 = vector.extract_strided_slice %167 {offsets = [0, 96], sizes = [16, 32], strides = [1, 1]} : vector<16x128xf32> to vector<16x32xf32>
    %173 = arith.mulf %170, %139 : vector<16x32xf32>
    %174 = arith.mulf %169, %171 : vector<16x32xf32>
    %175 = arith.addf %173, %174 : vector<16x32xf32>
    %176 = math.tanh %175 : vector<16x32xf32>
    %177 = arith.mulf %172, %176 : vector<16x32xf32>
    %178 = arith.negf %162 : vector<16x128xf32>
    %179 = math.exp %178 : vector<16x128xf32>
    %cst_46 = arith.constant 1.000000e+00 : f32
    %180 = vector.broadcast %cst_46 : f32 to vector<16x128xf32>
    %181 = arith.addf %180, %179 : vector<16x128xf32>
    %182 = arith.divf %180, %181 : vector<16x128xf32>
    %183 = math.tanh %162 : vector<16x128xf32>
    %184 = vector.extract_strided_slice %182 {offsets = [0, 0], sizes = [16, 32], strides = [1, 1]} : vector<16x128xf32> to vector<16x32xf32>
    %185 = vector.extract_strided_slice %182 {offsets = [0, 32], sizes = [16, 32], strides = [1, 1]} : vector<16x128xf32> to vector<16x32xf32>
    %186 = vector.extract_strided_slice %183 {offsets = [0, 64], sizes = [16, 32], strides = [1, 1]} : vector<16x128xf32> to vector<16x32xf32>
    %187 = vector.extract_strided_slice %182 {offsets = [0, 96], sizes = [16, 32], strides = [1, 1]} : vector<16x128xf32> to vector<16x32xf32>
    %188 = arith.mulf %185, %154 : vector<16x32xf32>
    %189 = arith.mulf %184, %186 : vector<16x32xf32>
    %190 = arith.addf %188, %189 : vector<16x32xf32>
    %191 = math.tanh %190 : vector<16x32xf32>
    %192 = arith.mulf %187, %191 : vector<16x32xf32>
    %c80_47 = arith.constant 80 : index
    %c0_48 = arith.constant 0 : index
    %193 = vector.load %arg14[%c80_47, %c0_48] : memref<128x256xf32, #tpu.memory_space<vmem>>, vector<16x128xf32>
    %cst_49 = arith.constant dense<0.000000e+00> : vector<16x128xf32>
    %194 = tpu.matmul %177, %7, %cst_49 {dimension_numbers = #tpu.dot_dimension_numbers<[1], [0], [0], [1], [0, 0, 1, 1], [], []>} : vector<16x32xf32>, vector<32x128xf32>, vector<16x128xf32> -> vector<16x128xf32>
    %195 = arith.addf %193, %194 : vector<16x128xf32>
    %c32_50 = arith.constant 32 : index
    %c128_51 = arith.constant 128 : index
    %196 = vector.load %arg14[%c32_50, %c128_51] : memref<128x256xf32, #tpu.memory_space<vmem>>, vector<16x128xf32>
    %cst_52 = arith.constant dense<0.000000e+00> : vector<16x128xf32>
    %197 = tpu.matmul %192, %8, %cst_52 {dimension_numbers = #tpu.dot_dimension_numbers<[1], [0], [0], [1], [0, 0, 1, 1], [], []>} : vector<16x32xf32>, vector<32x128xf32>, vector<16x128xf32> -> vector<16x128xf32>
    %198 = arith.addf %196, %197 : vector<16x128xf32>
    %199 = arith.negf %195 : vector<16x128xf32>
    %200 = math.exp %199 : vector<16x128xf32>
    %cst_53 = arith.constant 1.000000e+00 : f32
    %201 = vector.broadcast %cst_53 : f32 to vector<16x128xf32>
    %202 = arith.addf %201, %200 : vector<16x128xf32>
    %203 = arith.divf %201, %202 : vector<16x128xf32>
    %204 = math.tanh %195 : vector<16x128xf32>
    %205 = vector.extract_strided_slice %203 {offsets = [0, 0], sizes = [16, 32], strides = [1, 1]} : vector<16x128xf32> to vector<16x32xf32>
    %206 = vector.extract_strided_slice %203 {offsets = [0, 32], sizes = [16, 32], strides = [1, 1]} : vector<16x128xf32> to vector<16x32xf32>
    %207 = vector.extract_strided_slice %204 {offsets = [0, 64], sizes = [16, 32], strides = [1, 1]} : vector<16x128xf32> to vector<16x32xf32>
    %208 = vector.extract_strided_slice %203 {offsets = [0, 96], sizes = [16, 32], strides = [1, 1]} : vector<16x128xf32> to vector<16x32xf32>
    %209 = arith.mulf %206, %175 : vector<16x32xf32>
    %210 = arith.mulf %205, %207 : vector<16x32xf32>
    %211 = arith.addf %209, %210 : vector<16x32xf32>
    %212 = math.tanh %211 : vector<16x32xf32>
    %213 = arith.mulf %208, %212 : vector<16x32xf32>
    %214 = arith.negf %198 : vector<16x128xf32>
    %215 = math.exp %214 : vector<16x128xf32>
    %cst_54 = arith.constant 1.000000e+00 : f32
    %216 = vector.broadcast %cst_54 : f32 to vector<16x128xf32>
    %217 = arith.addf %216, %215 : vector<16x128xf32>
    %218 = arith.divf %216, %217 : vector<16x128xf32>
    %219 = math.tanh %198 : vector<16x128xf32>
    %220 = vector.extract_strided_slice %218 {offsets = [0, 0], sizes = [16, 32], strides = [1, 1]} : vector<16x128xf32> to vector<16x32xf32>
    %221 = vector.extract_strided_slice %218 {offsets = [0, 32], sizes = [16, 32], strides = [1, 1]} : vector<16x128xf32> to vector<16x32xf32>
    %222 = vector.extract_strided_slice %219 {offsets = [0, 64], sizes = [16, 32], strides = [1, 1]} : vector<16x128xf32> to vector<16x32xf32>
    %223 = vector.extract_strided_slice %218 {offsets = [0, 96], sizes = [16, 32], strides = [1, 1]} : vector<16x128xf32> to vector<16x32xf32>
    %224 = arith.mulf %221, %190 : vector<16x32xf32>
    %225 = arith.mulf %220, %222 : vector<16x32xf32>
    %226 = arith.addf %224, %225 : vector<16x32xf32>
    %227 = math.tanh %226 : vector<16x32xf32>
    %228 = arith.mulf %223, %227 : vector<16x32xf32>
    %c96_55 = arith.constant 96 : index
    %c0_56 = arith.constant 0 : index
    %229 = vector.load %arg14[%c96_55, %c0_56] : memref<128x256xf32, #tpu.memory_space<vmem>>, vector<16x128xf32>
    %cst_57 = arith.constant dense<0.000000e+00> : vector<16x128xf32>
    %230 = tpu.matmul %213, %7, %cst_57 {dimension_numbers = #tpu.dot_dimension_numbers<[1], [0], [0], [1], [0, 0, 1, 1], [], []>} : vector<16x32xf32>, vector<32x128xf32>, vector<16x128xf32> -> vector<16x128xf32>
    %231 = arith.addf %229, %230 : vector<16x128xf32>
    %c16_58 = arith.constant 16 : index
    %c128_59 = arith.constant 128 : index
    %232 = vector.load %arg14[%c16_58, %c128_59] : memref<128x256xf32, #tpu.memory_space<vmem>>, vector<16x128xf32>
    %cst_60 = arith.constant dense<0.000000e+00> : vector<16x128xf32>
    %233 = tpu.matmul %228, %8, %cst_60 {dimension_numbers = #tpu.dot_dimension_numbers<[1], [0], [0], [1], [0, 0, 1, 1], [], []>} : vector<16x32xf32>, vector<32x128xf32>, vector<16x128xf32> -> vector<16x128xf32>
    %234 = arith.addf %232, %233 : vector<16x128xf32>
    %235 = arith.negf %231 : vector<16x128xf32>
    %236 = math.exp %235 : vector<16x128xf32>
    %cst_61 = arith.constant 1.000000e+00 : f32
    %237 = vector.broadcast %cst_61 : f32 to vector<16x128xf32>
    %238 = arith.addf %237, %236 : vector<16x128xf32>
    %239 = arith.divf %237, %238 : vector<16x128xf32>
    %240 = math.tanh %231 : vector<16x128xf32>
    %241 = vector.extract_strided_slice %239 {offsets = [0, 0], sizes = [16, 32], strides = [1, 1]} : vector<16x128xf32> to vector<16x32xf32>
    %242 = vector.extract_strided_slice %239 {offsets = [0, 32], sizes = [16, 32], strides = [1, 1]} : vector<16x128xf32> to vector<16x32xf32>
    %243 = vector.extract_strided_slice %240 {offsets = [0, 64], sizes = [16, 32], strides = [1, 1]} : vector<16x128xf32> to vector<16x32xf32>
    %244 = vector.extract_strided_slice %239 {offsets = [0, 96], sizes = [16, 32], strides = [1, 1]} : vector<16x128xf32> to vector<16x32xf32>
    %245 = arith.mulf %242, %211 : vector<16x32xf32>
    %246 = arith.mulf %241, %243 : vector<16x32xf32>
    %247 = arith.addf %245, %246 : vector<16x32xf32>
    %248 = math.tanh %247 : vector<16x32xf32>
    %249 = arith.mulf %244, %248 : vector<16x32xf32>
    %250 = arith.negf %234 : vector<16x128xf32>
    %251 = math.exp %250 : vector<16x128xf32>
    %cst_62 = arith.constant 1.000000e+00 : f32
    %252 = vector.broadcast %cst_62 : f32 to vector<16x128xf32>
    %253 = arith.addf %252, %251 : vector<16x128xf32>
    %254 = arith.divf %252, %253 : vector<16x128xf32>
    %255 = math.tanh %234 : vector<16x128xf32>
    %256 = vector.extract_strided_slice %254 {offsets = [0, 0], sizes = [16, 32], strides = [1, 1]} : vector<16x128xf32> to vector<16x32xf32>
    %257 = vector.extract_strided_slice %254 {offsets = [0, 32], sizes = [16, 32], strides = [1, 1]} : vector<16x128xf32> to vector<16x32xf32>
    %258 = vector.extract_strided_slice %255 {offsets = [0, 64], sizes = [16, 32], strides = [1, 1]} : vector<16x128xf32> to vector<16x32xf32>
    %259 = vector.extract_strided_slice %254 {offsets = [0, 96], sizes = [16, 32], strides = [1, 1]} : vector<16x128xf32> to vector<16x32xf32>
    %260 = arith.mulf %257, %226 : vector<16x32xf32>
    %261 = arith.mulf %256, %258 : vector<16x32xf32>
    %262 = arith.addf %260, %261 : vector<16x32xf32>
    %263 = math.tanh %262 : vector<16x32xf32>
    %264 = arith.mulf %259, %263 : vector<16x32xf32>
    %c112_63 = arith.constant 112 : index
    %c0_64 = arith.constant 0 : index
    %265 = vector.load %arg14[%c112_63, %c0_64] : memref<128x256xf32, #tpu.memory_space<vmem>>, vector<16x128xf32>
    %cst_65 = arith.constant dense<0.000000e+00> : vector<16x128xf32>
    %266 = tpu.matmul %249, %7, %cst_65 {dimension_numbers = #tpu.dot_dimension_numbers<[1], [0], [0], [1], [0, 0, 1, 1], [], []>} : vector<16x32xf32>, vector<32x128xf32>, vector<16x128xf32> -> vector<16x128xf32>
    %267 = arith.addf %265, %266 : vector<16x128xf32>
    %c0_66 = arith.constant 0 : index
    %c128_67 = arith.constant 128 : index
    %268 = vector.load %arg14[%c0_66, %c128_67] : memref<128x256xf32, #tpu.memory_space<vmem>>, vector<16x128xf32>
    %cst_68 = arith.constant dense<0.000000e+00> : vector<16x128xf32>
    %269 = tpu.matmul %264, %8, %cst_68 {dimension_numbers = #tpu.dot_dimension_numbers<[1], [0], [0], [1], [0, 0, 1, 1], [], []>} : vector<16x32xf32>, vector<32x128xf32>, vector<16x128xf32> -> vector<16x128xf32>
    %270 = arith.addf %268, %269 : vector<16x128xf32>
    %271 = arith.negf %267 : vector<16x128xf32>
    %272 = math.exp %271 : vector<16x128xf32>
    %cst_69 = arith.constant 1.000000e+00 : f32
    %273 = vector.broadcast %cst_69 : f32 to vector<16x128xf32>
    %274 = arith.addf %273, %272 : vector<16x128xf32>
    %275 = arith.divf %273, %274 : vector<16x128xf32>
    %276 = math.tanh %267 : vector<16x128xf32>
    %277 = vector.extract_strided_slice %275 {offsets = [0, 0], sizes = [16, 32], strides = [1, 1]} : vector<16x128xf32> to vector<16x32xf32>
    %278 = vector.extract_strided_slice %275 {offsets = [0, 32], sizes = [16, 32], strides = [1, 1]} : vector<16x128xf32> to vector<16x32xf32>
    %279 = vector.extract_strided_slice %276 {offsets = [0, 64], sizes = [16, 32], strides = [1, 1]} : vector<16x128xf32> to vector<16x32xf32>
    %280 = vector.extract_strided_slice %275 {offsets = [0, 96], sizes = [16, 32], strides = [1, 1]} : vector<16x128xf32> to vector<16x32xf32>
    %281 = arith.mulf %278, %247 : vector<16x32xf32>
    %282 = arith.mulf %277, %279 : vector<16x32xf32>
    %283 = arith.addf %281, %282 : vector<16x32xf32>
    %284 = math.tanh %283 : vector<16x32xf32>
    %285 = arith.mulf %280, %284 : vector<16x32xf32>
    %286 = arith.negf %270 : vector<16x128xf32>
    %287 = math.exp %286 : vector<16x128xf32>
    %cst_70 = arith.constant 1.000000e+00 : f32
    %288 = vector.broadcast %cst_70 : f32 to vector<16x128xf32>
    %289 = arith.addf %288, %287 : vector<16x128xf32>
    %290 = arith.divf %288, %289 : vector<16x128xf32>
    %291 = math.tanh %270 : vector<16x128xf32>
    %292 = vector.extract_strided_slice %290 {offsets = [0, 0], sizes = [16, 32], strides = [1, 1]} : vector<16x128xf32> to vector<16x32xf32>
    %293 = vector.extract_strided_slice %290 {offsets = [0, 32], sizes = [16, 32], strides = [1, 1]} : vector<16x128xf32> to vector<16x32xf32>
    %294 = vector.extract_strided_slice %291 {offsets = [0, 64], sizes = [16, 32], strides = [1, 1]} : vector<16x128xf32> to vector<16x32xf32>
    %295 = vector.extract_strided_slice %290 {offsets = [0, 96], sizes = [16, 32], strides = [1, 1]} : vector<16x128xf32> to vector<16x32xf32>
    %296 = arith.mulf %293, %262 : vector<16x32xf32>
    %297 = arith.mulf %292, %294 : vector<16x32xf32>
    %298 = arith.addf %296, %297 : vector<16x32xf32>
    %299 = math.tanh %298 : vector<16x32xf32>
    %300 = arith.mulf %295, %299 : vector<16x32xf32>
    %301 = tpu.concatenate %33, %69, %105, %141, %177, %213, %249, %285 in 0 : vector<16x32xf32>, vector<16x32xf32>, vector<16x32xf32>, vector<16x32xf32>, vector<16x32xf32>, vector<16x32xf32>, vector<16x32xf32>, vector<16x32xf32> -> vector<128x32xf32>
    %302 = tpu.concatenate %300, %264, %228, %192, %156, %120, %84, %48 in 0 : vector<16x32xf32>, vector<16x32xf32>, vector<16x32xf32>, vector<16x32xf32>, vector<16x32xf32>, vector<16x32xf32>, vector<16x32xf32>, vector<16x32xf32> -> vector<128x32xf32>
    %c0_71 = arith.constant 0 : index
    %c0_72 = arith.constant 0 : index
    %303 = vector.load %arg5[%c0_71, %c0_72] : memref<64x256xf32, #tpu.memory_space<vmem>>, vector<64x256xf32>
    %304 = vector.extract_strided_slice %303 {offsets = [0, 0], sizes = [32, 256], strides = [1, 1]} : vector<64x256xf32> to vector<32x256xf32>
    %cst_73 = arith.constant dense<0.000000e+00> : vector<128x256xf32>
    %305 = tpu.matmul %301, %304, %cst_73 {dimension_numbers = #tpu.dot_dimension_numbers<[1], [0], [0], [1], [0, 0, 1, 1], [], []>} : vector<128x32xf32>, vector<32x256xf32>, vector<128x256xf32> -> vector<128x256xf32>
    %306 = vector.extract_strided_slice %303 {offsets = [32, 0], sizes = [32, 256], strides = [1, 1]} : vector<64x256xf32> to vector<32x256xf32>
    %cst_74 = arith.constant dense<0.000000e+00> : vector<128x256xf32>
    %307 = tpu.matmul %302, %306, %cst_74 {dimension_numbers = #tpu.dot_dimension_numbers<[1], [0], [0], [1], [0, 0, 1, 1], [], []>} : vector<128x32xf32>, vector<32x256xf32>, vector<128x256xf32> -> vector<128x256xf32>
    %308 = arith.addf %305, %307 : vector<128x256xf32>
    %c0_75 = arith.constant 0 : index
    %c0_76 = arith.constant 0 : index
    %309 = vector.load %arg8[%c0_75, %c0_76] : memref<1x256xf32, #tpu.memory_space<vmem>>, vector<1x256xf32>
    %310 = vector.broadcast %309 : vector<1x256xf32> to vector<128x256xf32>
    %311 = arith.addf %308, %310 : vector<128x256xf32>
    %c0_77 = arith.constant 0 : index
    %c0_78 = arith.constant 0 : index
    %312 = vector.load %arg14[%c0_77, %c0_78] : memref<128x256xf32, #tpu.memory_space<vmem>>, vector<128x256xf32>
    tpu.vector_store %arg14[%c0_77, %c0_78], %311 {strides = array<i32>} : memref<128x256xf32, #tpu.memory_space<vmem>>, vector<128x256xf32>,
    %c0_79 = arith.constant 0 : index
    %c0_80 = arith.constant 0 : index
    %313 = vector.load %arg6[%c0_79, %c0_80] : memref<32x128xf32, #tpu.memory_space<vmem>>, vector<32x128xf32>
    %c0_81 = arith.constant 0 : index
    %c0_82 = arith.constant 0 : index
    %314 = vector.load %arg7[%c0_81, %c0_82] : memref<32x128xf32, #tpu.memory_space<vmem>>, vector<32x128xf32>
    %cst_83 = arith.constant 0.000000e+00 : f32
    %315 = vector.broadcast %cst_83 : f32 to vector<16x32xf32>
    %cst_84 = arith.constant 0.000000e+00 : f32
    %316 = vector.broadcast %cst_84 : f32 to vector<16x32xf32>
    %cst_85 = arith.constant 0.000000e+00 : f32
    %317 = vector.broadcast %cst_85 : f32 to vector<16x32xf32>
    %cst_86 = arith.constant 0.000000e+00 : f32
    %318 = vector.broadcast %cst_86 : f32 to vector<16x32xf32>
    %c0_87 = arith.constant 0 : index
    %c0_88 = arith.constant 0 : index
    %319 = vector.load %arg14[%c0_87, %c0_88] : memref<128x256xf32, #tpu.memory_space<vmem>>, vector<16x128xf32>
    %cst_89 = arith.constant dense<0.000000e+00> : vector<16x128xf32>
    %320 = tpu.matmul %315, %313, %cst_89 {dimension_numbers = #tpu.dot_dimension_numbers<[1], [0], [0], [1], [0, 0, 1, 1], [], []>} : vector<16x32xf32>, vector<32x128xf32>, vector<16x128xf32> -> vector<16x128xf32>
    %321 = arith.addf %319, %320 : vector<16x128xf32>
    %c112_90 = arith.constant 112 : index
    %c128_91 = arith.constant 128 : index
    %322 = vector.load %arg14[%c112_90, %c128_91] : memref<128x256xf32, #tpu.memory_space<vmem>>, vector<16x128xf32>
    %cst_92 = arith.constant dense<0.000000e+00> : vector<16x128xf32>
    %323 = tpu.matmul %317, %314, %cst_92 {dimension_numbers = #tpu.dot_dimension_numbers<[1], [0], [0], [1], [0, 0, 1, 1], [], []>} : vector<16x32xf32>, vector<32x128xf32>, vector<16x128xf32> -> vector<16x128xf32>
    %324 = arith.addf %322, %323 : vector<16x128xf32>
    %325 = arith.negf %321 : vector<16x128xf32>
    %326 = math.exp %325 : vector<16x128xf32>
    %cst_93 = arith.constant 1.000000e+00 : f32
    %327 = vector.broadcast %cst_93 : f32 to vector<16x128xf32>
    %328 = arith.addf %327, %326 : vector<16x128xf32>
    %329 = arith.divf %327, %328 : vector<16x128xf32>
    %330 = math.tanh %321 : vector<16x128xf32>
    %331 = vector.extract_strided_slice %329 {offsets = [0, 0], sizes = [16, 32], strides = [1, 1]} : vector<16x128xf32> to vector<16x32xf32>
    %332 = vector.extract_strided_slice %329 {offsets = [0, 32], sizes = [16, 32], strides = [1, 1]} : vector<16x128xf32> to vector<16x32xf32>
    %333 = vector.extract_strided_slice %330 {offsets = [0, 64], sizes = [16, 32], strides = [1, 1]} : vector<16x128xf32> to vector<16x32xf32>
    %334 = vector.extract_strided_slice %329 {offsets = [0, 96], sizes = [16, 32], strides = [1, 1]} : vector<16x128xf32> to vector<16x32xf32>
    %335 = arith.mulf %332, %316 : vector<16x32xf32>
    %336 = arith.mulf %331, %333 : vector<16x32xf32>
    %337 = arith.addf %335, %336 : vector<16x32xf32>
    %338 = math.tanh %337 : vector<16x32xf32>
    %339 = arith.mulf %334, %338 : vector<16x32xf32>
    %340 = arith.negf %324 : vector<16x128xf32>
    %341 = math.exp %340 : vector<16x128xf32>
    %cst_94 = arith.constant 1.000000e+00 : f32
    %342 = vector.broadcast %cst_94 : f32 to vector<16x128xf32>
    %343 = arith.addf %342, %341 : vector<16x128xf32>
    %344 = arith.divf %342, %343 : vector<16x128xf32>
    %345 = math.tanh %324 : vector<16x128xf32>
    %346 = vector.extract_strided_slice %344 {offsets = [0, 0], sizes = [16, 32], strides = [1, 1]} : vector<16x128xf32> to vector<16x32xf32>
    %347 = vector.extract_strided_slice %344 {offsets = [0, 32], sizes = [16, 32], strides = [1, 1]} : vector<16x128xf32> to vector<16x32xf32>
    %348 = vector.extract_strided_slice %345 {offsets = [0, 64], sizes = [16, 32], strides = [1, 1]} : vector<16x128xf32> to vector<16x32xf32>
    %349 = vector.extract_strided_slice %344 {offsets = [0, 96], sizes = [16, 32], strides = [1, 1]} : vector<16x128xf32> to vector<16x32xf32>
    %350 = arith.mulf %347, %318 : vector<16x32xf32>
    %351 = arith.mulf %346, %348 : vector<16x32xf32>
    %352 = arith.addf %350, %351 : vector<16x32xf32>
    %353 = math.tanh %352 : vector<16x32xf32>
    %354 = arith.mulf %349, %353 : vector<16x32xf32>
    %355 = vector.extract_strided_slice %339 {offsets = [15, 0], sizes = [1, 32], strides = [1, 1]} : vector<16x32xf32> to vector<1x32xf32>
    %356 = vector.extract_strided_slice %354 {offsets = [15, 0], sizes = [1, 32], strides = [1, 1]} : vector<16x32xf32> to vector<1x32xf32>
    %c16_95 = arith.constant 16 : index
    %c0_96 = arith.constant 0 : index
    %357 = vector.load %arg14[%c16_95, %c0_96] : memref<128x256xf32, #tpu.memory_space<vmem>>, vector<16x128xf32>
    %cst_97 = arith.constant dense<0.000000e+00> : vector<16x128xf32>
    %358 = tpu.matmul %339, %313, %cst_97 {dimension_numbers = #tpu.dot_dimension_numbers<[1], [0], [0], [1], [0, 0, 1, 1], [], []>} : vector<16x32xf32>, vector<32x128xf32>, vector<16x128xf32> -> vector<16x128xf32>
    %359 = arith.addf %357, %358 : vector<16x128xf32>
    %c96_98 = arith.constant 96 : index
    %c128_99 = arith.constant 128 : index
    %360 = vector.load %arg14[%c96_98, %c128_99] : memref<128x256xf32, #tpu.memory_space<vmem>>, vector<16x128xf32>
    %cst_100 = arith.constant dense<0.000000e+00> : vector<16x128xf32>
    %361 = tpu.matmul %354, %314, %cst_100 {dimension_numbers = #tpu.dot_dimension_numbers<[1], [0], [0], [1], [0, 0, 1, 1], [], []>} : vector<16x32xf32>, vector<32x128xf32>, vector<16x128xf32> -> vector<16x128xf32>
    %362 = arith.addf %360, %361 : vector<16x128xf32>
    %363 = arith.negf %359 : vector<16x128xf32>
    %364 = math.exp %363 : vector<16x128xf32>
    %cst_101 = arith.constant 1.000000e+00 : f32
    %365 = vector.broadcast %cst_101 : f32 to vector<16x128xf32>
    %366 = arith.addf %365, %364 : vector<16x128xf32>
    %367 = arith.divf %365, %366 : vector<16x128xf32>
    %368 = math.tanh %359 : vector<16x128xf32>
    %369 = vector.extract_strided_slice %367 {offsets = [0, 0], sizes = [16, 32], strides = [1, 1]} : vector<16x128xf32> to vector<16x32xf32>
    %370 = vector.extract_strided_slice %367 {offsets = [0, 32], sizes = [16, 32], strides = [1, 1]} : vector<16x128xf32> to vector<16x32xf32>
    %371 = vector.extract_strided_slice %368 {offsets = [0, 64], sizes = [16, 32], strides = [1, 1]} : vector<16x128xf32> to vector<16x32xf32>
    %372 = vector.extract_strided_slice %367 {offsets = [0, 96], sizes = [16, 32], strides = [1, 1]} : vector<16x128xf32> to vector<16x32xf32>
    %373 = arith.mulf %370, %337 : vector<16x32xf32>
    %374 = arith.mulf %369, %371 : vector<16x32xf32>
    %375 = arith.addf %373, %374 : vector<16x32xf32>
    %376 = math.tanh %375 : vector<16x32xf32>
    %377 = arith.mulf %372, %376 : vector<16x32xf32>
    %378 = arith.negf %362 : vector<16x128xf32>
    %379 = math.exp %378 : vector<16x128xf32>
    %cst_102 = arith.constant 1.000000e+00 : f32
    %380 = vector.broadcast %cst_102 : f32 to vector<16x128xf32>
    %381 = arith.addf %380, %379 : vector<16x128xf32>
    %382 = arith.divf %380, %381 : vector<16x128xf32>
    %383 = math.tanh %362 : vector<16x128xf32>
    %384 = vector.extract_strided_slice %382 {offsets = [0, 0], sizes = [16, 32], strides = [1, 1]} : vector<16x128xf32> to vector<16x32xf32>
    %385 = vector.extract_strided_slice %382 {offsets = [0, 32], sizes = [16, 32], strides = [1, 1]} : vector<16x128xf32> to vector<16x32xf32>
    %386 = vector.extract_strided_slice %383 {offsets = [0, 64], sizes = [16, 32], strides = [1, 1]} : vector<16x128xf32> to vector<16x32xf32>
    %387 = vector.extract_strided_slice %382 {offsets = [0, 96], sizes = [16, 32], strides = [1, 1]} : vector<16x128xf32> to vector<16x32xf32>
    %388 = arith.mulf %385, %352 : vector<16x32xf32>
    %389 = arith.mulf %384, %386 : vector<16x32xf32>
    %390 = arith.addf %388, %389 : vector<16x32xf32>
    %391 = math.tanh %390 : vector<16x32xf32>
    %392 = arith.mulf %387, %391 : vector<16x32xf32>
    %393 = vector.extract_strided_slice %377 {offsets = [15, 0], sizes = [1, 32], strides = [1, 1]} : vector<16x32xf32> to vector<1x32xf32>
    %394 = vector.extract_strided_slice %392 {offsets = [15, 0], sizes = [1, 32], strides = [1, 1]} : vector<16x32xf32> to vector<1x32xf32>
    %c32_103 = arith.constant 32 : index
    %c0_104 = arith.constant 0 : index
    %395 = vector.load %arg14[%c32_103, %c0_104] : memref<128x256xf32, #tpu.memory_space<vmem>>, vector<16x128xf32>
    %cst_105 = arith.constant dense<0.000000e+00> : vector<16x128xf32>
    %396 = tpu.matmul %377, %313, %cst_105 {dimension_numbers = #tpu.dot_dimension_numbers<[1], [0], [0], [1], [0, 0, 1, 1], [], []>} : vector<16x32xf32>, vector<32x128xf32>, vector<16x128xf32> -> vector<16x128xf32>
    %397 = arith.addf %395, %396 : vector<16x128xf32>
    %c80_106 = arith.constant 80 : index
    %c128_107 = arith.constant 128 : index
    %398 = vector.load %arg14[%c80_106, %c128_107] : memref<128x256xf32, #tpu.memory_space<vmem>>, vector<16x128xf32>
    %cst_108 = arith.constant dense<0.000000e+00> : vector<16x128xf32>
    %399 = tpu.matmul %392, %314, %cst_108 {dimension_numbers = #tpu.dot_dimension_numbers<[1], [0], [0], [1], [0, 0, 1, 1], [], []>} : vector<16x32xf32>, vector<32x128xf32>, vector<16x128xf32> -> vector<16x128xf32>
    %400 = arith.addf %398, %399 : vector<16x128xf32>
    %401 = arith.negf %397 : vector<16x128xf32>
    %402 = math.exp %401 : vector<16x128xf32>
    %cst_109 = arith.constant 1.000000e+00 : f32
    %403 = vector.broadcast %cst_109 : f32 to vector<16x128xf32>
    %404 = arith.addf %403, %402 : vector<16x128xf32>
    %405 = arith.divf %403, %404 : vector<16x128xf32>
    %406 = math.tanh %397 : vector<16x128xf32>
    %407 = vector.extract_strided_slice %405 {offsets = [0, 0], sizes = [16, 32], strides = [1, 1]} : vector<16x128xf32> to vector<16x32xf32>
    %408 = vector.extract_strided_slice %405 {offsets = [0, 32], sizes = [16, 32], strides = [1, 1]} : vector<16x128xf32> to vector<16x32xf32>
    %409 = vector.extract_strided_slice %406 {offsets = [0, 64], sizes = [16, 32], strides = [1, 1]} : vector<16x128xf32> to vector<16x32xf32>
    %410 = vector.extract_strided_slice %405 {offsets = [0, 96], sizes = [16, 32], strides = [1, 1]} : vector<16x128xf32> to vector<16x32xf32>
    %411 = arith.mulf %408, %375 : vector<16x32xf32>
    %412 = arith.mulf %407, %409 : vector<16x32xf32>
    %413 = arith.addf %411, %412 : vector<16x32xf32>
    %414 = math.tanh %413 : vector<16x32xf32>
    %415 = arith.mulf %410, %414 : vector<16x32xf32>
    %416 = arith.negf %400 : vector<16x128xf32>
    %417 = math.exp %416 : vector<16x128xf32>
    %cst_110 = arith.constant 1.000000e+00 : f32
    %418 = vector.broadcast %cst_110 : f32 to vector<16x128xf32>
    %419 = arith.addf %418, %417 : vector<16x128xf32>
    %420 = arith.divf %418, %419 : vector<16x128xf32>
    %421 = math.tanh %400 : vector<16x128xf32>
    %422 = vector.extract_strided_slice %420 {offsets = [0, 0], sizes = [16, 32], strides = [1, 1]} : vector<16x128xf32> to vector<16x32xf32>
    %423 = vector.extract_strided_slice %420 {offsets = [0, 32], sizes = [16, 32], strides = [1, 1]} : vector<16x128xf32> to vector<16x32xf32>
    %424 = vector.extract_strided_slice %421 {offsets = [0, 64], sizes = [16, 32], strides = [1, 1]} : vector<16x128xf32> to vector<16x32xf32>
    %425 = vector.extract_strided_slice %420 {offsets = [0, 96], sizes = [16, 32], strides = [1, 1]} : vector<16x128xf32> to vector<16x32xf32>
    %426 = arith.mulf %423, %390 : vector<16x32xf32>
    %427 = arith.mulf %422, %424 : vector<16x32xf32>
    %428 = arith.addf %426, %427 : vector<16x32xf32>
    %429 = math.tanh %428 : vector<16x32xf32>
    %430 = arith.mulf %425, %429 : vector<16x32xf32>
    %431 = vector.extract_strided_slice %415 {offsets = [15, 0], sizes = [1, 32], strides = [1, 1]} : vector<16x32xf32> to vector<1x32xf32>
    %432 = vector.extract_strided_slice %430 {offsets = [15, 0], sizes = [1, 32], strides = [1, 1]} : vector<16x32xf32> to vector<1x32xf32>
    %c48_111 = arith.constant 48 : index
    %c0_112 = arith.constant 0 : index
    %433 = vector.load %arg14[%c48_111, %c0_112] : memref<128x256xf32, #tpu.memory_space<vmem>>, vector<16x128xf32>
    %cst_113 = arith.constant dense<0.000000e+00> : vector<16x128xf32>
    %434 = tpu.matmul %415, %313, %cst_113 {dimension_numbers = #tpu.dot_dimension_numbers<[1], [0], [0], [1], [0, 0, 1, 1], [], []>} : vector<16x32xf32>, vector<32x128xf32>, vector<16x128xf32> -> vector<16x128xf32>
    %435 = arith.addf %433, %434 : vector<16x128xf32>
    %c64_114 = arith.constant 64 : index
    %c128_115 = arith.constant 128 : index
    %436 = vector.load %arg14[%c64_114, %c128_115] : memref<128x256xf32, #tpu.memory_space<vmem>>, vector<16x128xf32>
    %cst_116 = arith.constant dense<0.000000e+00> : vector<16x128xf32>
    %437 = tpu.matmul %430, %314, %cst_116 {dimension_numbers = #tpu.dot_dimension_numbers<[1], [0], [0], [1], [0, 0, 1, 1], [], []>} : vector<16x32xf32>, vector<32x128xf32>, vector<16x128xf32> -> vector<16x128xf32>
    %438 = arith.addf %436, %437 : vector<16x128xf32>
    %439 = arith.negf %435 : vector<16x128xf32>
    %440 = math.exp %439 : vector<16x128xf32>
    %cst_117 = arith.constant 1.000000e+00 : f32
    %441 = vector.broadcast %cst_117 : f32 to vector<16x128xf32>
    %442 = arith.addf %441, %440 : vector<16x128xf32>
    %443 = arith.divf %441, %442 : vector<16x128xf32>
    %444 = math.tanh %435 : vector<16x128xf32>
    %445 = vector.extract_strided_slice %443 {offsets = [0, 0], sizes = [16, 32], strides = [1, 1]} : vector<16x128xf32> to vector<16x32xf32>
    %446 = vector.extract_strided_slice %443 {offsets = [0, 32], sizes = [16, 32], strides = [1, 1]} : vector<16x128xf32> to vector<16x32xf32>
    %447 = vector.extract_strided_slice %444 {offsets = [0, 64], sizes = [16, 32], strides = [1, 1]} : vector<16x128xf32> to vector<16x32xf32>
    %448 = vector.extract_strided_slice %443 {offsets = [0, 96], sizes = [16, 32], strides = [1, 1]} : vector<16x128xf32> to vector<16x32xf32>
    %449 = arith.mulf %446, %413 : vector<16x32xf32>
    %450 = arith.mulf %445, %447 : vector<16x32xf32>
    %451 = arith.addf %449, %450 : vector<16x32xf32>
    %452 = math.tanh %451 : vector<16x32xf32>
    %453 = arith.mulf %448, %452 : vector<16x32xf32>
    %454 = arith.negf %438 : vector<16x128xf32>
    %455 = math.exp %454 : vector<16x128xf32>
    %cst_118 = arith.constant 1.000000e+00 : f32
    %456 = vector.broadcast %cst_118 : f32 to vector<16x128xf32>
    %457 = arith.addf %456, %455 : vector<16x128xf32>
    %458 = arith.divf %456, %457 : vector<16x128xf32>
    %459 = math.tanh %438 : vector<16x128xf32>
    %460 = vector.extract_strided_slice %458 {offsets = [0, 0], sizes = [16, 32], strides = [1, 1]} : vector<16x128xf32> to vector<16x32xf32>
    %461 = vector.extract_strided_slice %458 {offsets = [0, 32], sizes = [16, 32], strides = [1, 1]} : vector<16x128xf32> to vector<16x32xf32>
    %462 = vector.extract_strided_slice %459 {offsets = [0, 64], sizes = [16, 32], strides = [1, 1]} : vector<16x128xf32> to vector<16x32xf32>
    %463 = vector.extract_strided_slice %458 {offsets = [0, 96], sizes = [16, 32], strides = [1, 1]} : vector<16x128xf32> to vector<16x32xf32>
    %464 = arith.mulf %461, %428 : vector<16x32xf32>
    %465 = arith.mulf %460, %462 : vector<16x32xf32>
    %466 = arith.addf %464, %465 : vector<16x32xf32>
    %467 = math.tanh %466 : vector<16x32xf32>
    %468 = arith.mulf %463, %467 : vector<16x32xf32>
    %469 = vector.extract_strided_slice %453 {offsets = [15, 0], sizes = [1, 32], strides = [1, 1]} : vector<16x32xf32> to vector<1x32xf32>
    %470 = vector.extract_strided_slice %468 {offsets = [15, 0], sizes = [1, 32], strides = [1, 1]} : vector<16x32xf32> to vector<1x32xf32>
    %c64_119 = arith.constant 64 : index
    %c0_120 = arith.constant 0 : index
    %471 = vector.load %arg14[%c64_119, %c0_120] : memref<128x256xf32, #tpu.memory_space<vmem>>, vector<16x128xf32>
    %cst_121 = arith.constant dense<0.000000e+00> : vector<16x128xf32>
    %472 = tpu.matmul %453, %313, %cst_121 {dimension_numbers = #tpu.dot_dimension_numbers<[1], [0], [0], [1], [0, 0, 1, 1], [], []>} : vector<16x32xf32>, vector<32x128xf32>, vector<16x128xf32> -> vector<16x128xf32>
    %473 = arith.addf %471, %472 : vector<16x128xf32>
    %c48_122 = arith.constant 48 : index
    %c128_123 = arith.constant 128 : index
    %474 = vector.load %arg14[%c48_122, %c128_123] : memref<128x256xf32, #tpu.memory_space<vmem>>, vector<16x128xf32>
    %cst_124 = arith.constant dense<0.000000e+00> : vector<16x128xf32>
    %475 = tpu.matmul %468, %314, %cst_124 {dimension_numbers = #tpu.dot_dimension_numbers<[1], [0], [0], [1], [0, 0, 1, 1], [], []>} : vector<16x32xf32>, vector<32x128xf32>, vector<16x128xf32> -> vector<16x128xf32>
    %476 = arith.addf %474, %475 : vector<16x128xf32>
    %477 = arith.negf %473 : vector<16x128xf32>
    %478 = math.exp %477 : vector<16x128xf32>
    %cst_125 = arith.constant 1.000000e+00 : f32
    %479 = vector.broadcast %cst_125 : f32 to vector<16x128xf32>
    %480 = arith.addf %479, %478 : vector<16x128xf32>
    %481 = arith.divf %479, %480 : vector<16x128xf32>
    %482 = math.tanh %473 : vector<16x128xf32>
    %483 = vector.extract_strided_slice %481 {offsets = [0, 0], sizes = [16, 32], strides = [1, 1]} : vector<16x128xf32> to vector<16x32xf32>
    %484 = vector.extract_strided_slice %481 {offsets = [0, 32], sizes = [16, 32], strides = [1, 1]} : vector<16x128xf32> to vector<16x32xf32>
    %485 = vector.extract_strided_slice %482 {offsets = [0, 64], sizes = [16, 32], strides = [1, 1]} : vector<16x128xf32> to vector<16x32xf32>
    %486 = vector.extract_strided_slice %481 {offsets = [0, 96], sizes = [16, 32], strides = [1, 1]} : vector<16x128xf32> to vector<16x32xf32>
    %487 = arith.mulf %484, %451 : vector<16x32xf32>
    %488 = arith.mulf %483, %485 : vector<16x32xf32>
    %489 = arith.addf %487, %488 : vector<16x32xf32>
    %490 = math.tanh %489 : vector<16x32xf32>
    %491 = arith.mulf %486, %490 : vector<16x32xf32>
    %492 = arith.negf %476 : vector<16x128xf32>
    %493 = math.exp %492 : vector<16x128xf32>
    %cst_126 = arith.constant 1.000000e+00 : f32
    %494 = vector.broadcast %cst_126 : f32 to vector<16x128xf32>
    %495 = arith.addf %494, %493 : vector<16x128xf32>
    %496 = arith.divf %494, %495 : vector<16x128xf32>
    %497 = math.tanh %476 : vector<16x128xf32>
    %498 = vector.extract_strided_slice %496 {offsets = [0, 0], sizes = [16, 32], strides = [1, 1]} : vector<16x128xf32> to vector<16x32xf32>
    %499 = vector.extract_strided_slice %496 {offsets = [0, 32], sizes = [16, 32], strides = [1, 1]} : vector<16x128xf32> to vector<16x32xf32>
    %500 = vector.extract_strided_slice %497 {offsets = [0, 64], sizes = [16, 32], strides = [1, 1]} : vector<16x128xf32> to vector<16x32xf32>
    %501 = vector.extract_strided_slice %496 {offsets = [0, 96], sizes = [16, 32], strides = [1, 1]} : vector<16x128xf32> to vector<16x32xf32>
    %502 = arith.mulf %499, %466 : vector<16x32xf32>
    %503 = arith.mulf %498, %500 : vector<16x32xf32>
    %504 = arith.addf %502, %503 : vector<16x32xf32>
    %505 = math.tanh %504 : vector<16x32xf32>
    %506 = arith.mulf %501, %505 : vector<16x32xf32>
    %507 = vector.extract_strided_slice %491 {offsets = [15, 0], sizes = [1, 32], strides = [1, 1]} : vector<16x32xf32> to vector<1x32xf32>
    %508 = vector.extract_strided_slice %506 {offsets = [15, 0], sizes = [1, 32], strides = [1, 1]} : vector<16x32xf32> to vector<1x32xf32>
    %c80_127 = arith.constant 80 : index
    %c0_128 = arith.constant 0 : index
    %509 = vector.load %arg14[%c80_127, %c0_128] : memref<128x256xf32, #tpu.memory_space<vmem>>, vector<16x128xf32>
    %cst_129 = arith.constant dense<0.000000e+00> : vector<16x128xf32>
    %510 = tpu.matmul %491, %313, %cst_129 {dimension_numbers = #tpu.dot_dimension_numbers<[1], [0], [0], [1], [0, 0, 1, 1], [], []>} : vector<16x32xf32>, vector<32x128xf32>, vector<16x128xf32> -> vector<16x128xf32>
    %511 = arith.addf %509, %510 : vector<16x128xf32>
    %c32_130 = arith.constant 32 : index
    %c128_131 = arith.constant 128 : index
    %512 = vector.load %arg14[%c32_130, %c128_131] : memref<128x256xf32, #tpu.memory_space<vmem>>, vector<16x128xf32>
    %cst_132 = arith.constant dense<0.000000e+00> : vector<16x128xf32>
    %513 = tpu.matmul %506, %314, %cst_132 {dimension_numbers = #tpu.dot_dimension_numbers<[1], [0], [0], [1], [0, 0, 1, 1], [], []>} : vector<16x32xf32>, vector<32x128xf32>, vector<16x128xf32> -> vector<16x128xf32>
    %514 = arith.addf %512, %513 : vector<16x128xf32>
    %515 = arith.negf %511 : vector<16x128xf32>
    %516 = math.exp %515 : vector<16x128xf32>
    %cst_133 = arith.constant 1.000000e+00 : f32
    %517 = vector.broadcast %cst_133 : f32 to vector<16x128xf32>
    %518 = arith.addf %517, %516 : vector<16x128xf32>
    %519 = arith.divf %517, %518 : vector<16x128xf32>
    %520 = math.tanh %511 : vector<16x128xf32>
    %521 = vector.extract_strided_slice %519 {offsets = [0, 0], sizes = [16, 32], strides = [1, 1]} : vector<16x128xf32> to vector<16x32xf32>
    %522 = vector.extract_strided_slice %519 {offsets = [0, 32], sizes = [16, 32], strides = [1, 1]} : vector<16x128xf32> to vector<16x32xf32>
    %523 = vector.extract_strided_slice %520 {offsets = [0, 64], sizes = [16, 32], strides = [1, 1]} : vector<16x128xf32> to vector<16x32xf32>
    %524 = vector.extract_strided_slice %519 {offsets = [0, 96], sizes = [16, 32], strides = [1, 1]} : vector<16x128xf32> to vector<16x32xf32>
    %525 = arith.mulf %522, %489 : vector<16x32xf32>
    %526 = arith.mulf %521, %523 : vector<16x32xf32>
    %527 = arith.addf %525, %526 : vector<16x32xf32>
    %528 = math.tanh %527 : vector<16x32xf32>
    %529 = arith.mulf %524, %528 : vector<16x32xf32>
    %530 = arith.negf %514 : vector<16x128xf32>
    %531 = math.exp %530 : vector<16x128xf32>
    %cst_134 = arith.constant 1.000000e+00 : f32
    %532 = vector.broadcast %cst_134 : f32 to vector<16x128xf32>
    %533 = arith.addf %532, %531 : vector<16x128xf32>
    %534 = arith.divf %532, %533 : vector<16x128xf32>
    %535 = math.tanh %514 : vector<16x128xf32>
    %536 = vector.extract_strided_slice %534 {offsets = [0, 0], sizes = [16, 32], strides = [1, 1]} : vector<16x128xf32> to vector<16x32xf32>
    %537 = vector.extract_strided_slice %534 {offsets = [0, 32], sizes = [16, 32], strides = [1, 1]} : vector<16x128xf32> to vector<16x32xf32>
    %538 = vector.extract_strided_slice %535 {offsets = [0, 64], sizes = [16, 32], strides = [1, 1]} : vector<16x128xf32> to vector<16x32xf32>
    %539 = vector.extract_strided_slice %534 {offsets = [0, 96], sizes = [16, 32], strides = [1, 1]} : vector<16x128xf32> to vector<16x32xf32>
    %540 = arith.mulf %537, %504 : vector<16x32xf32>
    %541 = arith.mulf %536, %538 : vector<16x32xf32>
    %542 = arith.addf %540, %541 : vector<16x32xf32>
    %543 = math.tanh %542 : vector<16x32xf32>
    %544 = arith.mulf %539, %543 : vector<16x32xf32>
    %545 = vector.extract_strided_slice %529 {offsets = [15, 0], sizes = [1, 32], strides = [1, 1]} : vector<16x32xf32> to vector<1x32xf32>
    %546 = vector.extract_strided_slice %544 {offsets = [15, 0], sizes = [1, 32], strides = [1, 1]} : vector<16x32xf32> to vector<1x32xf32>
    %c96_135 = arith.constant 96 : index
    %c0_136 = arith.constant 0 : index
    %547 = vector.load %arg14[%c96_135, %c0_136] : memref<128x256xf32, #tpu.memory_space<vmem>>, vector<16x128xf32>
    %cst_137 = arith.constant dense<0.000000e+00> : vector<16x128xf32>
    %548 = tpu.matmul %529, %313, %cst_137 {dimension_numbers = #tpu.dot_dimension_numbers<[1], [0], [0], [1], [0, 0, 1, 1], [], []>} : vector<16x32xf32>, vector<32x128xf32>, vector<16x128xf32> -> vector<16x128xf32>
    %549 = arith.addf %547, %548 : vector<16x128xf32>
    %c16_138 = arith.constant 16 : index
    %c128_139 = arith.constant 128 : index
    %550 = vector.load %arg14[%c16_138, %c128_139] : memref<128x256xf32, #tpu.memory_space<vmem>>, vector<16x128xf32>
    %cst_140 = arith.constant dense<0.000000e+00> : vector<16x128xf32>
    %551 = tpu.matmul %544, %314, %cst_140 {dimension_numbers = #tpu.dot_dimension_numbers<[1], [0], [0], [1], [0, 0, 1, 1], [], []>} : vector<16x32xf32>, vector<32x128xf32>, vector<16x128xf32> -> vector<16x128xf32>
    %552 = arith.addf %550, %551 : vector<16x128xf32>
    %553 = arith.negf %549 : vector<16x128xf32>
    %554 = math.exp %553 : vector<16x128xf32>
    %cst_141 = arith.constant 1.000000e+00 : f32
    %555 = vector.broadcast %cst_141 : f32 to vector<16x128xf32>
    %556 = arith.addf %555, %554 : vector<16x128xf32>
    %557 = arith.divf %555, %556 : vector<16x128xf32>
    %558 = math.tanh %549 : vector<16x128xf32>
    %559 = vector.extract_strided_slice %557 {offsets = [0, 0], sizes = [16, 32], strides = [1, 1]} : vector<16x128xf32> to vector<16x32xf32>
    %560 = vector.extract_strided_slice %557 {offsets = [0, 32], sizes = [16, 32], strides = [1, 1]} : vector<16x128xf32> to vector<16x32xf32>
    %561 = vector.extract_strided_slice %558 {offsets = [0, 64], sizes = [16, 32], strides = [1, 1]} : vector<16x128xf32> to vector<16x32xf32>
    %562 = vector.extract_strided_slice %557 {offsets = [0, 96], sizes = [16, 32], strides = [1, 1]} : vector<16x128xf32> to vector<16x32xf32>
    %563 = arith.mulf %560, %527 : vector<16x32xf32>
    %564 = arith.mulf %559, %561 : vector<16x32xf32>
    %565 = arith.addf %563, %564 : vector<16x32xf32>
    %566 = math.tanh %565 : vector<16x32xf32>
    %567 = arith.mulf %562, %566 : vector<16x32xf32>
    %568 = arith.negf %552 : vector<16x128xf32>
    %569 = math.exp %568 : vector<16x128xf32>
    %cst_142 = arith.constant 1.000000e+00 : f32
    %570 = vector.broadcast %cst_142 : f32 to vector<16x128xf32>
    %571 = arith.addf %570, %569 : vector<16x128xf32>
    %572 = arith.divf %570, %571 : vector<16x128xf32>
    %573 = math.tanh %552 : vector<16x128xf32>
    %574 = vector.extract_strided_slice %572 {offsets = [0, 0], sizes = [16, 32], strides = [1, 1]} : vector<16x128xf32> to vector<16x32xf32>
    %575 = vector.extract_strided_slice %572 {offsets = [0, 32], sizes = [16, 32], strides = [1, 1]} : vector<16x128xf32> to vector<16x32xf32>
    %576 = vector.extract_strided_slice %573 {offsets = [0, 64], sizes = [16, 32], strides = [1, 1]} : vector<16x128xf32> to vector<16x32xf32>
    %577 = vector.extract_strided_slice %572 {offsets = [0, 96], sizes = [16, 32], strides = [1, 1]} : vector<16x128xf32> to vector<16x32xf32>
    %578 = arith.mulf %575, %542 : vector<16x32xf32>
    %579 = arith.mulf %574, %576 : vector<16x32xf32>
    %580 = arith.addf %578, %579 : vector<16x32xf32>
    %581 = math.tanh %580 : vector<16x32xf32>
    %582 = arith.mulf %577, %581 : vector<16x32xf32>
    %583 = vector.extract_strided_slice %567 {offsets = [15, 0], sizes = [1, 32], strides = [1, 1]} : vector<16x32xf32> to vector<1x32xf32>
    %584 = vector.extract_strided_slice %582 {offsets = [15, 0], sizes = [1, 32], strides = [1, 1]} : vector<16x32xf32> to vector<1x32xf32>
    %c112_143 = arith.constant 112 : index
    %c0_144 = arith.constant 0 : index
    %585 = vector.load %arg14[%c112_143, %c0_144] : memref<128x256xf32, #tpu.memory_space<vmem>>, vector<16x128xf32>
    %cst_145 = arith.constant dense<0.000000e+00> : vector<16x128xf32>
    %586 = tpu.matmul %567, %313, %cst_145 {dimension_numbers = #tpu.dot_dimension_numbers<[1], [0], [0], [1], [0, 0, 1, 1], [], []>} : vector<16x32xf32>, vector<32x128xf32>, vector<16x128xf32> -> vector<16x128xf32>
    %587 = arith.addf %585, %586 : vector<16x128xf32>
    %c0_146 = arith.constant 0 : index
    %c128_147 = arith.constant 128 : index
    %588 = vector.load %arg14[%c0_146, %c128_147] : memref<128x256xf32, #tpu.memory_space<vmem>>, vector<16x128xf32>
    %cst_148 = arith.constant dense<0.000000e+00> : vector<16x128xf32>
    %589 = tpu.matmul %582, %314, %cst_148 {dimension_numbers = #tpu.dot_dimension_numbers<[1], [0], [0], [1], [0, 0, 1, 1], [], []>} : vector<16x32xf32>, vector<32x128xf32>, vector<16x128xf32> -> vector<16x128xf32>
    %590 = arith.addf %588, %589 : vector<16x128xf32>
    %591 = arith.negf %587 : vector<16x128xf32>
    %592 = math.exp %591 : vector<16x128xf32>
    %cst_149 = arith.constant 1.000000e+00 : f32
    %593 = vector.broadcast %cst_149 : f32 to vector<16x128xf32>
    %594 = arith.addf %593, %592 : vector<16x128xf32>
    %595 = arith.divf %593, %594 : vector<16x128xf32>
    %596 = math.tanh %587 : vector<16x128xf32>
    %597 = vector.extract_strided_slice %595 {offsets = [0, 0], sizes = [16, 32], strides = [1, 1]} : vector<16x128xf32> to vector<16x32xf32>
    %598 = vector.extract_strided_slice %595 {offsets = [0, 32], sizes = [16, 32], strides = [1, 1]} : vector<16x128xf32> to vector<16x32xf32>
    %599 = vector.extract_strided_slice %596 {offsets = [0, 64], sizes = [16, 32], strides = [1, 1]} : vector<16x128xf32> to vector<16x32xf32>
    %600 = vector.extract_strided_slice %595 {offsets = [0, 96], sizes = [16, 32], strides = [1, 1]} : vector<16x128xf32> to vector<16x32xf32>
    %601 = arith.mulf %598, %565 : vector<16x32xf32>
    %602 = arith.mulf %597, %599 : vector<16x32xf32>
    %603 = arith.addf %601, %602 : vector<16x32xf32>
    %604 = math.tanh %603 : vector<16x32xf32>
    %605 = arith.mulf %600, %604 : vector<16x32xf32>
    %606 = arith.negf %590 : vector<16x128xf32>
    %607 = math.exp %606 : vector<16x128xf32>
    %cst_150 = arith.constant 1.000000e+00 : f32
    %608 = vector.broadcast %cst_150 : f32 to vector<16x128xf32>
    %609 = arith.addf %608, %607 : vector<16x128xf32>
    %610 = arith.divf %608, %609 : vector<16x128xf32>
    %611 = math.tanh %590 : vector<16x128xf32>
    %612 = vector.extract_strided_slice %610 {offsets = [0, 0], sizes = [16, 32], strides = [1, 1]} : vector<16x128xf32> to vector<16x32xf32>
    %613 = vector.extract_strided_slice %610 {offsets = [0, 32], sizes = [16, 32], strides = [1, 1]} : vector<16x128xf32> to vector<16x32xf32>
    %614 = vector.extract_strided_slice %611 {offsets = [0, 64], sizes = [16, 32], strides = [1, 1]} : vector<16x128xf32> to vector<16x32xf32>
    %615 = vector.extract_strided_slice %610 {offsets = [0, 96], sizes = [16, 32], strides = [1, 1]} : vector<16x128xf32> to vector<16x32xf32>
    %616 = arith.mulf %613, %580 : vector<16x32xf32>
    %617 = arith.mulf %612, %614 : vector<16x32xf32>
    %618 = arith.addf %616, %617 : vector<16x32xf32>
    %619 = math.tanh %618 : vector<16x32xf32>
    %620 = arith.mulf %615, %619 : vector<16x32xf32>
    %621 = vector.extract_strided_slice %605 {offsets = [15, 0], sizes = [1, 32], strides = [1, 1]} : vector<16x32xf32> to vector<1x32xf32>
    %622 = vector.extract_strided_slice %620 {offsets = [15, 0], sizes = [1, 32], strides = [1, 1]} : vector<16x32xf32> to vector<1x32xf32>
    %623 = tpu.concatenate %355, %393, %431, %469, %507, %545, %583, %621 in 0 : vector<1x32xf32>, vector<1x32xf32>, vector<1x32xf32>, vector<1x32xf32>, vector<1x32xf32>, vector<1x32xf32>, vector<1x32xf32>, vector<1x32xf32> -> vector<8x32xf32>
    %624 = tpu.concatenate %622, %584, %546, %508, %470, %432, %394, %356 in 0 : vector<1x32xf32>, vector<1x32xf32>, vector<1x32xf32>, vector<1x32xf32>, vector<1x32xf32>, vector<1x32xf32>, vector<1x32xf32>, vector<1x32xf32> -> vector<8x32xf32>
    %c0_151 = arith.constant 0 : index
    %c0_152 = arith.constant 0 : index
    %625 = vector.load %arg9[%c0_151, %c0_152] : memref<64x32xf32, #tpu.memory_space<vmem>>, vector<64x32xf32>
    %626 = vector.extract_strided_slice %625 {offsets = [0, 0], sizes = [32, 32], strides = [1, 1]} : vector<64x32xf32> to vector<32x32xf32>
    %cst_153 = arith.constant dense<0.000000e+00> : vector<8x32xf32>
    %627 = tpu.matmul %623, %626, %cst_153 {dimension_numbers = #tpu.dot_dimension_numbers<[1], [0], [0], [1], [0, 0, 1, 1], [], []>} : vector<8x32xf32>, vector<32x32xf32>, vector<8x32xf32> -> vector<8x32xf32>
    %628 = vector.extract_strided_slice %625 {offsets = [32, 0], sizes = [32, 32], strides = [1, 1]} : vector<64x32xf32> to vector<32x32xf32>
    %cst_154 = arith.constant dense<0.000000e+00> : vector<8x32xf32>
    %629 = tpu.matmul %624, %628, %cst_154 {dimension_numbers = #tpu.dot_dimension_numbers<[1], [0], [0], [1], [0, 0, 1, 1], [], []>} : vector<8x32xf32>, vector<32x32xf32>, vector<8x32xf32> -> vector<8x32xf32>
    %630 = arith.addf %627, %629 : vector<8x32xf32>
    %c0_155 = arith.constant 0 : index
    %c0_156 = arith.constant 0 : index
    %631 = vector.load %arg10[%c0_155, %c0_156] : memref<1x32xf32, #tpu.memory_space<vmem>>, vector<1x32xf32>
    %632 = vector.broadcast %631 : vector<1x32xf32> to vector<8x32xf32>
    %633 = arith.addf %630, %632 : vector<8x32xf32>
    %cst_157 = arith.constant 0.000000e+00 : f32
    %634 = vector.broadcast %cst_157 : f32 to vector<8x32xf32>
    %635 = arith.cmpf oge, %633, %634 : vector<8x32xf32>
    %cst_158 = arith.constant 0.00999999977 : f32
    %636 = vector.broadcast %cst_158 : f32 to vector<8x32xf32>
    %637 = arith.mulf %636, %633 : vector<8x32xf32>
    %638 = arith.select %635, %633, %637 : vector<8x32xi1>, vector<8x32xf32>
    %c0_159 = arith.constant 0 : index
    %c0_160 = arith.constant 0 : index
    %639 = vector.load %arg11[%c0_159, %c0_160] : memref<1x32xf32, #tpu.memory_space<vmem>>, vector<1x32xf32>
    %640 = vector.broadcast %639 : vector<1x32xf32> to vector<8x32xf32>
    %641 = arith.mulf %638, %640 : vector<8x32xf32>
    %cst_161 = arith.constant dense<0.000000e+00> : vector<8xf32>
    %642 = vector.multi_reduction <add>, %641, %cst_161 [1] : vector<8x32xf32> to vector<8xf32>
    %643 = vector.shape_cast %642 : vector<8xf32> to vector<8x1xf32>
    %c0_162 = arith.constant 0 : index
    %c0_163 = arith.constant 0 : index
    %644 = vector.load %arg12[%c0_162, %c0_163] : memref<1x1xf32, #tpu.memory_space<vmem>>, vector<1x1xf32>
    %645 = vector.broadcast %644 : vector<1x1xf32> to vector<8x1xf32>
    %646 = arith.addf %643, %645 : vector<8x1xf32>
    %647 = arith.negf %646 : vector<8x1xf32>
    %648 = math.exp %647 : vector<8x1xf32>
    %cst_164 = arith.constant 1.000000e+00 : f32
    %649 = vector.broadcast %cst_164 : f32 to vector<8x1xf32>
    %650 = arith.addf %649, %648 : vector<8x1xf32>
    %651 = arith.divf %649, %650 : vector<8x1xf32>
    %c0_165 = arith.constant 0 : index
    %c0_166 = arith.constant 0 : index
    %652 = vector.load %arg13[%c0_165, %c0_166] : memref<8x1xf32, #tpu.memory_space<vmem>>, vector<8x1xf32>
    tpu.vector_store %arg13[%c0_165, %c0_166], %651 {strides = array<i32>} : memref<8x1xf32, #tpu.memory_space<vmem>>, vector<8x1xf32>,
    return
  }
}

</mosaic_0001>

<llo_original>
// kernel: lstm_classifier_forward.1
$region0: #{lstm_classifier_forward.1}
  #allocation0 [shape = 'u32[]', space=smem, size = 0x4, offset = 0x4, fixed_abs, tag = 'smem constant byte address 0x4 - core index']
  #allocation1 [shape = 'u32[144,128]{1,0:T(1,128)}', space=vmem, size = 0x12000, scoped, tag = 'internal scratch']
  #allocation2 [shape = 'f32[128,256]{1,0:T(8,128)}', space=vmem, size = 0x20000, scoped, tag = 'scratch operand']
  #allocation3 [shape = 'f32[1,1]{1,0:T(1,128)S(1)}', space=vmem, size = 0x200, scoped, tag = 'scoped memory for lstm_classifier_forward.1']
  %s0 = inlined_call_operand.vmem [shape: f32[128,32], index: 0, kind: input, shape index: {}]
  %s1 = inlined_call_operand.vmem [shape: f32[32,256], index: 1, kind: input, shape index: {}]
  %s2 = inlined_call_operand.vmem [shape: f32[32,128], index: 2, kind: input, shape index: {}]
  %s3 = inlined_call_operand.vmem [shape: f32[32,128], index: 3, kind: input, shape index: {}]
  %s4 = inlined_call_operand.vmem [shape: f32[1,256], index: 4, kind: input, shape index: {}]
  %s5 = inlined_call_operand.vmem [shape: f32[64,256], index: 5, kind: input, shape index: {}]
  %s6 = inlined_call_operand.vmem [shape: f32[32,128], index: 6, kind: input, shape index: {}]
  %s7 = inlined_call_operand.vmem [shape: f32[32,128], index: 7, kind: input, shape index: {}]
  %s8 = inlined_call_operand.vmem [shape: f32[1,256], index: 8, kind: input, shape index: {}]
  %s9 = inlined_call_operand.vmem [shape: f32[64,32], index: 9, kind: input, shape index: {}]
  %s10 = inlined_call_operand.vmem [shape: f32[1,32], index: 10, kind: input, shape index: {}]
  %s11 = inlined_call_operand.vmem [shape: f32[1,32], index: 11, kind: input, shape index: {}]
  %s12 = inlined_call_operand.<no memory space> [shape: f32[1,1], index: 12, kind: input, shape index: {}]
  %s13 = inlined_call_operand.vmem [shape: f32[8,1], index: 13, kind: output, shape index: {}]
  %s14 = sld [smem:[#allocation0]]
  $region62: #{lstm_classifier_forward.1} parent=0
    _
  %s16 = ssub.s32 1, %s14
  %s17 = scalar_select 0, %s16, %s14
  %v18 = vstv %s12
  %19 = vst [vmem:[#allocation3] sm:$0x1] %v18
  // Predicated region
  $region2: #{lstm_classifier_forward.1} parent=0 // pred_check
    _
  $region3: #{lstm_classifier_forward.1} parent=0 // pred_check_branch
    %21 = sbr.rel (0) target = $region5
  $region4: #{lstm_classifier_forward.1} parent=0 // pred_region
    _
  $region5: #{lstm_classifier_forward.1} parent=0 // pred_fallthru
    _
  // Predicated region
  $region6: #{lstm_classifier_forward.1} parent=0 // pred_check
    _
  $region7: #{lstm_classifier_forward.1} parent=0 // pred_check_branch
    %23 = sbr.rel (0) target = $region9
  $region8: #{lstm_classifier_forward.1} parent=0 // pred_region
    _
  $region9: #{lstm_classifier_forward.1} parent=0 // pred_fallthru
    _
  // Predicated region
  $region10: #{lstm_classifier_forward.1} parent=0 // pred_check
    _
  $region11: #{lstm_classifier_forward.1} parent=0 // pred_check_branch
    %25 = sbr.rel (0) target = $region13
  $region12: #{lstm_classifier_forward.1} parent=0 // pred_region
    _
  $region13: #{lstm_classifier_forward.1} parent=0 // pred_fallthru
    _
  // Predicated region
  $region14: #{lstm_classifier_forward.1} parent=0 // pred_check
    _
  $region15: #{lstm_classifier_forward.1} parent=0 // pred_check_branch
    %27 = sbr.rel (0) target = $region17
  $region16: #{lstm_classifier_forward.1} parent=0 // pred_region
    _
  $region17: #{lstm_classifier_forward.1} parent=0 // pred_fallthru
    _
  // Predicated region
  $region18: #{lstm_classifier_forward.1} parent=0 // pred_check
    _
  $region19: #{lstm_classifier_forward.1} parent=0 // pred_check_branch
    %29 = sbr.rel (0) target = $region21
  $region20: #{lstm_classifier_forward.1} parent=0 // pred_region
    _
  $region21: #{lstm_classifier_forward.1} parent=0 // pred_fallthru
    _
  // Predicated region
  $region22: #{lstm_classifier_forward.1} parent=0 // pred_check
    _
  $region23: #{lstm_classifier_forward.1} parent=0 // pred_check_branch
    %31 = sbr.rel (0) target = $region25
  $region24: #{lstm_classifier_forward.1} parent=0 // pred_region
    _
  $region25: #{lstm_classifier_forward.1} parent=0 // pred_fallthru
    _
  // Predicated region
  $region26: #{lstm_classifier_forward.1} parent=0 // pred_check
    _
  $region27: #{lstm_classifier_forward.1} parent=0 // pred_check_branch
    %33 = sbr.rel (0) target = $region29
  $region28: #{lstm_classifier_forward.1} parent=0 // pred_region
    _
  $region29: #{lstm_classifier_forward.1} parent=0 // pred_fallthru
    _
  // Predicated region
  $region30: #{lstm_classifier_forward.1} parent=0 // pred_check
    _
  $region31: #{lstm_classifier_forward.1} parent=0 // pred_check_branch
    %35 = sbr.rel (0) target = $region33
  $region32: #{lstm_classifier_forward.1} parent=0 // pred_region
    _
  $region33: #{lstm_classifier_forward.1} parent=0 // pred_fallthru
    _
  // Predicated region
  $region34: #{lstm_classifier_forward.1} parent=0 // pred_check
    _
  $region35: #{lstm_classifier_forward.1} parent=0 // pred_check_branch
    %37 = sbr.rel (0) target = $region37
  $region36: #{lstm_classifier_forward.1} parent=0 // pred_region
    _
  $region37: #{lstm_classifier_forward.1} parent=0 // pred_fallthru
    _
  // Predicated region
  $region38: #{lstm_classifier_forward.1} parent=0 // pred_check
    _
  $region39: #{lstm_classifier_forward.1} parent=0 // pred_check_branch
    %39 = sbr.rel (0) target = $region41
  $region40: #{lstm_classifier_forward.1} parent=0 // pred_region
    _
  $region41: #{lstm_classifier_forward.1} parent=0 // pred_fallthru
    _
  // Predicated region
  $region42: #{lstm_classifier_forward.1} parent=0 // pred_check
    _
  $region43: #{lstm_classifier_forward.1} parent=0 // pred_check_branch
    %41 = sbr.rel (0) target = $region45
  $region44: #{lstm_classifier_forward.1} parent=0 // pred_region
    _
  $region45: #{lstm_classifier_forward.1} parent=0 // pred_fallthru
    _
  // Predicated region
  $region46: #{lstm_classifier_forward.1} parent=0 // pred_check
    _
  $region47: #{lstm_classifier_forward.1} parent=0 // pred_check_branch
    %43 = sbr.rel (0) target = $region49
  $region48: #{lstm_classifier_forward.1} parent=0 // pred_region
    _
  $region49: #{lstm_classifier_forward.1} parent=0 // pred_fallthru
    _
  // Predicated region
  $region50: #{lstm_classifier_forward.1} parent=0 // pred_check
    _
  $region51: #{lstm_classifier_forward.1} parent=0 // pred_check_branch
    %45 = sbr.rel (0) target = $region53
  $region52: #{lstm_classifier_forward.1} parent=0 // pred_region
    _
  $region53: #{lstm_classifier_forward.1} parent=0 // pred_fallthru
    _
  %v46 = vld [vmem:[%s0] sm:$0xff]
  %v47 = vld [vmem:[%s0 + $0x8] sm:$0xff]
  %v48 = vld [vmem:[%s0 + $0x10] sm:$0xff]
  %v49 = vld [vmem:[%s0 + $0x18] sm:$0xff]
  %v50 = vld [vmem:[%s0 + $0x20] sm:$0xff]
  %v51 = vld [vmem:[%s0 + $0x28] sm:$0xff]
  %v52 = vld [vmem:[%s0 + $0x30] sm:$0xff]
  %v53 = vld [vmem:[%s0 + $0x38] sm:$0xff]
  %v54 = vld [vmem:[%s0 + $0x40] sm:$0xff]
  %v55 = vld [vmem:[%s0 + $0x48] sm:$0xff]
  %v56 = vld [vmem:[%s0 + $0x50] sm:$0xff]
  %v57 = vld [vmem:[%s0 + $0x58] sm:$0xff]
  %v58 = vld [vmem:[%s0 + $0x60] sm:$0xff]
  %v59 = vld [vmem:[%s0 + $0x68] sm:$0xff]
  %v60 = vld [vmem:[%s0 + $0x70] sm:$0xff]
  %v61 = vld [vmem:[%s0 + $0x78] sm:$0xff]
  %v62 = vld [vmem:[%s1] sm:$0xff]
  %v63 = vld [vmem:[%s1 + $0x8] sm:$0xff]
  %v64 = vld [vmem:[%s1 + $0x10] sm:$0xff]
  %v65 = vld [vmem:[%s1 + $0x18] sm:$0xff]
  %v66 = vld [vmem:[%s1 + $0x20] sm:$0xff]
  %v67 = vld [vmem:[%s1 + $0x28] sm:$0xff]
  %v68 = vld [vmem:[%s1 + $0x30] sm:$0xff]
  %v69 = vld [vmem:[%s1 + $0x38] sm:$0xff]
  %v70 = vld [vmem:[%s4] sm:$0x3]
  %v72 = vlaneseq
  %v73 = vshrl.u32 %v72, 7
  %v74 = vsub.s32 0, %v73
  %v75 = vrot.slane %v70, %v74
  %v76 = vlaneseq
  %v77 = vshrl.u32 %v76, 7
  %v78 = vsub.s32 1, %v77
  %v79 = vrot.slane %v70, %v78
  %vm82 = vcmask 261120
  %v84 = vsel %vm82, %v46, 0
  %v87 = vsel %vm82, %v47, 0
  %v90 = vsel %vm82, %v48, 0
  %v93 = vsel %vm82, %v49, 0
  %v96 = vsel %vm82, %v50, 0
  %v99 = vsel %vm82, %v51, 0
  %v102 = vsel %vm82, %v52, 0
  %v105 = vsel %vm82, %v53, 0
  %v108 = vsel %vm82, %v54, 0
  %v111 = vsel %vm82, %v55, 0
  %v114 = vsel %vm82, %v56, 0
  %v117 = vsel %vm82, %v57, 0
  %v120 = vsel %vm82, %v58, 0
  %v123 = vsel %vm82, %v59, 0
  %v126 = vsel %vm82, %v60, 0
  %v129 = vsel %vm82, %v61, 0
  %131 = vmatprep.subr.mxu0 %v63
  %132 = vmatpush1.msra.mxu0 %v62
  %133 = vmatprep.subr.mxu0 %v65
  %134 = vmatpush1.msra.mxu0 %v64
  %135 = vmatprep.subr.mxu0 %v67
  %136 = vmatpush1.msra.mxu0 %v66
  %137 = vmatprep.subr.mxu0 %v69
  %138 = vmatpush1.msra.mxu0 %v68
  %139 = vmatprep.subr.mxu0 0.0
  %140 = vmatpush1.msra.mxu0 0.0
  %141 = vmatprep.subr.mxu0 0.0
  %142 = vmatpush1.msra.mxu0 0.0
  %143 = vmatprep.subr.mxu0 0.0
  %144 = vmatpush1.msra.mxu0 0.0
  %145 = vmatprep.subr.mxu0 0.0
  %146 = vmatpush1.msra.mxu0 0.0
  %147 = vmatprep.subr.mxu0 0.0
  %148 = vmatpush1.msra.mxu0 0.0
  %149 = vmatprep.subr.mxu0 0.0
  %150 = vmatpush1.msra.mxu0 0.0
  %151 = vmatprep.subr.mxu0 0.0
  %152 = vmatpush1.msra.mxu0 0.0
  %153 = vmatprep.subr.mxu0 0.0
  %154 = vmatpush1.msra.mxu0 0.0
  %155 = vmatprep.subr.mxu0 0.0
  %156 = vmatpush1.msra.mxu0 0.0
  %157 = vmatprep.subr.mxu0 0.0
  %158 = vmatpush1.msra.mxu0 0.0
  %159 = vmatprep.subr.mxu0 0.0
  %160 = vmatpush1.msra.mxu0 0.0
  %161 = vmatprep.subr.mxu0 0.0
  %162 = vmatpush1.msra.mxu0 0.0
  %163 = vmatprep.subr.mxu0 0.0
  %164 = vmatpush1.msra.mxu0 0.0
  %165 = vmatprep.subr.mxu0 0.0
  %166 = vmatpush1.msra.mxu0 0.0
  %167 = vmatprep.subr.mxu0 0.0
  %168 = vmatpush1.msra.mxu0 0.0
  %169 = vmatprep.subr.mxu0 0.0
  %170 = vmatpush1.msra.mxu0 0.0
  %171 = vmatprep.subr.mxu0 0.0
  %172 = vmatpush1.msra.mxu0 0.0
  %173 = vmatprep.subr.mxu0 0.0
  %174 = vmatpush1.msra.mxu0 0.0
  %175 = vmatprep.subr.mxu0 0.0
  %176 = vmatpush1.msra.mxu0 0.0
  %177 = vmatprep.subr.mxu0 0.0
  %178 = vmatpush1.msra.mxu0 0.0
  %179 = vmatprep.subr.mxu0 0.0
  %180 = vmatpush1.msra.mxu0 0.0
  %181 = vmatprep.subr.mxu0 0.0
  %182 = vmatpush1.msra.mxu0 0.0
  %183 = vmatprep.subr.mxu0 0.0
  %184 = vmatpush1.msra.mxu0 0.0
  %185 = vmatprep.subr.mxu0 0.0
  %186 = vmatpush1.msra.mxu0 0.0
  %187 = vmatprep.subr.mxu0 0.0
  %188 = vmatpush1.msra.mxu0 0.0
  %189 = vmatprep.subr.mxu0 0.0
  %190 = vmatpush1.msra.mxu0 0.0
  %191 = vmatprep.subr.mxu0 0.0
  %192 = vmatpush1.msra.mxu0 0.0
  %193 = vmatprep.subr.mxu0 0.0
  %194 = vmatpush1.msra.mxu0 0.0
  %195 = vmatprep.mubr.f32.mxu0 0.0
  %196 = vmatmul.mubr.f32.gmra.mrb[0].mxu0 %v84
  %v197 = vpop.f32.mrb[0].mxu0
  %v198 = vadd.f32 %v75, %v197
  %v199 = vpop.f32.mrb[0].mxu0
  %v200 = vadd.f32 %v79, %v199
  %201 = vmatprep.mubr.f32.mxu0 0.0
  %202 = vmatmul.mubr.f32.gmra.mrb[0].mxu0 %v87
  %v203 = vpop.f32.mrb[0].mxu0
  %v204 = vadd.f32 %v75, %v203
  %v205 = vpop.f32.mrb[0].mxu0
  %v206 = vadd.f32 %v79, %v205
  %207 = vmatprep.mubr.f32.mxu0 0.0
  %208 = vmatmul.mubr.f32.gmra.mrb[0].mxu0 %v90
  %v209 = vpop.f32.mrb[0].mxu0
  %v210 = vadd.f32 %v75, %v209
  %v211 = vpop.f32.mrb[0].mxu0
  %v212 = vadd.f32 %v79, %v211
  %213 = vmatprep.mubr.f32.mxu0 0.0
  %214 = vmatmul.mubr.f32.gmra.mrb[0].mxu0 %v93
  %v215 = vpop.f32.mrb[0].mxu0
  %v216 = vadd.f32 %v75, %v215
  %v217 = vpop.f32.mrb[0].mxu0
  %v218 = vadd.f32 %v79, %v217
  %219 = vmatprep.mubr.f32.mxu0 0.0
  %220 = vmatmul.mubr.f32.gmra.mrb[0].mxu0 %v96
  %v221 = vpop.f32.mrb[0].mxu0
  %v222 = vadd.f32 %v75, %v221
  %v223 = vpop.f32.mrb[0].mxu0
  %v224 = vadd.f32 %v79, %v223
  %225 = vmatprep.mubr.f32.mxu0 0.0
  %226 = vmatmul.mubr.f32.gmra.mrb[0].mxu0 %v99
  %v227 = vpop.f32.mrb[0].mxu0
  %v228 = vadd.f32 %v75, %v227
  %v229 = vpop.f32.mrb[0].mxu0
  %v230 = vadd.f32 %v79, %v229
  %231 = vmatprep.mubr.f32.mxu0 0.0
  %232 = vmatmul.mubr.f32.gmra.mrb[0].mxu0 %v102
  %v233 = vpop.f32.mrb[0].mxu0
  %v234 = vadd.f32 %v75, %v233
  %v235 = vpop.f32.mrb[0].mxu0
  %v236 = vadd.f32 %v79, %v235
  %237 = vmatprep.mubr.f32.mxu0 0.0
  %238 = vmatmul.mubr.f32.gmra.mrb[0].mxu0 %v105
  %v239 = vpop.f32.mrb[0].mxu0
  %v240 = vadd.f32 %v75, %v239
  %v241 = vpop.f32.mrb[0].mxu0
  %v242 = vadd.f32 %v79, %v241
  %243 = vmatprep.mubr.f32.mxu0 0.0
  %244 = vmatmul.mubr.f32.gmra.mrb[0].mxu0 %v108
  %v245 = vpop.f32.mrb[0].mxu0
  %v246 = vadd.f32 %v75, %v245
  %v247 = vpop.f32.mrb[0].mxu0
  %v248 = vadd.f32 %v79, %v247
  %249 = vmatprep.mubr.f32.mxu0 0.0
  %250 = vmatmul.mubr.f32.gmra.mrb[0].mxu0 %v111
  %v251 = vpop.f32.mrb[0].mxu0
  %v252 = vadd.f32 %v75, %v251
  %v253 = vpop.f32.mrb[0].mxu0
  %v254 = vadd.f32 %v79, %v253
  %255 = vmatprep.mubr.f32.mxu0 0.0
  %256 = vmatmul.mubr.f32.gmra.mrb[0].mxu0 %v114
  %v257 = vpop.f32.mrb[0].mxu0
  %v258 = vadd.f32 %v75, %v257
  %v259 = vpop.f32.mrb[0].mxu0
  %v260 = vadd.f32 %v79, %v259
  %261 = vmatprep.mubr.f32.mxu0 0.0
  %262 = vmatmul.mubr.f32.gmra.mrb[0].mxu0 %v117
  %v263 = vpop.f32.mrb[0].mxu0
  %v264 = vadd.f32 %v75, %v263
  %v265 = vpop.f32.mrb[0].mxu0
  %v266 = vadd.f32 %v79, %v265
  %267 = vmatprep.mubr.f32.mxu0 0.0
  %268 = vmatmul.mubr.f32.gmra.mrb[0].mxu0 %v120
  %v269 = vpop.f32.mrb[0].mxu0
  %v270 = vadd.f32 %v75, %v269
  %v271 = vpop.f32.mrb[0].mxu0
  %v272 = vadd.f32 %v79, %v271
  %273 = vmatprep.mubr.f32.mxu0 0.0
  %274 = vmatmul.mubr.f32.gmra.mrb[0].mxu0 %v123
  %v275 = vpop.f32.mrb[0].mxu0
  %v276 = vadd.f32 %v75, %v275
  %v277 = vpop.f32.mrb[0].mxu0
  %v278 = vadd.f32 %v79, %v277
  %279 = vmatprep.mubr.f32.mxu0 0.0
  %280 = vmatmul.mubr.f32.gmra.mrb[0].mxu0 %v126
  %v281 = vpop.f32.mrb[0].mxu0
  %v282 = vadd.f32 %v75, %v281
  %v283 = vpop.f32.mrb[0].mxu0
  %v284 = vadd.f32 %v79, %v283
  %285 = vmatprep.mubr.f32.mxu0 0.0
  %286 = vmatmul.mubr.f32.gmra.mrb[0].mxu0 %v129
  %v287 = vpop.f32.mrb[0].mxu0
  %v288 = vadd.f32 %v75, %v287
  %v289 = vpop.f32.mrb[0].mxu0
  %v290 = vadd.f32 %v79, %v289
  %291 = vdwg.mxu0
  %292 = vst [vmem:[#allocation2] sm:$0xff] %v198
  %293 = vst [vmem:[#allocation2 + $0x8] sm:$0xff] %v200
  %294 = vst [vmem:[#allocation2 + $0x10] sm:$0xff] %v204
  %295 = vst [vmem:[#allocation2 + $0x18] sm:$0xff] %v206
  %296 = vst [vmem:[#allocation2 + $0x20] sm:$0xff] %v210
  %297 = vst [vmem:[#allocation2 + $0x28] sm:$0xff] %v212
  %298 = vst [vmem:[#allocation2 + $0x30] sm:$0xff] %v216
  %299 = vst [vmem:[#allocation2 + $0x38] sm:$0xff] %v218
  %300 = vst [vmem:[#allocation2 + $0x40] sm:$0xff] %v222
  %301 = vst [vmem:[#allocation2 + $0x48] sm:$0xff] %v224
  %302 = vst [vmem:[#allocation2 + $0x50] sm:$0xff] %v228
  %303 = vst [vmem:[#allocation2 + $0x58] sm:$0xff] %v230
  %304 = vst [vmem:[#allocation2 + $0x60] sm:$0xff] %v234
  %305 = vst [vmem:[#allocation2 + $0x68] sm:$0xff] %v236
  %306 = vst [vmem:[#allocation2 + $0x70] sm:$0xff] %v240
  %307 = vst [vmem:[#allocation2 + $0x78] sm:$0xff] %v242
  %308 = vst [vmem:[#allocation2 + $0x80] sm:$0xff] %v246
  %309 = vst [vmem:[#allocation2 + $0x88] sm:$0xff] %v248
  %310 = vst [vmem:[#allocation2 + $0x90] sm:$0xff] %v252
  %311 = vst [vmem:[#allocation2 + $0x98] sm:$0xff] %v254
  %312 = vst [vmem:[#allocation2 + $0xa0] sm:$0xff] %v258
  %313 = vst [vmem:[#allocation2 + $0xa8] sm:$0xff] %v260
  %314 = vst [vmem:[#allocation2 + $0xb0] sm:$0xff] %v264
  %315 = vst [vmem:[#allocation2 + $0xb8] sm:$0xff] %v266
  %316 = vst [vmem:[#allocation2 + $0xc0] sm:$0xff] %v270
  %317 = vst [vmem:[#allocation2 + $0xc8] sm:$0xff] %v272
  %318 = vst [vmem:[#allocation2 + $0xd0] sm:$0xff] %v276
  %319 = vst [vmem:[#allocation2 + $0xd8] sm:$0xff] %v278
  %320 = vst [vmem:[#allocation2 + $0xe0] sm:$0xff] %v282
  %321 = vst [vmem:[#allocation2 + $0xe8] sm:$0xff] %v284
  %322 = vst [vmem:[#allocation2 + $0xf0] sm:$0xff] %v288
  %323 = vst [vmem:[#allocation2 + $0xf8] sm:$0xff] %v290
  %v324 = vld [vmem:[%s2] sm:$0xff]
  %v325 = vld [vmem:[%s2 + $0x8] sm:$0xff]
  %v326 = vld [vmem:[%s2 + $0x10] sm:$0xff]
  %v327 = vld [vmem:[%s2 + $0x18] sm:$0xff]
  %v328 = vld [vmem:[%s3] sm:$0xff]
  %v329 = vld [vmem:[%s3 + $0x8] sm:$0xff]
  %v330 = vld [vmem:[%s3 + $0x10] sm:$0xff]
  %v331 = vld [vmem:[%s3 + $0x18] sm:$0xff]
  %v332 = vld [vmem:[#allocation2] sm:$0xff]
  %v333 = vld [vmem:[#allocation2 + $0x10] sm:$0xff]
  %v335 = vsel %vm82, 0.0, 0
  %337 = vmatprep.subr.mxu0 0.0
  %338 = vmatpush1.msra.mxu0 %v324
  %339 = vmatprep.subr.mxu0 0.0
  %340 = vmatpush1.msra.mxu0 %v325
  %341 = vmatprep.subr.mxu0 0.0
  %342 = vmatpush1.msra.mxu0 %v326
  %343 = vmatprep.subr.mxu0 0.0
  %344 = vmatpush1.msra.mxu0 %v327
  %345 = vmatprep.subr.mxu0 0.0
  %346 = vmatpush1.msra.mxu0 0.0
  %347 = vmatprep.subr.mxu0 0.0
  %348 = vmatpush1.msra.mxu0 0.0
  %349 = vmatprep.subr.mxu0 0.0
  %350 = vmatpush1.msra.mxu0 0.0
  %351 = vmatprep.subr.mxu0 0.0
  %352 = vmatpush1.msra.mxu0 0.0
  %353 = vmatprep.subr.mxu0 0.0
  %354 = vmatpush1.msra.mxu0 0.0
  %355 = vmatprep.subr.mxu0 0.0
  %356 = vmatpush1.msra.mxu0 0.0
  %357 = vmatprep.subr.mxu0 0.0
  %358 = vmatpush1.msra.mxu0 0.0
  %359 = vmatprep.subr.mxu0 0.0
  %360 = vmatpush1.msra.mxu0 0.0
  %361 = vmatprep.subr.mxu0 0.0
  %362 = vmatpush1.msra.mxu0 0.0
  %363 = vmatprep.subr.mxu0 0.0
  %364 = vmatpush1.msra.mxu0 0.0
  %365 = vmatprep.subr.mxu0 0.0
  %366 = vmatpush1.msra.mxu0 0.0
  %367 = vmatprep.subr.mxu0 0.0
  %368 = vmatpush1.msra.mxu0 0.0
  %369 = vmatprep.subr.mxu0 0.0
  %370 = vmatpush1.msra.mxu0 0.0
  %371 = vmatprep.subr.mxu0 0.0
  %372 = vmatpush1.msra.mxu0 0.0
  %373 = vmatprep.subr.mxu0 0.0
  %374 = vmatpush1.msra.mxu0 0.0
  %375 = vmatprep.subr.mxu0 0.0
  %376 = vmatpush1.msra.mxu0 0.0
  %377 = vmatprep.subr.mxu0 0.0
  %378 = vmatpush1.msra.mxu0 0.0
  %379 = vmatprep.subr.mxu0 0.0
  %380 = vmatpush1.msra.mxu0 0.0
  %381 = vmatprep.subr.mxu0 0.0
  %382 = vmatpush1.msra.mxu0 0.0
  %383 = vmatprep.subr.mxu0 0.0
  %384 = vmatpush1.msra.mxu0 0.0
  %385 = vmatprep.subr.mxu0 0.0
  %386 = vmatpush1.msra.mxu0 0.0
  %387 = vmatprep.subr.mxu0 0.0
  %388 = vmatpush1.msra.mxu0 0.0
  %389 = vmatprep.subr.mxu0 0.0
  %390 = vmatpush1.msra.mxu0 0.0
  %391 = vmatprep.subr.mxu0 0.0
  %392 = vmatpush1.msra.mxu0 0.0
  %393 = vmatprep.subr.mxu0 0.0
  %394 = vmatpush1.msra.mxu0 0.0
  %395 = vmatprep.subr.mxu0 0.0
  %396 = vmatpush1.msra.mxu0 0.0
  %397 = vmatprep.subr.mxu0 0.0
  %398 = vmatpush1.msra.mxu0 0.0
  %399 = vmatprep.subr.mxu0 0.0
  %400 = vmatpush1.msra.mxu0 0.0
  %401 = vmatprep.mubr.f32.mxu0 0.0
  %402 = vmatmul.mubr.f32.gmra.mrb[0].mxu0 %v335
  %v403 = vpop.f32.mrb[0].mxu0
  %v404 = vadd.f32 0.0, %v403
  %v405 = vpop.f32.mrb[0].mxu0
  %406 = vmatprep.mubr.f32.mxu0 0.0
  %407 = vmatmul.mubr.f32.gmra.mrb[0].mxu0 %v335
  %v408 = vpop.f32.mrb[0].mxu0
  %v409 = vadd.f32 0.0, %v408
  %v410 = vpop.f32.mrb[0].mxu0
  %411 = vdwg.mxu0
  %v412 = vadd.f32 %v332, %v404
  %v413 = vadd.f32 %v333, %v409
  %v414 = vld [vmem:[#allocation2 + $0xe8] sm:$0xff]
  %v415 = vld [vmem:[#allocation2 + $0xf8] sm:$0xff]
  %416 = vmatprep.subr.mxu0 0.0
  %417 = vmatpush1.msra.mxu0 %v328
  %418 = vmatprep.subr.mxu0 0.0
  %419 = vmatpush1.msra.mxu0 %v329
  %420 = vmatprep.subr.mxu0 0.0
  %421 = vmatpush1.msra.mxu0 %v330
  %422 = vmatprep.subr.mxu0 0.0
  %423 = vmatpush1.msra.mxu0 %v331
  %424 = vmatprep.subr.mxu0 0.0
  %425 = vmatpush1.msra.mxu0 0.0
  %426 = vmatprep.subr.mxu0 0.0
  %427 = vmatpush1.msra.mxu0 0.0
  %428 = vmatprep.subr.mxu0 0.0
  %429 = vmatpush1.msra.mxu0 0.0
  %430 = vmatprep.subr.mxu0 0.0
  %431 = vmatpush1.msra.mxu0 0.0
  %432 = vmatprep.subr.mxu0 0.0
  %433 = vmatpush1.msra.mxu0 0.0
  %434 = vmatprep.subr.mxu0 0.0
  %435 = vmatpush1.msra.mxu0 0.0
  %436 = vmatprep.subr.mxu0 0.0
  %437 = vmatpush1.msra.mxu0 0.0
  %438 = vmatprep.subr.mxu0 0.0
  %439 = vmatpush1.msra.mxu0 0.0
  %440 = vmatprep.subr.mxu0 0.0
  %441 = vmatpush1.msra.mxu0 0.0
  %442 = vmatprep.subr.mxu0 0.0
  %443 = vmatpush1.msra.mxu0 0.0
  %444 = vmatprep.subr.mxu0 0.0
  %445 = vmatpush1.msra.mxu0 0.0
  %446 = vmatprep.subr.mxu0 0.0
  %447 = vmatpush1.msra.mxu0 0.0
  %448 = vmatprep.subr.mxu0 0.0
  %449 = vmatpush1.msra.mxu0 0.0
  %450 = vmatprep.subr.mxu0 0.0
  %451 = vmatpush1.msra.mxu0 0.0
  %452 = vmatprep.subr.mxu0 0.0
  %453 = vmatpush1.msra.mxu0 0.0
  %454 = vmatprep.subr.mxu0 0.0
  %455 = vmatpush1.msra.mxu0 0.0
  %456 = vmatprep.subr.mxu0 0.0
  %457 = vmatpush1.msra.mxu0 0.0
  %458 = vmatprep.subr.mxu0 0.0
  %459 = vmatpush1.msra.mxu0 0.0
  %460 = vmatprep.subr.mxu0 0.0
  %461 = vmatpush1.msra.mxu0 0.0
  %462 = vmatprep.subr.mxu0 0.0
  %463 = vmatpush1.msra.mxu0 0.0
  %464 = vmatprep.subr.mxu0 0.0
  %465 = vmatpush1.msra.mxu0 0.0
  %466 = vmatprep.subr.mxu0 0.0
  %467 = vmatpush1.msra.mxu0 0.0
  %468 = vmatprep.subr.mxu0 0.0
  %469 = vmatpush1.msra.mxu0 0.0
  %470 = vmatprep.subr.mxu0 0.0
  %471 = vmatpush1.msra.mxu0 0.0
  %472 = vmatprep.subr.mxu0 0.0
  %473 = vmatpush1.msra.mxu0 0.0
  %474 = vmatprep.subr.mxu0 0.0
  %475 = vmatpush1.msra.mxu0 0.0
  %476 = vmatprep.subr.mxu0 0.0
  %477 = vmatpush1.msra.mxu0 0.0
  %478 = vmatprep.subr.mxu0 0.0
  %479 = vmatpush1.msra.mxu0 0.0
  %480 = vmatprep.mubr.f32.mxu0 0.0
  %481 = vmatmul.mubr.f32.gmra.mrb[0].mxu0 %v335
  %v482 = vpop.f32.mrb[0].mxu0
  %v483 = vadd.f32 0.0, %v482
  %v484 = vpop.f32.mrb[0].mxu0
  %485 = vmatprep.mubr.f32.mxu0 0.0
  %486 = vmatmul.mubr.f32.gmra.mrb[0].mxu0 %v335
  %v487 = vpop.f32.mrb[0].mxu0
  %v488 = vadd.f32 0.0, %v487
  %v489 = vpop.f32.mrb[0].mxu0
  %490 = vdwg.mxu0
  %v491 = vadd.f32 %v414, %v483
  %v492 = vadd.f32 %v415, %v488
  %v493 = vxor.u32 %v412, 2147483648
  %v494 = vxor.u32 %v413, 2147483648
  %v495 = vmul.f32 %v493, 1.442695
  %v496 = vpow.pop %v495
  %v497 = vmul.f32 %v494, 1.442695
  %v498 = vpow.pop %v497
  %v499 = vadd.f32 %v496, 1.0
  %v500 = vadd.f32 %v498, 1.0
  %v501 = vrcp.pop %v499
  %v502 = vmul.f32 1.0, %v501
  %v503 = vrcp.pop %v500
  %v504 = vmul.f32 1.0, %v503
  %v505 = vtanh.pop %v412
  %v506 = vtanh.pop %v413
  %v507 = vmul.f32 %v502, 0.0
  %v508 = vmul.f32 %v504, 0.0
  %511 = vrot.lane.b32.xlu0 %v505, 64
  %v512 = vpop.permute.xlu0 %511
  %513 = vrot.lane.b32.xlu0 %v506, 64
  %v514 = vpop.permute.xlu0 %513
  %v517 = vmul.f32 %v502, %v512
  %v518 = vmul.f32 %v504, %v514
  %521 = vrot.lane.b32.xlu0 %v517, 32
  %v522 = vpop.permute.xlu0 %521
  %523 = vrot.lane.b32.xlu0 %v518, 32
  %v524 = vpop.permute.xlu0 %523
  %v527 = vadd.f32 %v507, %v522
  %v528 = vadd.f32 %v508, %v524
  %v529 = vtanh.pop %v527
  %v530 = vtanh.pop %v528
  %533 = vrot.lane.b32.xlu0 %v529, 64
  %v534 = vpop.permute.xlu0 %533
  %535 = vrot.lane.b32.xlu0 %v530, 64
  %v536 = vpop.permute.xlu0 %535
  %v539 = vmul.f32 %v502, %v534
  %v540 = vmul.f32 %v504, %v536
  %v541 = vxor.u32 %v491, 2147483648
  %v542 = vxor.u32 %v492, 2147483648
  %v543 = vmul.f32 %v541, 1.442695
  %v544 = vpow.pop %v543
  %v545 = vmul.f32 %v542, 1.442695
  %v546 = vpow.pop %v545
  %v547 = vadd.f32 %v544, 1.0
  %v548 = vadd.f32 %v546, 1.0
  %v549 = vrcp.pop %v547
  %v550 = vmul.f32 1.0, %v549
  %v551 = vrcp.pop %v548
  %v552 = vmul.f32 1.0, %v551
  %v553 = vtanh.pop %v491
  %v554 = vtanh.pop %v492
  %v555 = vmul.f32 %v550, 0.0
  %v556 = vmul.f32 %v552, 0.0
  %559 = vrot.lane.b32.xlu0 %v553, 64
  %v560 = vpop.permute.xlu0 %559
  %561 = vrot.lane.b32.xlu0 %v554, 64
  %v562 = vpop.permute.xlu0 %561
  %v565 = vmul.f32 %v550, %v560
  %v566 = vmul.f32 %v552, %v562
  %569 = vrot.lane.b32.xlu0 %v565, 32
  %v570 = vpop.permute.xlu0 %569
  %571 = vrot.lane.b32.xlu0 %v566, 32
  %v572 = vpop.permute.xlu0 %571
  %v575 = vadd.f32 %v555, %v570
  %v576 = vadd.f32 %v556, %v572
  %v577 = vtanh.pop %v575
  %v578 = vtanh.pop %v576
  %581 = vrot.lane.b32.xlu0 %v577, 64
  %v582 = vpop.permute.xlu0 %581
  %583 = vrot.lane.b32.xlu0 %v578, 64
  %v584 = vpop.permute.xlu0 %583
  %v587 = vmul.f32 %v550, %v582
  %v588 = vmul.f32 %v552, %v584
  %v589 = vld [vmem:[#allocation2 + $0x20] sm:$0xff]
  %v590 = vld [vmem:[#allocation2 + $0x30] sm:$0xff]
  %593 = vrot.lane.b32.xlu0 %v539, 32
  %v594 = vpop.permute.xlu0 %593
  %595 = vrot.lane.b32.xlu0 %v540, 32
  %v596 = vpop.permute.xlu0 %595
  %v597 = vsel %vm82, %v594, 0
  %v599 = vsel %vm82, %v596, 0
  %601 = vmatprep.subr.mxu0 0.0
  %602 = vmatpush1.msra.mxu0 %v324
  %603 = vmatprep.subr.mxu0 0.0
  %604 = vmatpush1.msra.mxu0 %v325
  %605 = vmatprep.subr.mxu0 0.0
  %606 = vmatpush1.msra.mxu0 %v326
  %607 = vmatprep.subr.mxu0 0.0
  %608 = vmatpush1.msra.mxu0 %v327
  %609 = vmatprep.subr.mxu0 0.0
  %610 = vmatpush1.msra.mxu0 0.0
  %611 = vmatprep.subr.mxu0 0.0
  %612 = vmatpush1.msra.mxu0 0.0
  %613 = vmatprep.subr.mxu0 0.0
  %614 = vmatpush1.msra.mxu0 0.0
  %615 = vmatprep.subr.mxu0 0.0
  %616 = vmatpush1.msra.mxu0 0.0
  %617 = vmatprep.subr.mxu0 0.0
  %618 = vmatpush1.msra.mxu0 0.0
  %619 = vmatprep.subr.mxu0 0.0
  %620 = vmatpush1.msra.mxu0 0.0
  %621 = vmatprep.subr.mxu0 0.0
  %622 = vmatpush1.msra.mxu0 0.0
  %623 = vmatprep.subr.mxu0 0.0
  %624 = vmatpush1.msra.mxu0 0.0
  %625 = vmatprep.subr.mxu0 0.0
  %626 = vmatpush1.msra.mxu0 0.0
  %627 = vmatprep.subr.mxu0 0.0
  %628 = vmatpush1.msra.mxu0 0.0
  %629 = vmatprep.subr.mxu0 0.0
  %630 = vmatpush1.msra.mxu0 0.0
  %631 = vmatprep.subr.mxu0 0.0
  %632 = vmatpush1.msra.mxu0 0.0
  %633 = vmatprep.subr.mxu0 0.0
  %634 = vmatpush1.msra.mxu0 0.0
  %635 = vmatprep.subr.mxu0 0.0
  %636 = vmatpush1.msra.mxu0 0.0
  %637 = vmatprep.subr.mxu0 0.0
  %638 = vmatpush1.msra.mxu0 0.0
  %639 = vmatprep.subr.mxu0 0.0
  %640 = vmatpush1.msra.mxu0 0.0
  %641 = vmatprep.subr.mxu0 0.0
  %642 = vmatpush1.msra.mxu0 0.0
  %643 = vmatprep.subr.mxu0 0.0
  %644 = vmatpush1.msra.mxu0 0.0
  %645 = vmatprep.subr.mxu0 0.0
  %646 = vmatpush1.msra.mxu0 0.0
  %647 = vmatprep.subr.mxu0 0.0
  %648 = vmatpush1.msra.mxu0 0.0
  %649 = vmatprep.subr.mxu0 0.0
  %650 = vmatpush1.msra.mxu0 0.0
  %651 = vmatprep.subr.mxu0 0.0
  %652 = vmatpush1.msra.mxu0 0.0
  %653 = vmatprep.subr.mxu0 0.0
  %654 = vmatpush1.msra.mxu0 0.0
  %655 = vmatprep.subr.mxu0 0.0
  %656 = vmatpush1.msra.mxu0 0.0
  %657 = vmatprep.subr.mxu0 0.0
  %658 = vmatpush1.msra.mxu0 0.0
  %659 = vmatprep.subr.mxu0 0.0
  %660 = vmatpush1.msra.mxu0 0.0
  %661 = vmatprep.subr.mxu0 0.0
  %662 = vmatpush1.msra.mxu0 0.0
  %663 = vmatprep.subr.mxu0 0.0
  %664 = vmatpush1.msra.mxu0 0.0
  %665 = vmatprep.mubr.f32.mxu0 0.0
  %666 = vmatmul.mubr.f32.gmra.mrb[0].mxu0 %v597
  %v667 = vpop.f32.mrb[0].mxu0
  %v668 = vadd.f32 0.0, %v667
  %v669 = vpop.f32.mrb[0].mxu0
  %670 = vmatprep.mubr.f32.mxu0 0.0
  %671 = vmatmul.mubr.f32.gmra.mrb[0].mxu0 %v599
  %v672 = vpop.f32.mrb[0].mxu0
  %v673 = vadd.f32 0.0, %v672
  %v674 = vpop.f32.mrb[0].mxu0
  %675 = vdwg.mxu0
  %v676 = vadd.f32 %v589, %v668
  %v677 = vadd.f32 %v590, %v673
  %v678 = vld [vmem:[#allocation2 + $0xc8] sm:$0xff]
  %v679 = vld [vmem:[#allocation2 + $0xd8] sm:$0xff]
  %682 = vrot.lane.b32.xlu0 %v587, 32
  %v683 = vpop.permute.xlu0 %682
  %684 = vrot.lane.b32.xlu0 %v588, 32
  %v685 = vpop.permute.xlu0 %684
  %v686 = vsel %vm82, %v683, 0
  %v688 = vsel %vm82, %v685, 0
  %690 = vmatprep.subr.mxu0 0.0
  %691 = vmatpush1.msra.mxu0 %v328
  %692 = vmatprep.subr.mxu0 0.0
  %693 = vmatpush1.msra.mxu0 %v329
  %694 = vmatprep.subr.mxu0 0.0
  %695 = vmatpush1.msra.mxu0 %v330
  %696 = vmatprep.subr.mxu0 0.0
  %697 = vmatpush1.msra.mxu0 %v331
  %698 = vmatprep.subr.mxu0 0.0
  %699 = vmatpush1.msra.mxu0 0.0
  %700 = vmatprep.subr.mxu0 0.0
  %701 = vmatpush1.msra.mxu0 0.0
  %702 = vmatprep.subr.mxu0 0.0
  %703 = vmatpush1.msra.mxu0 0.0
  %704 = vmatprep.subr.mxu0 0.0
  %705 = vmatpush1.msra.mxu0 0.0
  %706 = vmatprep.subr.mxu0 0.0
  %707 = vmatpush1.msra.mxu0 0.0
  %708 = vmatprep.subr.mxu0 0.0
  %709 = vmatpush1.msra.mxu0 0.0
  %710 = vmatprep.subr.mxu0 0.0
  %711 = vmatpush1.msra.mxu0 0.0
  %712 = vmatprep.subr.mxu0 0.0
  %713 = vmatpush1.msra.mxu0 0.0
  %714 = vmatprep.subr.mxu0 0.0
  %715 = vmatpush1.msra.mxu0 0.0
  %716 = vmatprep.subr.mxu0 0.0
  %717 = vmatpush1.msra.mxu0 0.0
  %718 = vmatprep.subr.mxu0 0.0
  %719 = vmatpush1.msra.mxu0 0.0
  %720 = vmatprep.subr.mxu0 0.0
  %721 = vmatpush1.msra.mxu0 0.0
  %722 = vmatprep.subr.mxu0 0.0
  %723 = vmatpush1.msra.mxu0 0.0
  %724 = vmatprep.subr.mxu0 0.0
  %725 = vmatpush1.msra.mxu0 0.0
  %726 = vmatprep.subr.mxu0 0.0
  %727 = vmatpush1.msra.mxu0 0.0
  %728 = vmatprep.subr.mxu0 0.0
  %729 = vmatpush1.msra.mxu0 0.0
  %730 = vmatprep.subr.mxu0 0.0
  %731 = vmatpush1.msra.mxu0 0.0
  %732 = vmatprep.subr.mxu0 0.0
  %733 = vmatpush1.msra.mxu0 0.0
  %734 = vmatprep.subr.mxu0 0.0
  %735 = vmatpush1.msra.mxu0 0.0
  %736 = vmatprep.subr.mxu0 0.0
  %737 = vmatpush1.msra.mxu0 0.0
  %738 = vmatprep.subr.mxu0 0.0
  %739 = vmatpush1.msra.mxu0 0.0
  %740 = vmatprep.subr.mxu0 0.0
  %741 = vmatpush1.msra.mxu0 0.0
  %742 = vmatprep.subr.mxu0 0.0
  %743 = vmatpush1.msra.mxu0 0.0
  %744 = vmatprep.subr.mxu0 0.0
  %745 = vmatpush1.msra.mxu0 0.0
  %746 = vmatprep.subr.mxu0 0.0
  %747 = vmatpush1.msra.mxu0 0.0
  %748 = vmatprep.subr.mxu0 0.0
  %749 = vmatpush1.msra.mxu0 0.0
  %750 = vmatprep.subr.mxu0 0.0
  %751 = vmatpush1.msra.mxu0 0.0
  %752 = vmatprep.subr.mxu0 0.0
  %753 = vmatpush1.msra.mxu0 0.0
  %754 = vmatprep.mubr.f32.mxu0 0.0
  %755 = vmatmul.mubr.f32.gmra.mrb[0].mxu0 %v686
  %v756 = vpop.f32.mrb[0].mxu0
  %v757 = vadd.f32 0.0, %v756
  %v758 = vpop.f32.mrb[0].mxu0
  %759 = vmatprep.mubr.f32.mxu0 0.0
  %760 = vmatmul.mubr.f32.gmra.mrb[0].mxu0 %v688
  %v761 = vpop.f32.mrb[0].mxu0
  %v762 = vadd.f32 0.0, %v761
  %v763 = vpop.f32.mrb[0].mxu0
  %764 = vdwg.mxu0
  %v765 = vadd.f32 %v678, %v757
  %v766 = vadd.f32 %v679, %v762
  %v767 = vxor.u32 %v676, 2147483648
  %v768 = vxor.u32 %v677, 2147483648
  %v769 = vmul.f32 %v767, 1.442695
  %v770 = vpow.pop %v769
  %v771 = vmul.f32 %v768, 1.442695
  %v772 = vpow.pop %v771
  %v773 = vadd.f32 %v770, 1.0
  %v774 = vadd.f32 %v772, 1.0
  %v775 = vrcp.pop %v773
  %v776 = vmul.f32 1.0, %v775
  %v777 = vrcp.pop %v774
  %v778 = vmul.f32 1.0, %v777
  %v779 = vtanh.pop %v676
  %v780 = vtanh.pop %v677
  %v781 = vmul.f32 %v776, %v527
  %v782 = vmul.f32 %v778, %v528
  %785 = vrot.lane.b32.xlu0 %v779, 64
  %v786 = vpop.permute.xlu0 %785
  %787 = vrot.lane.b32.xlu0 %v780, 64
  %v788 = vpop.permute.xlu0 %787
  %v791 = vmul.f32 %v776, %v786
  %v792 = vmul.f32 %v778, %v788
  %795 = vrot.lane.b32.xlu0 %v791, 32
  %v796 = vpop.permute.xlu0 %795
  %797 = vrot.lane.b32.xlu0 %v792, 32
  %v798 = vpop.permute.xlu0 %797
  %v801 = vadd.f32 %v781, %v796
  %v802 = vadd.f32 %v782, %v798
  %v803 = vtanh.pop %v801
  %v804 = vtanh.pop %v802
  %807 = vrot.lane.b32.xlu0 %v803, 64
  %v808 = vpop.permute.xlu0 %807
  %809 = vrot.lane.b32.xlu0 %v804, 64
  %v810 = vpop.permute.xlu0 %809
  %v813 = vmul.f32 %v776, %v808
  %v814 = vmul.f32 %v778, %v810
  %v815 = vxor.u32 %v765, 2147483648
  %v816 = vxor.u32 %v766, 2147483648
  %v817 = vmul.f32 %v815, 1.442695
  %v818 = vpow.pop %v817
  %v819 = vmul.f32 %v816, 1.442695
  %v820 = vpow.pop %v819
  %v821 = vadd.f32 %v818, 1.0
  %v822 = vadd.f32 %v820, 1.0
  %v823 = vrcp.pop %v821
  %v824 = vmul.f32 1.0, %v823
  %v825 = vrcp.pop %v822
  %v826 = vmul.f32 1.0, %v825
  %v827 = vtanh.pop %v765
  %v828 = vtanh.pop %v766
  %v829 = vmul.f32 %v824, %v575
  %v830 = vmul.f32 %v826, %v576
  %833 = vrot.lane.b32.xlu0 %v827, 64
  %v834 = vpop.permute.xlu0 %833
  %835 = vrot.lane.b32.xlu0 %v828, 64
  %v836 = vpop.permute.xlu0 %835
  %v839 = vmul.f32 %v824, %v834
  %v840 = vmul.f32 %v826, %v836
  %843 = vrot.lane.b32.xlu0 %v839, 32
  %v844 = vpop.permute.xlu0 %843
  %845 = vrot.lane.b32.xlu0 %v840, 32
  %v846 = vpop.permute.xlu0 %845
  %v849 = vadd.f32 %v829, %v844
  %v850 = vadd.f32 %v830, %v846
  %v851 = vtanh.pop %v849
  %v852 = vtanh.pop %v850
  %855 = vrot.lane.b32.xlu0 %v851, 64
  %v856 = vpop.permute.xlu0 %855
  %857 = vrot.lane.b32.xlu0 %v852, 64
  %v858 = vpop.permute.xlu0 %857
  %v861 = vmul.f32 %v824, %v856
  %v862 = vmul.f32 %v826, %v858
  %v863 = vld [vmem:[#allocation2 + $0x40] sm:$0xff]
  %v864 = vld [vmem:[#allocation2 + $0x50] sm:$0xff]
  %867 = vrot.lane.b32.xlu0 %v813, 32
  %v868 = vpop.permute.xlu0 %867
  %869 = vrot.lane.b32.xlu0 %v814, 32
  %v870 = vpop.permute.xlu0 %869
  %v871 = vsel %vm82, %v868, 0
  %v873 = vsel %vm82, %v870, 0
  %875 = vmatprep.subr.mxu0 0.0
  %876 = vmatpush1.msra.mxu0 %v324
  %877 = vmatprep.subr.mxu0 0.0
  %878 = vmatpush1.msra.mxu0 %v325
  %879 = vmatprep.subr.mxu0 0.0
  %880 = vmatpush1.msra.mxu0 %v326
  %881 = vmatprep.subr.mxu0 0.0
  %882 = vmatpush1.msra.mxu0 %v327
  %883 = vmatprep.subr.mxu0 0.0
  %884 = vmatpush1.msra.mxu0 0.0
  %885 = vmatprep.subr.mxu0 0.0
  %886 = vmatpush1.msra.mxu0 0.0
  %887 = vmatprep.subr.mxu0 0.0
  %888 = vmatpush1.msra.mxu0 0.0
  %889 = vmatprep.subr.mxu0 0.0
  %890 = vmatpush1.msra.mxu0 0.0
  %891 = vmatprep.subr.mxu0 0.0
  %892 = vmatpush1.msra.mxu0 0.0
  %893 = vmatprep.subr.mxu0 0.0
  %894 = vmatpush1.msra.mxu0 0.0
  %895 = vmatprep.subr.mxu0 0.0
  %896 = vmatpush1.msra.mxu0 0.0
  %897 = vmatprep.subr.mxu0 0.0
  %898 = vmatpush1.msra.mxu0 0.0
  %899 = vmatprep.subr.mxu0 0.0
  %900 = vmatpush1.msra.mxu0 0.0
  %901 = vmatprep.subr.mxu0 0.0
  %902 = vmatpush1.msra.mxu0 0.0
  %903 = vmatprep.subr.mxu0 0.0
  %904 = vmatpush1.msra.mxu0 0.0
  %905 = vmatprep.subr.mxu0 0.0
  %906 = vmatpush1.msra.mxu0 0.0
  %907 = vmatprep.subr.mxu0 0.0
  %908 = vmatpush1.msra.mxu0 0.0
  %909 = vmatprep.subr.mxu0 0.0
  %910 = vmatpush1.msra.mxu0 0.0
  %911 = vmatprep.subr.mxu0 0.0
  %912 = vmatpush1.msra.mxu0 0.0
  %913 = vmatprep.subr.mxu0 0.0
  %914 = vmatpush1.msra.mxu0 0.0
  %915 = vmatprep.subr.mxu0 0.0
  %916 = vmatpush1.msra.mxu0 0.0
  %917 = vmatprep.subr.mxu0 0.0
  %918 = vmatpush1.msra.mxu0 0.0
  %919 = vmatprep.subr.mxu0 0.0
  %920 = vmatpush1.msra.mxu0 0.0
  %921 = vmatprep.subr.mxu0 0.0
  %922 = vmatpush1.msra.mxu0 0.0
  %923 = vmatprep.subr.mxu0 0.0
  %924 = vmatpush1.msra.mxu0 0.0
  %925 = vmatprep.subr.mxu0 0.0
  %926 = vmatpush1.msra.mxu0 0.0
  %927 = vmatprep.subr.mxu0 0.0
  %928 = vmatpush1.msra.mxu0 0.0
  %929 = vmatprep.subr.mxu0 0.0
  %930 = vmatpush1.msra.mxu0 0.0
  %931 = vmatprep.subr.mxu0 0.0
  %932 = vmatpush1.msra.mxu0 0.0
  %933 = vmatprep.subr.mxu0 0.0
  %934 = vmatpush1.msra.mxu0 0.0
  %935 = vmatprep.subr.mxu0 0.0
  %936 = vmatpush1.msra.mxu0 0.0
  %937 = vmatprep.subr.mxu0 0.0
  %938 = vmatpush1.msra.mxu0 0.0
  %939 = vmatprep.mubr.f32.mxu0 0.0
  %940 = vmatmul.mubr.f32.gmra.mrb[0].mxu0 %v871
  %v941 = vpop.f32.mrb[0].mxu0
  %v942 = vadd.f32 0.0, %v941
  %v943 = vpop.f32.mrb[0].mxu0
  %944 = vmatprep.mubr.f32.mxu0 0.0
  %945 = vmatmul.mubr.f32.gmra.mrb[0].mxu0 %v873
  %v946 = vpop.f32.mrb[0].mxu0
  %v947 = vadd.f32 0.0, %v946
  %v948 = vpop.f32.mrb[0].mxu0
  %949 = vdwg.mxu0
  %v950 = vadd.f32 %v863, %v942
  %v951 = vadd.f32 %v864, %v947
  %v952 = vld [vmem:[#allocation2 + $0xa8] sm:$0xff]
  %v953 = vld [vmem:[#allocation2 + $0xb8] sm:$0xff]
  %956 = vrot.lane.b32.xlu0 %v861, 32
  %v957 = vpop.permute.xlu0 %956
  %958 = vrot.lane.b32.xlu0 %v862, 32
  %v959 = vpop.permute.xlu0 %958
  %v960 = vsel %vm82, %v957, 0
  %v962 = vsel %vm82, %v959, 0
  %964 = vmatprep.subr.mxu0 0.0
  %965 = vmatpush1.msra.mxu0 %v328
  %966 = vmatprep.subr.mxu0 0.0
  %967 = vmatpush1.msra.mxu0 %v329
  %968 = vmatprep.subr.mxu0 0.0
  %969 = vmatpush1.msra.mxu0 %v330
  %970 = vmatprep.subr.mxu0 0.0
  %971 = vmatpush1.msra.mxu0 %v331
  %972 = vmatprep.subr.mxu0 0.0
  %973 = vmatpush1.msra.mxu0 0.0
  %974 = vmatprep.subr.mxu0 0.0
  %975 = vmatpush1.msra.mxu0 0.0
  %976 = vmatprep.subr.mxu0 0.0
  %977 = vmatpush1.msra.mxu0 0.0
  %978 = vmatprep.subr.mxu0 0.0
  %979 = vmatpush1.msra.mxu0 0.0
  %980 = vmatprep.subr.mxu0 0.0
  %981 = vmatpush1.msra.mxu0 0.0
  %982 = vmatprep.subr.mxu0 0.0
  %983 = vmatpush1.msra.mxu0 0.0
  %984 = vmatprep.subr.mxu0 0.0
  %985 = vmatpush1.msra.mxu0 0.0
  %986 = vmatprep.subr.mxu0 0.0
  %987 = vmatpush1.msra.mxu0 0.0
  %988 = vmatprep.subr.mxu0 0.0
  %989 = vmatpush1.msra.mxu0 0.0
  %990 = vmatprep.subr.mxu0 0.0
  %991 = vmatpush1.msra.mxu0 0.0
  %992 = vmatprep.subr.mxu0 0.0
  %993 = vmatpush1.msra.mxu0 0.0
  %994 = vmatprep.subr.mxu0 0.0
  %995 = vmatpush1.msra.mxu0 0.0
  %996 = vmatprep.subr.mxu0 0.0
  %997 = vmatpush1.msra.mxu0 0.0
  %998 = vmatprep.subr.mxu0 0.0
  %999 = vmatpush1.msra.mxu0 0.0
  %1000 = vmatprep.subr.mxu0 0.0
  %1001 = vmatpush1.msra.mxu0 0.0
  %1002 = vmatprep.subr.mxu0 0.0
  %1003 = vmatpush1.msra.mxu0 0.0
  %1004 = vmatprep.subr.mxu0 0.0
  %1005 = vmatpush1.msra.mxu0 0.0
  %1006 = vmatprep.subr.mxu0 0.0
  %1007 = vmatpush1.msra.mxu0 0.0
  %1008 = vmatprep.subr.mxu0 0.0
  %1009 = vmatpush1.msra.mxu0 0.0
  %1010 = vmatprep.subr.mxu0 0.0
  %1011 = vmatpush1.msra.mxu0 0.0
  %1012 = vmatprep.subr.mxu0 0.0
  %1013 = vmatpush1.msra.mxu0 0.0
  %1014 = vmatprep.subr.mxu0 0.0
  %1015 = vmatpush1.msra.mxu0 0.0
  %1016 = vmatprep.subr.mxu0 0.0
  %1017 = vmatpush1.msra.mxu0 0.0
  %1018 = vmatprep.subr.mxu0 0.0
  %1019 = vmatpush1.msra.mxu0 0.0
  %1020 = vmatprep.subr.mxu0 0.0
  %1021 = vmatpush1.msra.mxu0 0.0
  %1022 = vmatprep.subr.mxu0 0.0
  %1023 = vmatpush1.msra.mxu0 0.0
  %1024 = vmatprep.subr.mxu0 0.0
  %1025 = vmatpush1.msra.mxu0 0.0
  %1026 = vmatprep.subr.mxu0 0.0
  %1027 = vmatpush1.msra.mxu0 0.0
  %1028 = vmatprep.mubr.f32.mxu0 0.0
  %1029 = vmatmul.mubr.f32.gmra.mrb[0].mxu0 %v960
  %v1030 = vpop.f32.mrb[0].mxu0
  %v1031 = vadd.f32 0.0, %v1030
  %v1032 = vpop.f32.mrb[0].mxu0
  %1033 = vmatprep.mubr.f32.mxu0 0.0
  %1034 = vmatmul.mubr.f32.gmra.mrb[0].mxu0 %v962
  %v1035 = vpop.f32.mrb[0].mxu0
  %v1036 = vadd.f32 0.0, %v1035
  %v1037 = vpop.f32.mrb[0].mxu0
  %1038 = vdwg.mxu0
  %v1039 = vadd.f32 %v952, %v1031
  %v1040 = vadd.f32 %v953, %v1036
  %v1041 = vxor.u32 %v950, 2147483648
  %v1042 = vxor.u32 %v951, 2147483648
  %v1043 = vmul.f32 %v1041, 1.442695
  %v1044 = vpow.pop %v1043
  %v1045 = vmul.f32 %v1042, 1.442695
  %v1046 = vpow.pop %v1045
  %v1047 = vadd.f32 %v1044, 1.0
  %v1048 = vadd.f32 %v1046, 1.0
  %v1049 = vrcp.pop %v1047
  %v1050 = vmul.f32 1.0, %v1049
  %v1051 = vrcp.pop %v1048
  %v1052 = vmul.f32 1.0, %v1051
  %v1053 = vtanh.pop %v950
  %v1054 = vtanh.pop %v951
  %v1055 = vmul.f32 %v1050, %v801
  %v1056 = vmul.f32 %v1052, %v802
  %1059 = vrot.lane.b32.xlu0 %v1053, 64
  %v1060 = vpop.permute.xlu0 %1059
  %1061 = vrot.lane.b32.xlu0 %v1054, 64
  %v1062 = vpop.permute.xlu0 %1061
  %v1065 = vmul.f32 %v1050, %v1060
  %v1066 = vmul.f32 %v1052, %v1062
  %1069 = vrot.lane.b32.xlu0 %v1065, 32
  %v1070 = vpop.permute.xlu0 %1069
  %1071 = vrot.lane.b32.xlu0 %v1066, 32
  %v1072 = vpop.permute.xlu0 %1071
  %v1075 = vadd.f32 %v1055, %v1070
  %v1076 = vadd.f32 %v1056, %v1072
  %v1077 = vtanh.pop %v1075
  %v1078 = vtanh.pop %v1076
  %1081 = vrot.lane.b32.xlu0 %v1077, 64
  %v1082 = vpop.permute.xlu0 %1081
  %1083 = vrot.lane.b32.xlu0 %v1078, 64
  %v1084 = vpop.permute.xlu0 %1083
  %v1087 = vmul.f32 %v1050, %v1082
  %v1088 = vmul.f32 %v1052, %v1084
  %v1089 = vxor.u32 %v1039, 2147483648
  %v1090 = vxor.u32 %v1040, 2147483648
  %v1091 = vmul.f32 %v1089, 1.442695
  %v1092 = vpow.pop %v1091
  %v1093 = vmul.f32 %v1090, 1.442695
  %v1094 = vpow.pop %v1093
  %v1095 = vadd.f32 %v1092, 1.0
  %v1096 = vadd.f32 %v1094, 1.0
  %v1097 = vrcp.pop %v1095
  %v1098 = vmul.f32 1.0, %v1097
  %v1099 = vrcp.pop %v1096
  %v1100 = vmul.f32 1.0, %v1099
  %v1101 = vtanh.pop %v1039
  %v1102 = vtanh.pop %v1040
  %v1103 = vmul.f32 %v1098, %v849
  %v1104 = vmul.f32 %v1100, %v850
  %1107 = vrot.lane.b32.xlu0 %v1101, 64
  %v1108 = vpop.permute.xlu0 %1107
  %1109 = vrot.lane.b32.xlu0 %v1102, 64
  %v1110 = vpop.permute.xlu0 %1109
  %v1113 = vmul.f32 %v1098, %v1108
  %v1114 = vmul.f32 %v1100, %v1110
  %1117 = vrot.lane.b32.xlu0 %v1113, 32
  %v1118 = vpop.permute.xlu0 %1117
  %1119 = vrot.lane.b32.xlu0 %v1114, 32
  %v1120 = vpop.permute.xlu0 %1119
  %v1123 = vadd.f32 %v1103, %v1118
  %v1124 = vadd.f32 %v1104, %v1120
  %v1125 = vtanh.pop %v1123
  %v1126 = vtanh.pop %v1124
  %1129 = vrot.lane.b32.xlu0 %v1125, 64
  %v1130 = vpop.permute.xlu0 %1129
  %1131 = vrot.lane.b32.xlu0 %v1126, 64
  %v1132 = vpop.permute.xlu0 %1131
  %v1135 = vmul.f32 %v1098, %v1130
  %v1136 = vmul.f32 %v1100, %v1132
  %v1137 = vld [vmem:[#allocation2 + $0x60] sm:$0xff]
  %v1138 = vld [vmem:[#allocation2 + $0x70] sm:$0xff]
  %1141 = vrot.lane.b32.xlu0 %v1087, 32
  %v1142 = vpop.permute.xlu0 %1141
  %1143 = vrot.lane.b32.xlu0 %v1088, 32
  %v1144 = vpop.permute.xlu0 %1143
  %v1145 = vsel %vm82, %v1142, 0
  %v1147 = vsel %vm82, %v1144, 0
  %1149 = vmatprep.subr.mxu0 0.0
  %1150 = vmatpush1.msra.mxu0 %v324
  %1151 = vmatprep.subr.mxu0 0.0
  %1152 = vmatpush1.msra.mxu0 %v325
  %1153 = vmatprep.subr.mxu0 0.0
  %1154 = vmatpush1.msra.mxu0 %v326
  %1155 = vmatprep.subr.mxu0 0.0
  %1156 = vmatpush1.msra.mxu0 %v327
  %1157 = vmatprep.subr.mxu0 0.0
  %1158 = vmatpush1.msra.mxu0 0.0
  %1159 = vmatprep.subr.mxu0 0.0
  %1160 = vmatpush1.msra.mxu0 0.0
  %1161 = vmatprep.subr.mxu0 0.0
  %1162 = vmatpush1.msra.mxu0 0.0
  %1163 = vmatprep.subr.mxu0 0.0
  %1164 = vmatpush1.msra.mxu0 0.0
  %1165 = vmatprep.subr.mxu0 0.0
  %1166 = vmatpush1.msra.mxu0 0.0
  %1167 = vmatprep.subr.mxu0 0.0
  %1168 = vmatpush1.msra.mxu0 0.0
  %1169 = vmatprep.subr.mxu0 0.0
  %1170 = vmatpush1.msra.mxu0 0.0
  %1171 = vmatprep.subr.mxu0 0.0
  %1172 = vmatpush1.msra.mxu0 0.0
  %1173 = vmatprep.subr.mxu0 0.0
  %1174 = vmatpush1.msra.mxu0 0.0
  %1175 = vmatprep.subr.mxu0 0.0
  %1176 = vmatpush1.msra.mxu0 0.0
  %1177 = vmatprep.subr.mxu0 0.0
  %1178 = vmatpush1.msra.mxu0 0.0
  %1179 = vmatprep.subr.mxu0 0.0
  %1180 = vmatpush1.msra.mxu0 0.0
  %1181 = vmatprep.subr.mxu0 0.0
  %1182 = vmatpush1.msra.mxu0 0.0
  %1183 = vmatprep.subr.mxu0 0.0
  %1184 = vmatpush1.msra.mxu0 0.0
  %1185 = vmatprep.subr.mxu0 0.0
  %1186 = vmatpush1.msra.mxu0 0.0
  %1187 = vmatprep.subr.mxu0 0.0
  %1188 = vmatpush1.msra.mxu0 0.0
  %1189 = vmatprep.subr.mxu0 0.0
  %1190 = vmatpush1.msra.mxu0 0.0
  %1191 = vmatprep.subr.mxu0 0.0
  %1192 = vmatpush1.msra.mxu0 0.0
  %1193 = vmatprep.subr.mxu0 0.0
  %1194 = vmatpush1.msra.mxu0 0.0
  %1195 = vmatprep.subr.mxu0 0.0
  %1196 = vmatpush1.msra.mxu0 0.0
  %1197 = vmatprep.subr.mxu0 0.0
  %1198 = vmatpush1.msra.mxu0 0.0
  %1199 = vmatprep.subr.mxu0 0.0
  %1200 = vmatpush1.msra.mxu0 0.0
  %1201 = vmatprep.subr.mxu0 0.0
  %1202 = vmatpush1.msra.mxu0 0.0
  %1203 = vmatprep.subr.mxu0 0.0
  %1204 = vmatpush1.msra.mxu0 0.0
  %1205 = vmatprep.subr.mxu0 0.0
  %1206 = vmatpush1.msra.mxu0 0.0
  %1207 = vmatprep.subr.mxu0 0.0
  %1208 = vmatpush1.msra.mxu0 0.0
  %1209 = vmatprep.subr.mxu0 0.0
  %1210 = vmatpush1.msra.mxu0 0.0
  %1211 = vmatprep.subr.mxu0 0.0
  %1212 = vmatpush1.msra.mxu0 0.0
  %1213 = vmatprep.mubr.f32.mxu0 0.0
  %1214 = vmatmul.mubr.f32.gmra.mrb[0].mxu0 %v1145
  %v1215 = vpop.f32.mrb[0].mxu0
  %v1216 = vadd.f32 0.0, %v1215
  %v1217 = vpop.f32.mrb[0].mxu0
  %1218 = vmatprep.mubr.f32.mxu0 0.0
  %1219 = vmatmul.mubr.f32.gmra.mrb[0].mxu0 %v1147
  %v1220 = vpop.f32.mrb[0].mxu0
  %v1221 = vadd.f32 0.0, %v1220
  %v1222 = vpop.f32.mrb[0].mxu0
  %1223 = vdwg.mxu0
  %v1224 = vadd.f32 %v1137, %v1216
  %v1225 = vadd.f32 %v1138, %v1221
  %v1226 = vld [vmem:[#allocation2 + $0x88] sm:$0xff]
  %v1227 = vld [vmem:[#allocation2 + $0x98] sm:$0xff]
  %1230 = vrot.lane.b32.xlu0 %v1135, 32
  %v1231 = vpop.permute.xlu0 %1230
  %1232 = vrot.lane.b32.xlu0 %v1136, 32
  %v1233 = vpop.permute.xlu0 %1232
  %v1234 = vsel %vm82, %v1231, 0
  %v1236 = vsel %vm82, %v1233, 0
  %1238 = vmatprep.subr.mxu0 0.0
  %1239 = vmatpush1.msra.mxu0 %v328
  %1240 = vmatprep.subr.mxu0 0.0
  %1241 = vmatpush1.msra.mxu0 %v329
  %1242 = vmatprep.subr.mxu0 0.0
  %1243 = vmatpush1.msra.mxu0 %v330
  %1244 = vmatprep.subr.mxu0 0.0
  %1245 = vmatpush1.msra.mxu0 %v331
  %1246 = vmatprep.subr.mxu0 0.0
  %1247 = vmatpush1.msra.mxu0 0.0
  %1248 = vmatprep.subr.mxu0 0.0
  %1249 = vmatpush1.msra.mxu0 0.0
  %1250 = vmatprep.subr.mxu0 0.0
  %1251 = vmatpush1.msra.mxu0 0.0
  %1252 = vmatprep.subr.mxu0 0.0
  %1253 = vmatpush1.msra.mxu0 0.0
  %1254 = vmatprep.subr.mxu0 0.0
  %1255 = vmatpush1.msra.mxu0 0.0
  %1256 = vmatprep.subr.mxu0 0.0
  %1257 = vmatpush1.msra.mxu0 0.0
  %1258 = vmatprep.subr.mxu0 0.0
  %1259 = vmatpush1.msra.mxu0 0.0
  %1260 = vmatprep.subr.mxu0 0.0
  %1261 = vmatpush1.msra.mxu0 0.0
  %1262 = vmatprep.subr.mxu0 0.0
  %1263 = vmatpush1.msra.mxu0 0.0
  %1264 = vmatprep.subr.mxu0 0.0
  %1265 = vmatpush1.msra.mxu0 0.0
  %1266 = vmatprep.subr.mxu0 0.0
  %1267 = vmatpush1.msra.mxu0 0.0
  %1268 = vmatprep.subr.mxu0 0.0
  %1269 = vmatpush1.msra.mxu0 0.0
  %1270 = vmatprep.subr.mxu0 0.0
  %1271 = vmatpush1.msra.mxu0 0.0
  %1272 = vmatprep.subr.mxu0 0.0
  %1273 = vmatpush1.msra.mxu0 0.0
  %1274 = vmatprep.subr.mxu0 0.0
  %1275 = vmatpush1.msra.mxu0 0.0
  %1276 = vmatprep.subr.mxu0 0.0
  %1277 = vmatpush1.msra.mxu0 0.0
  %1278 = vmatprep.subr.mxu0 0.0
  %1279 = vmatpush1.msra.mxu0 0.0
  %1280 = vmatprep.subr.mxu0 0.0
  %1281 = vmatpush1.msra.mxu0 0.0
  %1282 = vmatprep.subr.mxu0 0.0
  %1283 = vmatpush1.msra.mxu0 0.0
  %1284 = vmatprep.subr.mxu0 0.0
  %1285 = vmatpush1.msra.mxu0 0.0
  %1286 = vmatprep.subr.mxu0 0.0
  %1287 = vmatpush1.msra.mxu0 0.0
  %1288 = vmatprep.subr.mxu0 0.0
  %1289 = vmatpush1.msra.mxu0 0.0
  %1290 = vmatprep.subr.mxu0 0.0
  %1291 = vmatpush1.msra.mxu0 0.0
  %1292 = vmatprep.subr.mxu0 0.0
  %1293 = vmatpush1.msra.mxu0 0.0
  %1294 = vmatprep.subr.mxu0 0.0
  %1295 = vmatpush1.msra.mxu0 0.0
  %1296 = vmatprep.subr.mxu0 0.0
  %1297 = vmatpush1.msra.mxu0 0.0
  %1298 = vmatprep.subr.mxu0 0.0
  %1299 = vmatpush1.msra.mxu0 0.0
  %1300 = vmatprep.subr.mxu0 0.0
  %1301 = vmatpush1.msra.mxu0 0.0
  %1302 = vmatprep.mubr.f32.mxu0 0.0
  %1303 = vmatmul.mubr.f32.gmra.mrb[0].mxu0 %v1234
  %v1304 = vpop.f32.mrb[0].mxu0
  %v1305 = vadd.f32 0.0, %v1304
  %v1306 = vpop.f32.mrb[0].mxu0
  %1307 = vmatprep.mubr.f32.mxu0 0.0
  %1308 = vmatmul.mubr.f32.gmra.mrb[0].mxu0 %v1236
  %v1309 = vpop.f32.mrb[0].mxu0
  %v1310 = vadd.f32 0.0, %v1309
  %v1311 = vpop.f32.mrb[0].mxu0
  %1312 = vdwg.mxu0
  %v1313 = vadd.f32 %v1226, %v1305
  %v1314 = vadd.f32 %v1227, %v1310
  %v1315 = vxor.u32 %v1224, 2147483648
  %v1316 = vxor.u32 %v1225, 2147483648
  %v1317 = vmul.f32 %v1315, 1.442695
  %v1318 = vpow.pop %v1317
  %v1319 = vmul.f32 %v1316, 1.442695
  %v1320 = vpow.pop %v1319
  %v1321 = vadd.f32 %v1318, 1.0
  %v1322 = vadd.f32 %v1320, 1.0
  %v1323 = vrcp.pop %v1321
  %v1324 = vmul.f32 1.0, %v1323
  %v1325 = vrcp.pop %v1322
  %v1326 = vmul.f32 1.0, %v1325
  %v1327 = vtanh.pop %v1224
  %v1328 = vtanh.pop %v1225
  %v1329 = vmul.f32 %v1324, %v1075
  %v1330 = vmul.f32 %v1326, %v1076
  %1333 = vrot.lane.b32.xlu0 %v1327, 64
  %v1334 = vpop.permute.xlu0 %1333
  %1335 = vrot.lane.b32.xlu0 %v1328, 64
  %v1336 = vpop.permute.xlu0 %1335
  %v1339 = vmul.f32 %v1324, %v1334
  %v1340 = vmul.f32 %v1326, %v1336
  %1343 = vrot.lane.b32.xlu0 %v1339, 32
  %v1344 = vpop.permute.xlu0 %1343
  %1345 = vrot.lane.b32.xlu0 %v1340, 32
  %v1346 = vpop.permute.xlu0 %1345
  %v1349 = vadd.f32 %v1329, %v1344
  %v1350 = vadd.f32 %v1330, %v1346
  %v1351 = vtanh.pop %v1349
  %v1352 = vtanh.pop %v1350
  %1355 = vrot.lane.b32.xlu0 %v1351, 64
  %v1356 = vpop.permute.xlu0 %1355
  %1357 = vrot.lane.b32.xlu0 %v1352, 64
  %v1358 = vpop.permute.xlu0 %1357
  %v1361 = vmul.f32 %v1324, %v1356
  %v1362 = vmul.f32 %v1326, %v1358
  %v1363 = vxor.u32 %v1313, 2147483648
  %v1364 = vxor.u32 %v1314, 2147483648
  %v1365 = vmul.f32 %v1363, 1.442695
  %v1366 = vpow.pop %v1365
  %v1367 = vmul.f32 %v1364, 1.442695
  %v1368 = vpow.pop %v1367
  %v1369 = vadd.f32 %v1366, 1.0
  %v1370 = vadd.f32 %v1368, 1.0
  %v1371 = vrcp.pop %v1369
  %v1372 = vmul.f32 1.0, %v1371
  %v1373 = vrcp.pop %v1370
  %v1374 = vmul.f32 1.0, %v1373
  %v1375 = vtanh.pop %v1313
  %v1376 = vtanh.pop %v1314
  %v1377 = vmul.f32 %v1372, %v1123
  %v1378 = vmul.f32 %v1374, %v1124
  %1381 = vrot.lane.b32.xlu0 %v1375, 64
  %v1382 = vpop.permute.xlu0 %1381
  %1383 = vrot.lane.b32.xlu0 %v1376, 64
  %v1384 = vpop.permute.xlu0 %1383
  %v1387 = vmul.f32 %v1372, %v1382
  %v1388 = vmul.f32 %v1374, %v1384
  %1391 = vrot.lane.b32.xlu0 %v1387, 32
  %v1392 = vpop.permute.xlu0 %1391
  %1393 = vrot.lane.b32.xlu0 %v1388, 32
  %v1394 = vpop.permute.xlu0 %1393
  %v1397 = vadd.f32 %v1377, %v1392
  %v1398 = vadd.f32 %v1378, %v1394
  %v1399 = vtanh.pop %v1397
  %v1400 = vtanh.pop %v1398
  %1403 = vrot.lane.b32.xlu0 %v1399, 64
  %v1404 = vpop.permute.xlu0 %1403
  %1405 = vrot.lane.b32.xlu0 %v1400, 64
  %v1406 = vpop.permute.xlu0 %1405
  %v1409 = vmul.f32 %v1372, %v1404
  %v1410 = vmul.f32 %v1374, %v1406
  %v1411 = vld [vmem:[#allocation2 + $0x80] sm:$0xff]
  %v1412 = vld [vmem:[#allocation2 + $0x90] sm:$0xff]
  %1415 = vrot.lane.b32.xlu0 %v1361, 32
  %v1416 = vpop.permute.xlu0 %1415
  %1417 = vrot.lane.b32.xlu0 %v1362, 32
  %v1418 = vpop.permute.xlu0 %1417
  %v1419 = vsel %vm82, %v1416, 0
  %v1421 = vsel %vm82, %v1418, 0
  %1423 = vmatprep.subr.mxu0 0.0
  %1424 = vmatpush1.msra.mxu0 %v324
  %1425 = vmatprep.subr.mxu0 0.0
  %1426 = vmatpush1.msra.mxu0 %v325
  %1427 = vmatprep.subr.mxu0 0.0
  %1428 = vmatpush1.msra.mxu0 %v326
  %1429 = vmatprep.subr.mxu0 0.0
  %1430 = vmatpush1.msra.mxu0 %v327
  %1431 = vmatprep.subr.mxu0 0.0
  %1432 = vmatpush1.msra.mxu0 0.0
  %1433 = vmatprep.subr.mxu0 0.0
  %1434 = vmatpush1.msra.mxu0 0.0
  %1435 = vmatprep.subr.mxu0 0.0
  %1436 = vmatpush1.msra.mxu0 0.0
  %1437 = vmatprep.subr.mxu0 0.0
  %1438 = vmatpush1.msra.mxu0 0.0
  %1439 = vmatprep.subr.mxu0 0.0
  %1440 = vmatpush1.msra.mxu0 0.0
  %1441 = vmatprep.subr.mxu0 0.0
  %1442 = vmatpush1.msra.mxu0 0.0
  %1443 = vmatprep.subr.mxu0 0.0
  %1444 = vmatpush1.msra.mxu0 0.0
  %1445 = vmatprep.subr.mxu0 0.0
  %1446 = vmatpush1.msra.mxu0 0.0
  %1447 = vmatprep.subr.mxu0 0.0
  %1448 = vmatpush1.msra.mxu0 0.0
  %1449 = vmatprep.subr.mxu0 0.0
  %1450 = vmatpush1.msra.mxu0 0.0
  %1451 = vmatprep.subr.mxu0 0.0
  %1452 = vmatpush1.msra.mxu0 0.0
  %1453 = vmatprep.subr.mxu0 0.0
  %1454 = vmatpush1.msra.mxu0 0.0
  %1455 = vmatprep.subr.mxu0 0.0
  %1456 = vmatpush1.msra.mxu0 0.0
  %1457 = vmatprep.subr.mxu0 0.0
  %1458 = vmatpush1.msra.mxu0 0.0
  %1459 = vmatprep.subr.mxu0 0.0
  %1460 = vmatpush1.msra.mxu0 0.0
  %1461 = vmatprep.subr.mxu0 0.0
  %1462 = vmatpush1.msra.mxu0 0.0
  %1463 = vmatprep.subr.mxu0 0.0
  %1464 = vmatpush1.msra.mxu0 0.0
  %1465 = vmatprep.subr.mxu0 0.0
  %1466 = vmatpush1.msra.mxu0 0.0
  %1467 = vmatprep.subr.mxu0 0.0
  %1468 = vmatpush1.msra.mxu0 0.0
  %1469 = vmatprep.subr.mxu0 0.0
  %1470 = vmatpush1.msra.mxu0 0.0
  %1471 = vmatprep.subr.mxu0 0.0
  %1472 = vmatpush1.msra.mxu0 0.0
  %1473 = vmatprep.subr.mxu0 0.0
  %1474 = vmatpush1.msra.mxu0 0.0
  %1475 = vmatprep.subr.mxu0 0.0
  %1476 = vmatpush1.msra.mxu0 0.0
  %1477 = vmatprep.subr.mxu0 0.0
  %1478 = vmatpush1.msra.mxu0 0.0
  %1479 = vmatprep.subr.mxu0 0.0
  %1480 = vmatpush1.msra.mxu0 0.0
  %1481 = vmatprep.subr.mxu0 0.0
  %1482 = vmatpush1.msra.mxu0 0.0
  %1483 = vmatprep.subr.mxu0 0.0
  %1484 = vmatpush1.msra.mxu0 0.0
  %1485 = vmatprep.subr.mxu0 0.0
  %1486 = vmatpush1.msra.mxu0 0.0
  %1487 = vmatprep.mubr.f32.mxu0 0.0
  %1488 = vmatmul.mubr.f32.gmra.mrb[0].mxu0 %v1419
  %v1489 = vpop.f32.mrb[0].mxu0
  %v1490 = vadd.f32 0.0, %v1489
  %v1491 = vpop.f32.mrb[0].mxu0
  %1492 = vmatprep.mubr.f32.mxu0 0.0
  %1493 = vmatmul.mubr.f32.gmra.mrb[0].mxu0 %v1421
  %v1494 = vpop.f32.mrb[0].mxu0
  %v1495 = vadd.f32 0.0, %v1494
  %v1496 = vpop.f32.mrb[0].mxu0
  %1497 = vdwg.mxu0
  %v1498 = vadd.f32 %v1411, %v1490
  %v1499 = vadd.f32 %v1412, %v1495
  %v1500 = vld [vmem:[#allocation2 + $0x68] sm:$0xff]
  %v1501 = vld [vmem:[#allocation2 + $0x78] sm:$0xff]
  %1504 = vrot.lane.b32.xlu0 %v1409, 32
  %v1505 = vpop.permute.xlu0 %1504
  %1506 = vrot.lane.b32.xlu0 %v1410, 32
  %v1507 = vpop.permute.xlu0 %1506
  %v1508 = vsel %vm82, %v1505, 0
  %v1510 = vsel %vm82, %v1507, 0
  %1512 = vmatprep.subr.mxu0 0.0
  %1513 = vmatpush1.msra.mxu0 %v328
  %1514 = vmatprep.subr.mxu0 0.0
  %1515 = vmatpush1.msra.mxu0 %v329
  %1516 = vmatprep.subr.mxu0 0.0
  %1517 = vmatpush1.msra.mxu0 %v330
  %1518 = vmatprep.subr.mxu0 0.0
  %1519 = vmatpush1.msra.mxu0 %v331
  %1520 = vmatprep.subr.mxu0 0.0
  %1521 = vmatpush1.msra.mxu0 0.0
  %1522 = vmatprep.subr.mxu0 0.0
  %1523 = vmatpush1.msra.mxu0 0.0
  %1524 = vmatprep.subr.mxu0 0.0
  %1525 = vmatpush1.msra.mxu0 0.0
  %1526 = vmatprep.subr.mxu0 0.0
  %1527 = vmatpush1.msra.mxu0 0.0
  %1528 = vmatprep.subr.mxu0 0.0
  %1529 = vmatpush1.msra.mxu0 0.0
  %1530 = vmatprep.subr.mxu0 0.0
  %1531 = vmatpush1.msra.mxu0 0.0
  %1532 = vmatprep.subr.mxu0 0.0
  %1533 = vmatpush1.msra.mxu0 0.0
  %1534 = vmatprep.subr.mxu0 0.0
  %1535 = vmatpush1.msra.mxu0 0.0
  %1536 = vmatprep.subr.mxu0 0.0
  %1537 = vmatpush1.msra.mxu0 0.0
  %1538 = vmatprep.subr.mxu0 0.0
  %1539 = vmatpush1.msra.mxu0 0.0
  %1540 = vmatprep.subr.mxu0 0.0
  %1541 = vmatpush1.msra.mxu0 0.0
  %1542 = vmatprep.subr.mxu0 0.0
  %1543 = vmatpush1.msra.mxu0 0.0
  %1544 = vmatprep.subr.mxu0 0.0
  %1545 = vmatpush1.msra.mxu0 0.0
  %1546 = vmatprep.subr.mxu0 0.0
  %1547 = vmatpush1.msra.mxu0 0.0
  %1548 = vmatprep.subr.mxu0 0.0
  %1549 = vmatpush1.msra.mxu0 0.0
  %1550 = vmatprep.subr.mxu0 0.0
  %1551 = vmatpush1.msra.mxu0 0.0
  %1552 = vmatprep.subr.mxu0 0.0
  %1553 = vmatpush1.msra.mxu0 0.0
  %1554 = vmatprep.subr.mxu0 0.0
  %1555 = vmatpush1.msra.mxu0 0.0
  %1556 = vmatprep.subr.mxu0 0.0
  %1557 = vmatpush1.msra.mxu0 0.0
  %1558 = vmatprep.subr.mxu0 0.0
  %1559 = vmatpush1.msra.mxu0 0.0
  %1560 = vmatprep.subr.mxu0 0.0
  %1561 = vmatpush1.msra.mxu0 0.0
  %1562 = vmatprep.subr.mxu0 0.0
  %1563 = vmatpush1.msra.mxu0 0.0
  %1564 = vmatprep.subr.mxu0 0.0
  %1565 = vmatpush1.msra.mxu0 0.0
  %1566 = vmatprep.subr.mxu0 0.0
  %1567 = vmatpush1.msra.mxu0 0.0
  %1568 = vmatprep.subr.mxu0 0.0
  %1569 = vmatpush1.msra.mxu0 0.0
  %1570 = vmatprep.subr.mxu0 0.0
  %1571 = vmatpush1.msra.mxu0 0.0
  %1572 = vmatprep.subr.mxu0 0.0
  %1573 = vmatpush1.msra.mxu0 0.0
  %1574 = vmatprep.subr.mxu0 0.0
  %1575 = vmatpush1.msra.mxu0 0.0
  %1576 = vmatprep.mubr.f32.mxu0 0.0
  %1577 = vmatmul.mubr.f32.gmra.mrb[0].mxu0 %v1508
  %v1578 = vpop.f32.mrb[0].mxu0
  %v1579 = vadd.f32 0.0, %v1578
  %v1580 = vpop.f32.mrb[0].mxu0
  %1581 = vmatprep.mubr.f32.mxu0 0.0
  %1582 = vmatmul.mubr.f32.gmra.mrb[0].mxu0 %v1510
  %v1583 = vpop.f32.mrb[0].mxu0
  %v1584 = vadd.f32 0.0, %v1583
  %v1585 = vpop.f32.mrb[0].mxu0
  %1586 = vdwg.mxu0
  %v1587 = vadd.f32 %v1500, %v1579
  %v1588 = vadd.f32 %v1501, %v1584
  %v1589 = vxor.u32 %v1498, 2147483648
  %v1590 = vxor.u32 %v1499, 2147483648
  %v1591 = vmul.f32 %v1589, 1.442695
  %v1592 = vpow.pop %v1591
  %v1593 = vmul.f32 %v1590, 1.442695
  %v1594 = vpow.pop %v1593
  %v1595 = vadd.f32 %v1592, 1.0
  %v1596 = vadd.f32 %v1594, 1.0
  %v1597 = vrcp.pop %v1595
  %v1598 = vmul.f32 1.0, %v1597
  %v1599 = vrcp.pop %v1596
  %v1600 = vmul.f32 1.0, %v1599
  %v1601 = vtanh.pop %v1498
  %v1602 = vtanh.pop %v1499
  %v1603 = vmul.f32 %v1598, %v1349
  %v1604 = vmul.f32 %v1600, %v1350
  %1607 = vrot.lane.b32.xlu0 %v1601, 64
  %v1608 = vpop.permute.xlu0 %1607
  %1609 = vrot.lane.b32.xlu0 %v1602, 64
  %v1610 = vpop.permute.xlu0 %1609
  %v1613 = vmul.f32 %v1598, %v1608
  %v1614 = vmul.f32 %v1600, %v1610
  %1617 = vrot.lane.b32.xlu0 %v1613, 32
  %v1618 = vpop.permute.xlu0 %1617
  %1619 = vrot.lane.b32.xlu0 %v1614, 32
  %v1620 = vpop.permute.xlu0 %1619
  %v1623 = vadd.f32 %v1603, %v1618
  %v1624 = vadd.f32 %v1604, %v1620
  %v1625 = vtanh.pop %v1623
  %v1626 = vtanh.pop %v1624
  %1629 = vrot.lane.b32.xlu0 %v1625, 64
  %v1630 = vpop.permute.xlu0 %1629
  %1631 = vrot.lane.b32.xlu0 %v1626, 64
  %v1632 = vpop.permute.xlu0 %1631
  %v1635 = vmul.f32 %v1598, %v1630
  %v1636 = vmul.f32 %v1600, %v1632
  %v1637 = vxor.u32 %v1587, 2147483648
  %v1638 = vxor.u32 %v1588, 2147483648
  %v1639 = vmul.f32 %v1637, 1.442695
  %v1640 = vpow.pop %v1639
  %v1641 = vmul.f32 %v1638, 1.442695
  %v1642 = vpow.pop %v1641
  %v1643 = vadd.f32 %v1640, 1.0
  %v1644 = vadd.f32 %v1642, 1.0
  %v1645 = vrcp.pop %v1643
  %v1646 = vmul.f32 1.0, %v1645
  %v1647 = vrcp.pop %v1644
  %v1648 = vmul.f32 1.0, %v1647
  %v1649 = vtanh.pop %v1587
  %v1650 = vtanh.pop %v1588
  %v1651 = vmul.f32 %v1646, %v1397
  %v1652 = vmul.f32 %v1648, %v1398
  %1655 = vrot.lane.b32.xlu0 %v1649, 64
  %v1656 = vpop.permute.xlu0 %1655
  %1657 = vrot.lane.b32.xlu0 %v1650, 64
  %v1658 = vpop.permute.xlu0 %1657
  %v1661 = vmul.f32 %v1646, %v1656
  %v1662 = vmul.f32 %v1648, %v1658
  %1665 = vrot.lane.b32.xlu0 %v1661, 32
  %v1666 = vpop.permute.xlu0 %1665
  %1667 = vrot.lane.b32.xlu0 %v1662, 32
  %v1668 = vpop.permute.xlu0 %1667
  %v1671 = vadd.f32 %v1651, %v1666
  %v1672 = vadd.f32 %v1652, %v1668
  %v1673 = vtanh.pop %v1671
  %v1674 = vtanh.pop %v1672
  %1677 = vrot.lane.b32.xlu0 %v1673, 64
  %v1678 = vpop.permute.xlu0 %1677
  %1679 = vrot.lane.b32.xlu0 %v1674, 64
  %v1680 = vpop.permute.xlu0 %1679
  %v1683 = vmul.f32 %v1646, %v1678
  %v1684 = vmul.f32 %v1648, %v1680
  %v1685 = vld [vmem:[#allocation2 + $0xa0] sm:$0xff]
  %v1686 = vld [vmem:[#allocation2 + $0xb0] sm:$0xff]
  %1689 = vrot.lane.b32.xlu0 %v1635, 32
  %v1690 = vpop.permute.xlu0 %1689
  %1691 = vrot.lane.b32.xlu0 %v1636, 32
  %v1692 = vpop.permute.xlu0 %1691
  %v1693 = vsel %vm82, %v1690, 0
  %v1695 = vsel %vm82, %v1692, 0
  %1697 = vmatprep.subr.mxu0 0.0
  %1698 = vmatpush1.msra.mxu0 %v324
  %1699 = vmatprep.subr.mxu0 0.0
  %1700 = vmatpush1.msra.mxu0 %v325
  %1701 = vmatprep.subr.mxu0 0.0
  %1702 = vmatpush1.msra.mxu0 %v326
  %1703 = vmatprep.subr.mxu0 0.0
  %1704 = vmatpush1.msra.mxu0 %v327
  %1705 = vmatprep.subr.mxu0 0.0
  %1706 = vmatpush1.msra.mxu0 0.0
  %1707 = vmatprep.subr.mxu0 0.0
  %1708 = vmatpush1.msra.mxu0 0.0
  %1709 = vmatprep.subr.mxu0 0.0
  %1710 = vmatpush1.msra.mxu0 0.0
  %1711 = vmatprep.subr.mxu0 0.0
  %1712 = vmatpush1.msra.mxu0 0.0
  %1713 = vmatprep.subr.mxu0 0.0
  %1714 = vmatpush1.msra.mxu0 0.0
  %1715 = vmatprep.subr.mxu0 0.0
  %1716 = vmatpush1.msra.mxu0 0.0
  %1717 = vmatprep.subr.mxu0 0.0
  %1718 = vmatpush1.msra.mxu0 0.0
  %1719 = vmatprep.subr.mxu0 0.0
  %1720 = vmatpush1.msra.mxu0 0.0
  %1721 = vmatprep.subr.mxu0 0.0
  %1722 = vmatpush1.msra.mxu0 0.0
  %1723 = vmatprep.subr.mxu0 0.0
  %1724 = vmatpush1.msra.mxu0 0.0
  %1725 = vmatprep.subr.mxu0 0.0
  %1726 = vmatpush1.msra.mxu0 0.0
  %1727 = vmatprep.subr.mxu0 0.0
  %1728 = vmatpush1.msra.mxu0 0.0
  %1729 = vmatprep.subr.mxu0 0.0
  %1730 = vmatpush1.msra.mxu0 0.0
  %1731 = vmatprep.subr.mxu0 0.0
  %1732 = vmatpush1.msra.mxu0 0.0
  %1733 = vmatprep.subr.mxu0 0.0
  %1734 = vmatpush1.msra.mxu0 0.0
  %1735 = vmatprep.subr.mxu0 0.0
  %1736 = vmatpush1.msra.mxu0 0.0
  %1737 = vmatprep.subr.mxu0 0.0
  %1738 = vmatpush1.msra.mxu0 0.0
  %1739 = vmatprep.subr.mxu0 0.0
  %1740 = vmatpush1.msra.mxu0 0.0
  %1741 = vmatprep.subr.mxu0 0.0
  %1742 = vmatpush1.msra.mxu0 0.0
  %1743 = vmatprep.subr.mxu0 0.0
  %1744 = vmatpush1.msra.mxu0 0.0
  %1745 = vmatprep.subr.mxu0 0.0
  %1746 = vmatpush1.msra.mxu0 0.0
  %1747 = vmatprep.subr.mxu0 0.0
  %1748 = vmatpush1.msra.mxu0 0.0
  %1749 = vmatprep.subr.mxu0 0.0
  %1750 = vmatpush1.msra.mxu0 0.0
  %1751 = vmatprep.subr.mxu0 0.0
  %1752 = vmatpush1.msra.mxu0 0.0
  %1753 = vmatprep.subr.mxu0 0.0
  %1754 = vmatpush1.msra.mxu0 0.0
  %1755 = vmatprep.subr.mxu0 0.0
  %1756 = vmatpush1.msra.mxu0 0.0
  %1757 = vmatprep.subr.mxu0 0.0
  %1758 = vmatpush1.msra.mxu0 0.0
  %1759 = vmatprep.subr.mxu0 0.0
  %1760 = vmatpush1.msra.mxu0 0.0
  %1761 = vmatprep.mubr.f32.mxu0 0.0
  %1762 = vmatmul.mubr.f32.gmra.mrb[0].mxu0 %v1693
  %v1763 = vpop.f32.mrb[0].mxu0
  %v1764 = vadd.f32 0.0, %v1763
  %v1765 = vpop.f32.mrb[0].mxu0
  %1766 = vmatprep.mubr.f32.mxu0 0.0
  %1767 = vmatmul.mubr.f32.gmra.mrb[0].mxu0 %v1695
  %v1768 = vpop.f32.mrb[0].mxu0
  %v1769 = vadd.f32 0.0, %v1768
  %v1770 = vpop.f32.mrb[0].mxu0
  %1771 = vdwg.mxu0
  %v1772 = vadd.f32 %v1685, %v1764
  %v1773 = vadd.f32 %v1686, %v1769
  %v1774 = vld [vmem:[#allocation2 + $0x48] sm:$0xff]
  %v1775 = vld [vmem:[#allocation2 + $0x58] sm:$0xff]
  %1778 = vrot.lane.b32.xlu0 %v1683, 32
  %v1779 = vpop.permute.xlu0 %1778
  %1780 = vrot.lane.b32.xlu0 %v1684, 32
  %v1781 = vpop.permute.xlu0 %1780
  %v1782 = vsel %vm82, %v1779, 0
  %v1784 = vsel %vm82, %v1781, 0
  %1786 = vmatprep.subr.mxu0 0.0
  %1787 = vmatpush1.msra.mxu0 %v328
  %1788 = vmatprep.subr.mxu0 0.0
  %1789 = vmatpush1.msra.mxu0 %v329
  %1790 = vmatprep.subr.mxu0 0.0
  %1791 = vmatpush1.msra.mxu0 %v330
  %1792 = vmatprep.subr.mxu0 0.0
  %1793 = vmatpush1.msra.mxu0 %v331
  %1794 = vmatprep.subr.mxu0 0.0
  %1795 = vmatpush1.msra.mxu0 0.0
  %1796 = vmatprep.subr.mxu0 0.0
  %1797 = vmatpush1.msra.mxu0 0.0
  %1798 = vmatprep.subr.mxu0 0.0
  %1799 = vmatpush1.msra.mxu0 0.0
  %1800 = vmatprep.subr.mxu0 0.0
  %1801 = vmatpush1.msra.mxu0 0.0
  %1802 = vmatprep.subr.mxu0 0.0
  %1803 = vmatpush1.msra.mxu0 0.0
  %1804 = vmatprep.subr.mxu0 0.0
  %1805 = vmatpush1.msra.mxu0 0.0
  %1806 = vmatprep.subr.mxu0 0.0
  %1807 = vmatpush1.msra.mxu0 0.0
  %1808 = vmatprep.subr.mxu0 0.0
  %1809 = vmatpush1.msra.mxu0 0.0
  %1810 = vmatprep.subr.mxu0 0.0
  %1811 = vmatpush1.msra.mxu0 0.0
  %1812 = vmatprep.subr.mxu0 0.0
  %1813 = vmatpush1.msra.mxu0 0.0
  %1814 = vmatprep.subr.mxu0 0.0
  %1815 = vmatpush1.msra.mxu0 0.0
  %1816 = vmatprep.subr.mxu0 0.0
  %1817 = vmatpush1.msra.mxu0 0.0
  %1818 = vmatprep.subr.mxu0 0.0
  %1819 = vmatpush1.msra.mxu0 0.0
  %1820 = vmatprep.subr.mxu0 0.0
  %1821 = vmatpush1.msra.mxu0 0.0
  %1822 = vmatprep.subr.mxu0 0.0
  %1823 = vmatpush1.msra.mxu0 0.0
  %1824 = vmatprep.subr.mxu0 0.0
  %1825 = vmatpush1.msra.mxu0 0.0
  %1826 = vmatprep.subr.mxu0 0.0
  %1827 = vmatpush1.msra.mxu0 0.0
  %1828 = vmatprep.subr.mxu0 0.0
  %1829 = vmatpush1.msra.mxu0 0.0
  %1830 = vmatprep.subr.mxu0 0.0
  %1831 = vmatpush1.msra.mxu0 0.0
  %1832 = vmatprep.subr.mxu0 0.0
  %1833 = vmatpush1.msra.mxu0 0.0
  %1834 = vmatprep.subr.mxu0 0.0
  %1835 = vmatpush1.msra.mxu0 0.0
  %1836 = vmatprep.subr.mxu0 0.0
  %1837 = vmatpush1.msra.mxu0 0.0
  %1838 = vmatprep.subr.mxu0 0.0
  %1839 = vmatpush1.msra.mxu0 0.0
  %1840 = vmatprep.subr.mxu0 0.0
  %1841 = vmatpush1.msra.mxu0 0.0
  %1842 = vmatprep.subr.mxu0 0.0
  %1843 = vmatpush1.msra.mxu0 0.0
  %1844 = vmatprep.subr.mxu0 0.0
  %1845 = vmatpush1.msra.mxu0 0.0
  %1846 = vmatprep.subr.mxu0 0.0
  %1847 = vmatpush1.msra.mxu0 0.0
  %1848 = vmatprep.subr.mxu0 0.0
  %1849 = vmatpush1.msra.mxu0 0.0
  %1850 = vmatprep.mubr.f32.mxu0 0.0
  %1851 = vmatmul.mubr.f32.gmra.mrb[0].mxu0 %v1782
  %v1852 = vpop.f32.mrb[0].mxu0
  %v1853 = vadd.f32 0.0, %v1852
  %v1854 = vpop.f32.mrb[0].mxu0
  %1855 = vmatprep.mubr.f32.mxu0 0.0
  %1856 = vmatmul.mubr.f32.gmra.mrb[0].mxu0 %v1784
  %v1857 = vpop.f32.mrb[0].mxu0
  %v1858 = vadd.f32 0.0, %v1857
  %v1859 = vpop.f32.mrb[0].mxu0
  %1860 = vdwg.mxu0
  %v1861 = vadd.f32 %v1774, %v1853
  %v1862 = vadd.f32 %v1775, %v1858
  %v1863 = vxor.u32 %v1772, 2147483648
  %v1864 = vxor.u32 %v1773, 2147483648
  %v1865 = vmul.f32 %v1863, 1.442695
  %v1866 = vpow.pop %v1865
  %v1867 = vmul.f32 %v1864, 1.442695
  %v1868 = vpow.pop %v1867
  %v1869 = vadd.f32 %v1866, 1.0
  %v1870 = vadd.f32 %v1868, 1.0
  %v1871 = vrcp.pop %v1869
  %v1872 = vmul.f32 1.0, %v1871
  %v1873 = vrcp.pop %v1870
  %v1874 = vmul.f32 1.0, %v1873
  %v1875 = vtanh.pop %v1772
  %v1876 = vtanh.pop %v1773
  %v1877 = vmul.f32 %v1872, %v1623
  %v1878 = vmul.f32 %v1874, %v1624
  %1881 = vrot.lane.b32.xlu0 %v1875, 64
  %v1882 = vpop.permute.xlu0 %1881
  %1883 = vrot.lane.b32.xlu0 %v1876, 64
  %v1884 = vpop.permute.xlu0 %1883
  %v1887 = vmul.f32 %v1872, %v1882
  %v1888 = vmul.f32 %v1874, %v1884
  %1891 = vrot.lane.b32.xlu0 %v1887, 32
  %v1892 = vpop.permute.xlu0 %1891
  %1893 = vrot.lane.b32.xlu0 %v1888, 32
  %v1894 = vpop.permute.xlu0 %1893
  %v1897 = vadd.f32 %v1877, %v1892
  %v1898 = vadd.f32 %v1878, %v1894
  %v1899 = vtanh.pop %v1897
  %v1900 = vtanh.pop %v1898
  %1903 = vrot.lane.b32.xlu0 %v1899, 64
  %v1904 = vpop.permute.xlu0 %1903
  %1905 = vrot.lane.b32.xlu0 %v1900, 64
  %v1906 = vpop.permute.xlu0 %1905
  %v1909 = vmul.f32 %v1872, %v1904
  %v1910 = vmul.f32 %v1874, %v1906
  %v1911 = vxor.u32 %v1861, 2147483648
  %v1912 = vxor.u32 %v1862, 2147483648
  %v1913 = vmul.f32 %v1911, 1.442695
  %v1914 = vpow.pop %v1913
  %v1915 = vmul.f32 %v1912, 1.442695
  %v1916 = vpow.pop %v1915
  %v1917 = vadd.f32 %v1914, 1.0
  %v1918 = vadd.f32 %v1916, 1.0
  %v1919 = vrcp.pop %v1917
  %v1920 = vmul.f32 1.0, %v1919
  %v1921 = vrcp.pop %v1918
  %v1922 = vmul.f32 1.0, %v1921
  %v1923 = vtanh.pop %v1861
  %v1924 = vtanh.pop %v1862
  %v1925 = vmul.f32 %v1920, %v1671
  %v1926 = vmul.f32 %v1922, %v1672
  %1929 = vrot.lane.b32.xlu0 %v1923, 64
  %v1930 = vpop.permute.xlu0 %1929
  %1931 = vrot.lane.b32.xlu0 %v1924, 64
  %v1932 = vpop.permute.xlu0 %1931
  %v1935 = vmul.f32 %v1920, %v1930
  %v1936 = vmul.f32 %v1922, %v1932
  %1939 = vrot.lane.b32.xlu0 %v1935, 32
  %v1940 = vpop.permute.xlu0 %1939
  %1941 = vrot.lane.b32.xlu0 %v1936, 32
  %v1942 = vpop.permute.xlu0 %1941
  %v1945 = vadd.f32 %v1925, %v1940
  %v1946 = vadd.f32 %v1926, %v1942
  %v1947 = vtanh.pop %v1945
  %v1948 = vtanh.pop %v1946
  %1951 = vrot.lane.b32.xlu0 %v1947, 64
  %v1952 = vpop.permute.xlu0 %1951
  %1953 = vrot.lane.b32.xlu0 %v1948, 64
  %v1954 = vpop.permute.xlu0 %1953
  %v1957 = vmul.f32 %v1920, %v1952
  %v1958 = vmul.f32 %v1922, %v1954
  %v1959 = vld [vmem:[#allocation2 + $0xc0] sm:$0xff]
  %v1960 = vld [vmem:[#allocation2 + $0xd0] sm:$0xff]
  %1963 = vrot.lane.b32.xlu0 %v1909, 32
  %v1964 = vpop.permute.xlu0 %1963
  %1965 = vrot.lane.b32.xlu0 %v1910, 32
  %v1966 = vpop.permute.xlu0 %1965
  %v1967 = vsel %vm82, %v1964, 0
  %v1969 = vsel %vm82, %v1966, 0
  %1971 = vmatprep.subr.mxu0 0.0
  %1972 = vmatpush1.msra.mxu0 %v324
  %1973 = vmatprep.subr.mxu0 0.0
  %1974 = vmatpush1.msra.mxu0 %v325
  %1975 = vmatprep.subr.mxu0 0.0
  %1976 = vmatpush1.msra.mxu0 %v326
  %1977 = vmatprep.subr.mxu0 0.0
  %1978 = vmatpush1.msra.mxu0 %v327
  %1979 = vmatprep.subr.mxu0 0.0
  %1980 = vmatpush1.msra.mxu0 0.0
  %1981 = vmatprep.subr.mxu0 0.0
  %1982 = vmatpush1.msra.mxu0 0.0
  %1983 = vmatprep.subr.mxu0 0.0
  %1984 = vmatpush1.msra.mxu0 0.0
  %1985 = vmatprep.subr.mxu0 0.0
  %1986 = vmatpush1.msra.mxu0 0.0
  %1987 = vmatprep.subr.mxu0 0.0
  %1988 = vmatpush1.msra.mxu0 0.0
  %1989 = vmatprep.subr.mxu0 0.0
  %1990 = vmatpush1.msra.mxu0 0.0
  %1991 = vmatprep.subr.mxu0 0.0
  %1992 = vmatpush1.msra.mxu0 0.0
  %1993 = vmatprep.subr.mxu0 0.0
  %1994 = vmatpush1.msra.mxu0 0.0
  %1995 = vmatprep.subr.mxu0 0.0
  %1996 = vmatpush1.msra.mxu0 0.0
  %1997 = vmatprep.subr.mxu0 0.0
  %1998 = vmatpush1.msra.mxu0 0.0
  %1999 = vmatprep.subr.mxu0 0.0
  %2000 = vmatpush1.msra.mxu0 0.0
  %2001 = vmatprep.subr.mxu0 0.0
  %2002 = vmatpush1.msra.mxu0 0.0
  %2003 = vmatprep.subr.mxu0 0.0
  %2004 = vmatpush1.msra.mxu0 0.0
  %2005 = vmatprep.subr.mxu0 0.0
  %2006 = vmatpush1.msra.mxu0 0.0
  %2007 = vmatprep.subr.mxu0 0.0
  %2008 = vmatpush1.msra.mxu0 0.0
  %2009 = vmatprep.subr.mxu0 0.0
  %2010 = vmatpush1.msra.mxu0 0.0
  %2011 = vmatprep.subr.mxu0 0.0
  %2012 = vmatpush1.msra.mxu0 0.0
  %2013 = vmatprep.subr.mxu0 0.0
  %2014 = vmatpush1.msra.mxu0 0.0
  %2015 = vmatprep.subr.mxu0 0.0
  %2016 = vmatpush1.msra.mxu0 0.0
  %2017 = vmatprep.subr.mxu0 0.0
  %2018 = vmatpush1.msra.mxu0 0.0
  %2019 = vmatprep.subr.mxu0 0.0
  %2020 = vmatpush1.msra.mxu0 0.0
  %2021 = vmatprep.subr.mxu0 0.0
  %2022 = vmatpush1.msra.mxu0 0.0
  %2023 = vmatprep.subr.mxu0 0.0
  %2024 = vmatpush1.msra.mxu0 0.0
  %2025 = vmatprep.subr.mxu0 0.0
  %2026 = vmatpush1.msra.mxu0 0.0
  %2027 = vmatprep.subr.mxu0 0.0
  %2028 = vmatpush1.msra.mxu0 0.0
  %2029 = vmatprep.subr.mxu0 0.0
  %2030 = vmatpush1.msra.mxu0 0.0
  %2031 = vmatprep.subr.mxu0 0.0
  %2032 = vmatpush1.msra.mxu0 0.0
  %2033 = vmatprep.subr.mxu0 0.0
  %2034 = vmatpush1.msra.mxu0 0.0
  %2035 = vmatprep.mubr.f32.mxu0 0.0
  %2036 = vmatmul.mubr.f32.gmra.mrb[0].mxu0 %v1967
  %v2037 = vpop.f32.mrb[0].mxu0
  %v2038 = vadd.f32 0.0, %v2037
  %v2039 = vpop.f32.mrb[0].mxu0
  %2040 = vmatprep.mubr.f32.mxu0 0.0
  %2041 = vmatmul.mubr.f32.gmra.mrb[0].mxu0 %v1969
  %v2042 = vpop.f32.mrb[0].mxu0
  %v2043 = vadd.f32 0.0, %v2042
  %v2044 = vpop.f32.mrb[0].mxu0
  %2045 = vdwg.mxu0
  %v2046 = vadd.f32 %v1959, %v2038
  %v2047 = vadd.f32 %v1960, %v2043
  %v2048 = vld [vmem:[#allocation2 + $0x28] sm:$0xff]
  %v2049 = vld [vmem:[#allocation2 + $0x38] sm:$0xff]
  %2052 = vrot.lane.b32.xlu0 %v1957, 32
  %v2053 = vpop.permute.xlu0 %2052
  %2054 = vrot.lane.b32.xlu0 %v1958, 32
  %v2055 = vpop.permute.xlu0 %2054
  %v2056 = vsel %vm82, %v2053, 0
  %v2058 = vsel %vm82, %v2055, 0
  %2060 = vmatprep.subr.mxu0 0.0
  %2061 = vmatpush1.msra.mxu0 %v328
  %2062 = vmatprep.subr.mxu0 0.0
  %2063 = vmatpush1.msra.mxu0 %v329
  %2064 = vmatprep.subr.mxu0 0.0
  %2065 = vmatpush1.msra.mxu0 %v330
  %2066 = vmatprep.subr.mxu0 0.0
  %2067 = vmatpush1.msra.mxu0 %v331
  %2068 = vmatprep.subr.mxu0 0.0
  %2069 = vmatpush1.msra.mxu0 0.0
  %2070 = vmatprep.subr.mxu0 0.0
  %2071 = vmatpush1.msra.mxu0 0.0
  %2072 = vmatprep.subr.mxu0 0.0
  %2073 = vmatpush1.msra.mxu0 0.0
  %2074 = vmatprep.subr.mxu0 0.0
  %2075 = vmatpush1.msra.mxu0 0.0
  %2076 = vmatprep.subr.mxu0 0.0
  %2077 = vmatpush1.msra.mxu0 0.0
  %2078 = vmatprep.subr.mxu0 0.0
  %2079 = vmatpush1.msra.mxu0 0.0
  %2080 = vmatprep.subr.mxu0 0.0
  %2081 = vmatpush1.msra.mxu0 0.0
  %2082 = vmatprep.subr.mxu0 0.0
  %2083 = vmatpush1.msra.mxu0 0.0
  %2084 = vmatprep.subr.mxu0 0.0
  %2085 = vmatpush1.msra.mxu0 0.0
  %2086 = vmatprep.subr.mxu0 0.0
  %2087 = vmatpush1.msra.mxu0 0.0
  %2088 = vmatprep.subr.mxu0 0.0
  %2089 = vmatpush1.msra.mxu0 0.0
  %2090 = vmatprep.subr.mxu0 0.0
  %2091 = vmatpush1.msra.mxu0 0.0
  %2092 = vmatprep.subr.mxu0 0.0
  %2093 = vmatpush1.msra.mxu0 0.0
  %2094 = vmatprep.subr.mxu0 0.0
  %2095 = vmatpush1.msra.mxu0 0.0
  %2096 = vmatprep.subr.mxu0 0.0
  %2097 = vmatpush1.msra.mxu0 0.0
  %2098 = vmatprep.subr.mxu0 0.0
  %2099 = vmatpush1.msra.mxu0 0.0
  %2100 = vmatprep.subr.mxu0 0.0
  %2101 = vmatpush1.msra.mxu0 0.0
  %2102 = vmatprep.subr.mxu0 0.0
  %2103 = vmatpush1.msra.mxu0 0.0
  %2104 = vmatprep.subr.mxu0 0.0
  %2105 = vmatpush1.msra.mxu0 0.0
  %2106 = vmatprep.subr.mxu0 0.0
  %2107 = vmatpush1.msra.mxu0 0.0
  %2108 = vmatprep.subr.mxu0 0.0
  %2109 = vmatpush1.msra.mxu0 0.0
  %2110 = vmatprep.subr.mxu0 0.0
  %2111 = vmatpush1.msra.mxu0 0.0
  %2112 = vmatprep.subr.mxu0 0.0
  %2113 = vmatpush1.msra.mxu0 0.0
  %2114 = vmatprep.subr.mxu0 0.0
  %2115 = vmatpush1.msra.mxu0 0.0
  %2116 = vmatprep.subr.mxu0 0.0
  %2117 = vmatpush1.msra.mxu0 0.0
  %2118 = vmatprep.subr.mxu0 0.0
  %2119 = vmatpush1.msra.mxu0 0.0
  %2120 = vmatprep.subr.mxu0 0.0
  %2121 = vmatpush1.msra.mxu0 0.0
  %2122 = vmatprep.subr.mxu0 0.0
  %2123 = vmatpush1.msra.mxu0 0.0
  %2124 = vmatprep.mubr.f32.mxu0 0.0
  %2125 = vmatmul.mubr.f32.gmra.mrb[0].mxu0 %v2056
  %v2126 = vpop.f32.mrb[0].mxu0
  %v2127 = vadd.f32 0.0, %v2126
  %v2128 = vpop.f32.mrb[0].mxu0
  %2129 = vmatprep.mubr.f32.mxu0 0.0
  %2130 = vmatmul.mubr.f32.gmra.mrb[0].mxu0 %v2058
  %v2131 = vpop.f32.mrb[0].mxu0
  %v2132 = vadd.f32 0.0, %v2131
  %v2133 = vpop.f32.mrb[0].mxu0
  %2134 = vdwg.mxu0
  %v2135 = vadd.f32 %v2048, %v2127
  %v2136 = vadd.f32 %v2049, %v2132
  %v2137 = vxor.u32 %v2046, 2147483648
  %v2138 = vxor.u32 %v2047, 2147483648
  %v2139 = vmul.f32 %v2137, 1.442695
  %v2140 = vpow.pop %v2139
  %v2141 = vmul.f32 %v2138, 1.442695
  %v2142 = vpow.pop %v2141
  %v2143 = vadd.f32 %v2140, 1.0
  %v2144 = vadd.f32 %v2142, 1.0
  %v2145 = vrcp.pop %v2143
  %v2146 = vmul.f32 1.0, %v2145
  %v2147 = vrcp.pop %v2144
  %v2148 = vmul.f32 1.0, %v2147
  %v2149 = vtanh.pop %v2046
  %v2150 = vtanh.pop %v2047
  %v2151 = vmul.f32 %v2146, %v1897
  %v2152 = vmul.f32 %v2148, %v1898
  %2155 = vrot.lane.b32.xlu0 %v2149, 64
  %v2156 = vpop.permute.xlu0 %2155
  %2157 = vrot.lane.b32.xlu0 %v2150, 64
  %v2158 = vpop.permute.xlu0 %2157
  %v2161 = vmul.f32 %v2146, %v2156
  %v2162 = vmul.f32 %v2148, %v2158
  %2165 = vrot.lane.b32.xlu0 %v2161, 32
  %v2166 = vpop.permute.xlu0 %2165
  %2167 = vrot.lane.b32.xlu0 %v2162, 32
  %v2168 = vpop.permute.xlu0 %2167
  %v2171 = vadd.f32 %v2151, %v2166
  %v2172 = vadd.f32 %v2152, %v2168
  %v2173 = vtanh.pop %v2171
  %v2174 = vtanh.pop %v2172
  %2177 = vrot.lane.b32.xlu0 %v2173, 64
  %v2178 = vpop.permute.xlu0 %2177
  %2179 = vrot.lane.b32.xlu0 %v2174, 64
  %v2180 = vpop.permute.xlu0 %2179
  %v2183 = vmul.f32 %v2146, %v2178
  %v2184 = vmul.f32 %v2148, %v2180
  %v2185 = vxor.u32 %v2135, 2147483648
  %v2186 = vxor.u32 %v2136, 2147483648
  %v2187 = vmul.f32 %v2185, 1.442695
  %v2188 = vpow.pop %v2187
  %v2189 = vmul.f32 %v2186, 1.442695
  %v2190 = vpow.pop %v2189
  %v2191 = vadd.f32 %v2188, 1.0
  %v2192 = vadd.f32 %v2190, 1.0
  %v2193 = vrcp.pop %v2191
  %v2194 = vmul.f32 1.0, %v2193
  %v2195 = vrcp.pop %v2192
  %v2196 = vmul.f32 1.0, %v2195
  %v2197 = vtanh.pop %v2135
  %v2198 = vtanh.pop %v2136
  %v2199 = vmul.f32 %v2194, %v1945
  %v2200 = vmul.f32 %v2196, %v1946
  %2203 = vrot.lane.b32.xlu0 %v2197, 64
  %v2204 = vpop.permute.xlu0 %2203
  %2205 = vrot.lane.b32.xlu0 %v2198, 64
  %v2206 = vpop.permute.xlu0 %2205
  %v2209 = vmul.f32 %v2194, %v2204
  %v2210 = vmul.f32 %v2196, %v2206
  %2213 = vrot.lane.b32.xlu0 %v2209, 32
  %v2214 = vpop.permute.xlu0 %2213
  %2215 = vrot.lane.b32.xlu0 %v2210, 32
  %v2216 = vpop.permute.xlu0 %2215
  %v2219 = vadd.f32 %v2199, %v2214
  %v2220 = vadd.f32 %v2200, %v2216
  %v2221 = vtanh.pop %v2219
  %v2222 = vtanh.pop %v2220
  %2225 = vrot.lane.b32.xlu0 %v2221, 64
  %v2226 = vpop.permute.xlu0 %2225
  %2227 = vrot.lane.b32.xlu0 %v2222, 64
  %v2228 = vpop.permute.xlu0 %2227
  %v2231 = vmul.f32 %v2194, %v2226
  %v2232 = vmul.f32 %v2196, %v2228
  %v2233 = vld [vmem:[#allocation2 + $0xe0] sm:$0xff]
  %v2234 = vld [vmem:[#allocation2 + $0xf0] sm:$0xff]
  %2237 = vrot.lane.b32.xlu0 %v2183, 32
  %v2238 = vpop.permute.xlu0 %2237
  %2239 = vrot.lane.b32.xlu0 %v2184, 32
  %v2240 = vpop.permute.xlu0 %2239
  %v2241 = vsel %vm82, %v2238, 0
  %v2243 = vsel %vm82, %v2240, 0
  %2245 = vmatprep.subr.mxu0 0.0
  %2246 = vmatpush1.msra.mxu0 %v324
  %2247 = vmatprep.subr.mxu0 0.0
  %2248 = vmatpush1.msra.mxu0 %v325
  %2249 = vmatprep.subr.mxu0 0.0
  %2250 = vmatpush1.msra.mxu0 %v326
  %2251 = vmatprep.subr.mxu0 0.0
  %2252 = vmatpush1.msra.mxu0 %v327
  %2253 = vmatprep.subr.mxu0 0.0
  %2254 = vmatpush1.msra.mxu0 0.0
  %2255 = vmatprep.subr.mxu0 0.0
  %2256 = vmatpush1.msra.mxu0 0.0
  %2257 = vmatprep.subr.mxu0 0.0
  %2258 = vmatpush1.msra.mxu0 0.0
  %2259 = vmatprep.subr.mxu0 0.0
  %2260 = vmatpush1.msra.mxu0 0.0
  %2261 = vmatprep.subr.mxu0 0.0
  %2262 = vmatpush1.msra.mxu0 0.0
  %2263 = vmatprep.subr.mxu0 0.0
  %2264 = vmatpush1.msra.mxu0 0.0
  %2265 = vmatprep.subr.mxu0 0.0
  %2266 = vmatpush1.msra.mxu0 0.0
  %2267 = vmatprep.subr.mxu0 0.0
  %2268 = vmatpush1.msra.mxu0 0.0
  %2269 = vmatprep.subr.mxu0 0.0
  %2270 = vmatpush1.msra.mxu0 0.0
  %2271 = vmatprep.subr.mxu0 0.0
  %2272 = vmatpush1.msra.mxu0 0.0
  %2273 = vmatprep.subr.mxu0 0.0
  %2274 = vmatpush1.msra.mxu0 0.0
  %2275 = vmatprep.subr.mxu0 0.0
  %2276 = vmatpush1.msra.mxu0 0.0
  %2277 = vmatprep.subr.mxu0 0.0
  %2278 = vmatpush1.msra.mxu0 0.0
  %2279 = vmatprep.subr.mxu0 0.0
  %2280 = vmatpush1.msra.mxu0 0.0
  %2281 = vmatprep.subr.mxu0 0.0
  %2282 = vmatpush1.msra.mxu0 0.0
  %2283 = vmatprep.subr.mxu0 0.0
  %2284 = vmatpush1.msra.mxu0 0.0
  %2285 = vmatprep.subr.mxu0 0.0
  %2286 = vmatpush1.msra.mxu0 0.0
  %2287 = vmatprep.subr.mxu0 0.0
  %2288 = vmatpush1.msra.mxu0 0.0
  %2289 = vmatprep.subr.mxu0 0.0
  %2290 = vmatpush1.msra.mxu0 0.0
  %2291 = vmatprep.subr.mxu0 0.0
  %2292 = vmatpush1.msra.mxu0 0.0
  %2293 = vmatprep.subr.mxu0 0.0
  %2294 = vmatpush1.msra.mxu0 0.0
  %2295 = vmatprep.subr.mxu0 0.0
  %2296 = vmatpush1.msra.mxu0 0.0
  %2297 = vmatprep.subr.mxu0 0.0
  %2298 = vmatpush1.msra.mxu0 0.0
  %2299 = vmatprep.subr.mxu0 0.0
  %2300 = vmatpush1.msra.mxu0 0.0
  %2301 = vmatprep.subr.mxu0 0.0
  %2302 = vmatpush1.msra.mxu0 0.0
  %2303 = vmatprep.subr.mxu0 0.0
  %2304 = vmatpush1.msra.mxu0 0.0
  %2305 = vmatprep.subr.mxu0 0.0
  %2306 = vmatpush1.msra.mxu0 0.0
  %2307 = vmatprep.subr.mxu0 0.0
  %2308 = vmatpush1.msra.mxu0 0.0
  %2309 = vmatprep.mubr.f32.mxu0 0.0
  %2310 = vmatmul.mubr.f32.gmra.mrb[0].mxu0 %v2241
  %v2311 = vpop.f32.mrb[0].mxu0
  %v2312 = vadd.f32 0.0, %v2311
  %v2313 = vpop.f32.mrb[0].mxu0
  %2314 = vmatprep.mubr.f32.mxu0 0.0
  %2315 = vmatmul.mubr.f32.gmra.mrb[0].mxu0 %v2243
  %v2316 = vpop.f32.mrb[0].mxu0
  %v2317 = vadd.f32 0.0, %v2316
  %v2318 = vpop.f32.mrb[0].mxu0
  %2319 = vdwg.mxu0
  %v2320 = vadd.f32 %v2233, %v2312
  %v2321 = vadd.f32 %v2234, %v2317
  %v2322 = vld [vmem:[#allocation2 + $0x8] sm:$0xff]
  %v2323 = vld [vmem:[#allocation2 + $0x18] sm:$0xff]
  %2326 = vrot.lane.b32.xlu0 %v2231, 32
  %v2327 = vpop.permute.xlu0 %2326
  %2328 = vrot.lane.b32.xlu0 %v2232, 32
  %v2329 = vpop.permute.xlu0 %2328
  %v2330 = vsel %vm82, %v2327, 0
  %v2332 = vsel %vm82, %v2329, 0
  %2334 = vmatprep.subr.mxu0 0.0
  %2335 = vmatpush1.msra.mxu0 %v328
  %2336 = vmatprep.subr.mxu0 0.0
  %2337 = vmatpush1.msra.mxu0 %v329
  %2338 = vmatprep.subr.mxu0 0.0
  %2339 = vmatpush1.msra.mxu0 %v330
  %2340 = vmatprep.subr.mxu0 0.0
  %2341 = vmatpush1.msra.mxu0 %v331
  %2342 = vmatprep.subr.mxu0 0.0
  %2343 = vmatpush1.msra.mxu0 0.0
  %2344 = vmatprep.subr.mxu0 0.0
  %2345 = vmatpush1.msra.mxu0 0.0
  %2346 = vmatprep.subr.mxu0 0.0
  %2347 = vmatpush1.msra.mxu0 0.0
  %2348 = vmatprep.subr.mxu0 0.0
  %2349 = vmatpush1.msra.mxu0 0.0
  %2350 = vmatprep.subr.mxu0 0.0
  %2351 = vmatpush1.msra.mxu0 0.0
  %2352 = vmatprep.subr.mxu0 0.0
  %2353 = vmatpush1.msra.mxu0 0.0
  %2354 = vmatprep.subr.mxu0 0.0
  %2355 = vmatpush1.msra.mxu0 0.0
  %2356 = vmatprep.subr.mxu0 0.0
  %2357 = vmatpush1.msra.mxu0 0.0
  %2358 = vmatprep.subr.mxu0 0.0
  %2359 = vmatpush1.msra.mxu0 0.0
  %2360 = vmatprep.subr.mxu0 0.0
  %2361 = vmatpush1.msra.mxu0 0.0
  %2362 = vmatprep.subr.mxu0 0.0
  %2363 = vmatpush1.msra.mxu0 0.0
  %2364 = vmatprep.subr.mxu0 0.0
  %2365 = vmatpush1.msra.mxu0 0.0
  %2366 = vmatprep.subr.mxu0 0.0
  %2367 = vmatpush1.msra.mxu0 0.0
  %2368 = vmatprep.subr.mxu0 0.0
  %2369 = vmatpush1.msra.mxu0 0.0
  %2370 = vmatprep.subr.mxu0 0.0
  %2371 = vmatpush1.msra.mxu0 0.0
  %2372 = vmatprep.subr.mxu0 0.0
  %2373 = vmatpush1.msra.mxu0 0.0
  %2374 = vmatprep.subr.mxu0 0.0
  %2375 = vmatpush1.msra.mxu0 0.0
  %2376 = vmatprep.subr.mxu0 0.0
  %2377 = vmatpush1.msra.mxu0 0.0
  %2378 = vmatprep.subr.mxu0 0.0
  %2379 = vmatpush1.msra.mxu0 0.0
  %2380 = vmatprep.subr.mxu0 0.0
  %2381 = vmatpush1.msra.mxu0 0.0
  %2382 = vmatprep.subr.mxu0 0.0
  %2383 = vmatpush1.msra.mxu0 0.0
  %2384 = vmatprep.subr.mxu0 0.0
  %2385 = vmatpush1.msra.mxu0 0.0
  %2386 = vmatprep.subr.mxu0 0.0
  %2387 = vmatpush1.msra.mxu0 0.0
  %2388 = vmatprep.subr.mxu0 0.0
  %2389 = vmatpush1.msra.mxu0 0.0
  %2390 = vmatprep.subr.mxu0 0.0
  %2391 = vmatpush1.msra.mxu0 0.0
  %2392 = vmatprep.subr.mxu0 0.0
  %2393 = vmatpush1.msra.mxu0 0.0
  %2394 = vmatprep.subr.mxu0 0.0
  %2395 = vmatpush1.msra.mxu0 0.0
  %2396 = vmatprep.subr.mxu0 0.0
  %2397 = vmatpush1.msra.mxu0 0.0
  %2398 = vmatprep.mubr.f32.mxu0 0.0
  %2399 = vmatmul.mubr.f32.gmra.mrb[0].mxu0 %v2330
  %v2400 = vpop.f32.mrb[0].mxu0
  %v2401 = vadd.f32 0.0, %v2400
  %v2402 = vpop.f32.mrb[0].mxu0
  %2403 = vmatprep.mubr.f32.mxu0 0.0
  %2404 = vmatmul.mubr.f32.gmra.mrb[0].mxu0 %v2332
  %v2405 = vpop.f32.mrb[0].mxu0
  %v2406 = vadd.f32 0.0, %v2405
  %v2407 = vpop.f32.mrb[0].mxu0
  %2408 = vdwg.mxu0
  %v2409 = vadd.f32 %v2322, %v2401
  %v2410 = vadd.f32 %v2323, %v2406
  %v2411 = vxor.u32 %v2320, 2147483648
  %v2412 = vxor.u32 %v2321, 2147483648
  %v2413 = vmul.f32 %v2411, 1.442695
  %v2414 = vpow.pop %v2413
  %v2415 = vmul.f32 %v2412, 1.442695
  %v2416 = vpow.pop %v2415
  %v2417 = vadd.f32 %v2414, 1.0
  %v2418 = vadd.f32 %v2416, 1.0
  %v2419 = vrcp.pop %v2417
  %v2420 = vmul.f32 1.0, %v2419
  %v2421 = vrcp.pop %v2418
  %v2422 = vmul.f32 1.0, %v2421
  %v2423 = vtanh.pop %v2320
  %v2424 = vtanh.pop %v2321
  %v2425 = vmul.f32 %v2420, %v2171
  %v2426 = vmul.f32 %v2422, %v2172
  %2429 = vrot.lane.b32.xlu0 %v2423, 64
  %v2430 = vpop.permute.xlu0 %2429
  %2431 = vrot.lane.b32.xlu0 %v2424, 64
  %v2432 = vpop.permute.xlu0 %2431
  %v2435 = vmul.f32 %v2420, %v2430
  %v2436 = vmul.f32 %v2422, %v2432
  %2439 = vrot.lane.b32.xlu0 %v2435, 32
  %v2440 = vpop.permute.xlu0 %2439
  %2441 = vrot.lane.b32.xlu0 %v2436, 32
  %v2442 = vpop.permute.xlu0 %2441
  %v2445 = vadd.f32 %v2425, %v2440
  %v2446 = vadd.f32 %v2426, %v2442
  %v2447 = vtanh.pop %v2445
  %v2448 = vtanh.pop %v2446
  %2451 = vrot.lane.b32.xlu0 %v2447, 64
  %v2452 = vpop.permute.xlu0 %2451
  %2453 = vrot.lane.b32.xlu0 %v2448, 64
  %v2454 = vpop.permute.xlu0 %2453
  %v2457 = vmul.f32 %v2420, %v2452
  %v2458 = vmul.f32 %v2422, %v2454
  %v2459 = vxor.u32 %v2409, 2147483648
  %v2460 = vxor.u32 %v2410, 2147483648
  %v2461 = vmul.f32 %v2459, 1.442695
  %v2462 = vpow.pop %v2461
  %v2463 = vmul.f32 %v2460, 1.442695
  %v2464 = vpow.pop %v2463
  %v2465 = vadd.f32 %v2462, 1.0
  %v2466 = vadd.f32 %v2464, 1.0
  %v2467 = vrcp.pop %v2465
  %v2468 = vmul.f32 1.0, %v2467
  %v2469 = vrcp.pop %v2466
  %v2470 = vmul.f32 1.0, %v2469
  %v2471 = vtanh.pop %v2409
  %v2472 = vtanh.pop %v2410
  %v2473 = vmul.f32 %v2468, %v2219
  %v2474 = vmul.f32 %v2470, %v2220
  %2477 = vrot.lane.b32.xlu0 %v2471, 64
  %v2478 = vpop.permute.xlu0 %2477
  %2479 = vrot.lane.b32.xlu0 %v2472, 64
  %v2480 = vpop.permute.xlu0 %2479
  %v2483 = vmul.f32 %v2468, %v2478
  %v2484 = vmul.f32 %v2470, %v2480
  %2487 = vrot.lane.b32.xlu0 %v2483, 32
  %v2488 = vpop.permute.xlu0 %2487
  %2489 = vrot.lane.b32.xlu0 %v2484, 32
  %v2490 = vpop.permute.xlu0 %2489
  %v2493 = vadd.f32 %v2473, %v2488
  %v2494 = vadd.f32 %v2474, %v2490
  %v2495 = vtanh.pop %v2493
  %v2496 = vtanh.pop %v2494
  %2499 = vrot.lane.b32.xlu0 %v2495, 64
  %v2500 = vpop.permute.xlu0 %2499
  %2501 = vrot.lane.b32.xlu0 %v2496, 64
  %v2502 = vpop.permute.xlu0 %2501
  %v2505 = vmul.f32 %v2468, %v2500
  %v2506 = vmul.f32 %v2470, %v2502
  %v2507 = vld [vmem:[%s5] sm:$0xff]
  %v2508 = vld [vmem:[%s5 + $0x8] sm:$0xff]
  %v2509 = vld [vmem:[%s5 + $0x10] sm:$0xff]
  %v2510 = vld [vmem:[%s5 + $0x18] sm:$0xff]
  %v2511 = vld [vmem:[%s5 + $0x20] sm:$0xff]
  %v2512 = vld [vmem:[%s5 + $0x28] sm:$0xff]
  %v2513 = vld [vmem:[%s5 + $0x30] sm:$0xff]
  %v2514 = vld [vmem:[%s5 + $0x38] sm:$0xff]
  %v2515 = vld [vmem:[%s5 + $0x40] sm:$0xff]
  %v2516 = vld [vmem:[%s5 + $0x48] sm:$0xff]
  %v2517 = vld [vmem:[%s5 + $0x50] sm:$0xff]
  %v2518 = vld [vmem:[%s5 + $0x58] sm:$0xff]
  %v2519 = vld [vmem:[%s5 + $0x60] sm:$0xff]
  %v2520 = vld [vmem:[%s5 + $0x68] sm:$0xff]
  %v2521 = vld [vmem:[%s5 + $0x70] sm:$0xff]
  %v2522 = vld [vmem:[%s5 + $0x78] sm:$0xff]
  %2525 = vrot.lane.b32.xlu0 %v2505, 32
  %v2526 = vpop.permute.xlu0 %2525
  %2527 = vrot.lane.b32.xlu0 %v2506, 32
  %v2528 = vpop.permute.xlu0 %2527
  %v2529 = vsel %vm82, %v2526, 0
  %v2531 = vsel %vm82, %v2528, 0
  %2533 = vmatprep.subr.mxu0 %v2516
  %2534 = vmatpush1.msra.mxu0 %v2515
  %2535 = vmatprep.subr.mxu0 %v2518
  %2536 = vmatpush1.msra.mxu0 %v2517
  %2537 = vmatprep.subr.mxu0 %v2520
  %2538 = vmatpush1.msra.mxu0 %v2519
  %2539 = vmatprep.subr.mxu0 %v2522
  %2540 = vmatpush1.msra.mxu0 %v2521
  %2541 = vmatprep.subr.mxu0 0.0
  %2542 = vmatpush1.msra.mxu0 0.0
  %2543 = vmatprep.subr.mxu0 0.0
  %2544 = vmatpush1.msra.mxu0 0.0
  %2545 = vmatprep.subr.mxu0 0.0
  %2546 = vmatpush1.msra.mxu0 0.0
  %2547 = vmatprep.subr.mxu0 0.0
  %2548 = vmatpush1.msra.mxu0 0.0
  %2549 = vmatprep.subr.mxu0 0.0
  %2550 = vmatpush1.msra.mxu0 0.0
  %2551 = vmatprep.subr.mxu0 0.0
  %2552 = vmatpush1.msra.mxu0 0.0
  %2553 = vmatprep.subr.mxu0 0.0
  %2554 = vmatpush1.msra.mxu0 0.0
  %2555 = vmatprep.subr.mxu0 0.0
  %2556 = vmatpush1.msra.mxu0 0.0
  %2557 = vmatprep.subr.mxu0 0.0
  %2558 = vmatpush1.msra.mxu0 0.0
  %2559 = vmatprep.subr.mxu0 0.0
  %2560 = vmatpush1.msra.mxu0 0.0
  %2561 = vmatprep.subr.mxu0 0.0
  %2562 = vmatpush1.msra.mxu0 0.0
  %2563 = vmatprep.subr.mxu0 0.0
  %2564 = vmatpush1.msra.mxu0 0.0
  %2565 = vmatprep.subr.mxu0 0.0
  %2566 = vmatpush1.msra.mxu0 0.0
  %2567 = vmatprep.subr.mxu0 0.0
  %2568 = vmatpush1.msra.mxu0 0.0
  %2569 = vmatprep.subr.mxu0 0.0
  %2570 = vmatpush1.msra.mxu0 0.0
  %2571 = vmatprep.subr.mxu0 0.0
  %2572 = vmatpush1.msra.mxu0 0.0
  %2573 = vmatprep.subr.mxu0 0.0
  %2574 = vmatpush1.msra.mxu0 0.0
  %2575 = vmatprep.subr.mxu0 0.0
  %2576 = vmatpush1.msra.mxu0 0.0
  %2577 = vmatprep.subr.mxu0 0.0
  %2578 = vmatpush1.msra.mxu0 0.0
  %2579 = vmatprep.subr.mxu0 0.0
  %2580 = vmatpush1.msra.mxu0 0.0
  %2581 = vmatprep.subr.mxu0 0.0
  %2582 = vmatpush1.msra.mxu0 0.0
  %2583 = vmatprep.subr.mxu0 0.0
  %2584 = vmatpush1.msra.mxu0 0.0
  %2585 = vmatprep.subr.mxu0 0.0
  %2586 = vmatpush1.msra.mxu0 0.0
  %2587 = vmatprep.subr.mxu0 0.0
  %2588 = vmatpush1.msra.mxu0 0.0
  %2589 = vmatprep.subr.mxu0 0.0
  %2590 = vmatpush1.msra.mxu0 0.0
  %2591 = vmatprep.subr.mxu0 0.0
  %2592 = vmatpush1.msra.mxu0 0.0
  %2593 = vmatprep.subr.mxu0 0.0
  %2594 = vmatpush1.msra.mxu0 0.0
  %2595 = vmatprep.subr.mxu0 0.0
  %2596 = vmatpush1.msra.mxu0 0.0
  %2597 = vmatprep.mubr.f32.mxu0 0.0
  %2598 = vmatmul.mubr.f32.gmra.mrb[0].mxu0 %v2529
  %v2599 = vpop.f32.mrb[0].mxu0
  %v2600 = vadd.f32 0.0, %v2599
  %v2601 = vpop.f32.mrb[0].mxu0
  %v2602 = vadd.f32 0.0, %v2601
  %2603 = vmatprep.mubr.f32.mxu0 0.0
  %2604 = vmatmul.mubr.f32.gmra.mrb[0].mxu0 %v2531
  %v2605 = vpop.f32.mrb[0].mxu0
  %v2606 = vadd.f32 0.0, %v2605
  %v2607 = vpop.f32.mrb[0].mxu0
  %v2608 = vadd.f32 0.0, %v2607
  %2609 = vmatprep.mubr.f32.mxu0 0.0
  %2610 = vmatmul.mubr.f32.gmra.mrb[0].mxu0 %v2330
  %v2611 = vpop.f32.mrb[0].mxu0
  %v2612 = vadd.f32 0.0, %v2611
  %v2613 = vpop.f32.mrb[0].mxu0
  %v2614 = vadd.f32 0.0, %v2613
  %2615 = vmatprep.mubr.f32.mxu0 0.0
  %2616 = vmatmul.mubr.f32.gmra.mrb[0].mxu0 %v2332
  %v2617 = vpop.f32.mrb[0].mxu0
  %v2618 = vadd.f32 0.0, %v2617
  %v2619 = vpop.f32.mrb[0].mxu0
  %v2620 = vadd.f32 0.0, %v2619
  %2621 = vmatprep.mubr.f32.mxu0 0.0
  %2622 = vmatmul.mubr.f32.gmra.mrb[0].mxu0 %v2056
  %v2623 = vpop.f32.mrb[0].mxu0
  %v2624 = vadd.f32 0.0, %v2623
  %v2625 = vpop.f32.mrb[0].mxu0
  %v2626 = vadd.f32 0.0, %v2625
  %2627 = vmatprep.mubr.f32.mxu0 0.0
  %2628 = vmatmul.mubr.f32.gmra.mrb[0].mxu0 %v2058
  %v2629 = vpop.f32.mrb[0].mxu0
  %v2630 = vadd.f32 0.0, %v2629
  %v2631 = vpop.f32.mrb[0].mxu0
  %v2632 = vadd.f32 0.0, %v2631
  %2633 = vmatprep.mubr.f32.mxu0 0.0
  %2634 = vmatmul.mubr.f32.gmra.mrb[0].mxu0 %v1782
  %v2635 = vpop.f32.mrb[0].mxu0
  %v2636 = vadd.f32 0.0, %v2635
  %v2637 = vpop.f32.mrb[0].mxu0
  %v2638 = vadd.f32 0.0, %v2637
  %2639 = vmatprep.mubr.f32.mxu0 0.0
  %2640 = vmatmul.mubr.f32.gmra.mrb[0].mxu0 %v1784
  %v2641 = vpop.f32.mrb[0].mxu0
  %v2642 = vadd.f32 0.0, %v2641
  %v2643 = vpop.f32.mrb[0].mxu0
  %v2644 = vadd.f32 0.0, %v2643
  %2645 = vmatprep.mubr.f32.mxu0 0.0
  %2646 = vmatmul.mubr.f32.gmra.mrb[0].mxu0 %v1508
  %v2647 = vpop.f32.mrb[0].mxu0
  %v2648 = vadd.f32 0.0, %v2647
  %v2649 = vpop.f32.mrb[0].mxu0
  %v2650 = vadd.f32 0.0, %v2649
  %2651 = vmatprep.mubr.f32.mxu0 0.0
  %2652 = vmatmul.mubr.f32.gmra.mrb[0].mxu0 %v1510
  %v2653 = vpop.f32.mrb[0].mxu0
  %v2654 = vadd.f32 0.0, %v2653
  %v2655 = vpop.f32.mrb[0].mxu0
  %v2656 = vadd.f32 0.0, %v2655
  %2657 = vmatprep.mubr.f32.mxu0 0.0
  %2658 = vmatmul.mubr.f32.gmra.mrb[0].mxu0 %v1234
  %v2659 = vpop.f32.mrb[0].mxu0
  %v2660 = vadd.f32 0.0, %v2659
  %v2661 = vpop.f32.mrb[0].mxu0
  %v2662 = vadd.f32 0.0, %v2661
  %2663 = vmatprep.mubr.f32.mxu0 0.0
  %2664 = vmatmul.mubr.f32.gmra.mrb[0].mxu0 %v1236
  %v2665 = vpop.f32.mrb[0].mxu0
  %v2666 = vadd.f32 0.0, %v2665
  %v2667 = vpop.f32.mrb[0].mxu0
  %v2668 = vadd.f32 0.0, %v2667
  %2669 = vmatprep.mubr.f32.mxu0 0.0
  %2670 = vmatmul.mubr.f32.gmra.mrb[0].mxu0 %v960
  %v2671 = vpop.f32.mrb[0].mxu0
  %v2672 = vadd.f32 0.0, %v2671
  %v2673 = vpop.f32.mrb[0].mxu0
  %v2674 = vadd.f32 0.0, %v2673
  %2675 = vmatprep.mubr.f32.mxu0 0.0
  %2676 = vmatmul.mubr.f32.gmra.mrb[0].mxu0 %v962
  %v2677 = vpop.f32.mrb[0].mxu0
  %v2678 = vadd.f32 0.0, %v2677
  %v2679 = vpop.f32.mrb[0].mxu0
  %v2680 = vadd.f32 0.0, %v2679
  %2681 = vmatprep.mubr.f32.mxu0 0.0
  %2682 = vmatmul.mubr.f32.gmra.mrb[0].mxu0 %v686
  %v2683 = vpop.f32.mrb[0].mxu0
  %v2684 = vadd.f32 0.0, %v2683
  %v2685 = vpop.f32.mrb[0].mxu0
  %v2686 = vadd.f32 0.0, %v2685
  %2687 = vmatprep.mubr.f32.mxu0 0.0
  %2688 = vmatmul.mubr.f32.gmra.mrb[0].mxu0 %v688
  %v2689 = vpop.f32.mrb[0].mxu0
  %v2690 = vadd.f32 0.0, %v2689
  %v2691 = vpop.f32.mrb[0].mxu0
  %v2692 = vadd.f32 0.0, %v2691
  %2693 = vdwg.mxu0
  %2696 = vrot.lane.b32.xlu0 %v2457, 32
  %v2697 = vpop.permute.xlu0 %2696
  %2698 = vrot.lane.b32.xlu0 %v2458, 32
  %v2699 = vpop.permute.xlu0 %2698
  %v2700 = vsel %vm82, %v2697, 0
  %v2702 = vsel %vm82, %v2699, 0
  %2704 = vmatprep.subr.mxu0 %v2508
  %2705 = vmatpush1.msra.mxu0 %v2507
  %2706 = vmatprep.subr.mxu0 %v2510
  %2707 = vmatpush1.msra.mxu0 %v2509
  %2708 = vmatprep.subr.mxu0 %v2512
  %2709 = vmatpush1.msra.mxu0 %v2511
  %2710 = vmatprep.subr.mxu0 %v2514
  %2711 = vmatpush1.msra.mxu0 %v2513
  %2712 = vmatprep.subr.mxu0 0.0
  %2713 = vmatpush1.msra.mxu0 0.0
  %2714 = vmatprep.subr.mxu0 0.0
  %2715 = vmatpush1.msra.mxu0 0.0
  %2716 = vmatprep.subr.mxu0 0.0
  %2717 = vmatpush1.msra.mxu0 0.0
  %2718 = vmatprep.subr.mxu0 0.0
  %2719 = vmatpush1.msra.mxu0 0.0
  %2720 = vmatprep.subr.mxu0 0.0
  %2721 = vmatpush1.msra.mxu0 0.0
  %2722 = vmatprep.subr.mxu0 0.0
  %2723 = vmatpush1.msra.mxu0 0.0
  %2724 = vmatprep.subr.mxu0 0.0
  %2725 = vmatpush1.msra.mxu0 0.0
  %2726 = vmatprep.subr.mxu0 0.0
  %2727 = vmatpush1.msra.mxu0 0.0
  %2728 = vmatprep.subr.mxu0 0.0
  %2729 = vmatpush1.msra.mxu0 0.0
  %2730 = vmatprep.subr.mxu0 0.0
  %2731 = vmatpush1.msra.mxu0 0.0
  %2732 = vmatprep.subr.mxu0 0.0
  %2733 = vmatpush1.msra.mxu0 0.0
  %2734 = vmatprep.subr.mxu0 0.0
  %2735 = vmatpush1.msra.mxu0 0.0
  %2736 = vmatprep.subr.mxu0 0.0
  %2737 = vmatpush1.msra.mxu0 0.0
  %2738 = vmatprep.subr.mxu0 0.0
  %2739 = vmatpush1.msra.mxu0 0.0
  %2740 = vmatprep.subr.mxu0 0.0
  %2741 = vmatpush1.msra.mxu0 0.0
  %2742 = vmatprep.subr.mxu0 0.0
  %2743 = vmatpush1.msra.mxu0 0.0
  %2744 = vmatprep.subr.mxu0 0.0
  %2745 = vmatpush1.msra.mxu0 0.0
  %2746 = vmatprep.subr.mxu0 0.0
  %2747 = vmatpush1.msra.mxu0 0.0
  %2748 = vmatprep.subr.mxu0 0.0
  %2749 = vmatpush1.msra.mxu0 0.0
  %2750 = vmatprep.subr.mxu0 0.0
  %2751 = vmatpush1.msra.mxu0 0.0
  %2752 = vmatprep.subr.mxu0 0.0
  %2753 = vmatpush1.msra.mxu0 0.0
  %2754 = vmatprep.subr.mxu0 0.0
  %2755 = vmatpush1.msra.mxu0 0.0
  %2756 = vmatprep.subr.mxu0 0.0
  %2757 = vmatpush1.msra.mxu0 0.0
  %2758 = vmatprep.subr.mxu0 0.0
  %2759 = vmatpush1.msra.mxu0 0.0
  %2760 = vmatprep.subr.mxu0 0.0
  %2761 = vmatpush1.msra.mxu0 0.0
  %2762 = vmatprep.subr.mxu0 0.0
  %2763 = vmatpush1.msra.mxu0 0.0
  %2764 = vmatprep.subr.mxu0 0.0
  %2765 = vmatpush1.msra.mxu0 0.0
  %2766 = vmatprep.subr.mxu0 0.0
  %2767 = vmatpush1.msra.mxu0 0.0
  %2768 = vmatprep.mubr.f32.mxu0 0.0
  %2769 = vmatmul.mubr.f32.gmra.mrb[0].mxu0 %v597
  %v2770 = vpop.f32.mrb[0].mxu0
  %v2771 = vadd.f32 %v2600, %v2770
  %v2772 = vpop.f32.mrb[0].mxu0
  %v2773 = vadd.f32 %v2602, %v2772
  %2774 = vmatprep.mubr.f32.mxu0 0.0
  %2775 = vmatmul.mubr.f32.gmra.mrb[0].mxu0 %v599
  %v2776 = vpop.f32.mrb[0].mxu0
  %v2777 = vadd.f32 %v2606, %v2776
  %v2778 = vpop.f32.mrb[0].mxu0
  %v2779 = vadd.f32 %v2608, %v2778
  %2780 = vmatprep.mubr.f32.mxu0 0.0
  %2781 = vmatmul.mubr.f32.gmra.mrb[0].mxu0 %v871
  %v2782 = vpop.f32.mrb[0].mxu0
  %v2783 = vadd.f32 %v2612, %v2782
  %v2784 = vpop.f32.mrb[0].mxu0
  %v2785 = vadd.f32 %v2614, %v2784
  %2786 = vmatprep.mubr.f32.mxu0 0.0
  %2787 = vmatmul.mubr.f32.gmra.mrb[0].mxu0 %v873
  %v2788 = vpop.f32.mrb[0].mxu0
  %v2789 = vadd.f32 %v2618, %v2788
  %v2790 = vpop.f32.mrb[0].mxu0
  %v2791 = vadd.f32 %v2620, %v2790
  %2792 = vmatprep.mubr.f32.mxu0 0.0
  %2793 = vmatmul.mubr.f32.gmra.mrb[0].mxu0 %v1145
  %v2794 = vpop.f32.mrb[0].mxu0
  %v2795 = vadd.f32 %v2624, %v2794
  %v2796 = vpop.f32.mrb[0].mxu0
  %v2797 = vadd.f32 %v2626, %v2796
  %2798 = vmatprep.mubr.f32.mxu0 0.0
  %2799 = vmatmul.mubr.f32.gmra.mrb[0].mxu0 %v1147
  %v2800 = vpop.f32.mrb[0].mxu0
  %v2801 = vadd.f32 %v2630, %v2800
  %v2802 = vpop.f32.mrb[0].mxu0
  %v2803 = vadd.f32 %v2632, %v2802
  %2804 = vmatprep.mubr.f32.mxu0 0.0
  %2805 = vmatmul.mubr.f32.gmra.mrb[0].mxu0 %v1419
  %v2806 = vpop.f32.mrb[0].mxu0
  %v2807 = vadd.f32 %v2636, %v2806
  %v2808 = vpop.f32.mrb[0].mxu0
  %v2809 = vadd.f32 %v2638, %v2808
  %2810 = vmatprep.mubr.f32.mxu0 0.0
  %2811 = vmatmul.mubr.f32.gmra.mrb[0].mxu0 %v1421
  %v2812 = vpop.f32.mrb[0].mxu0
  %v2813 = vadd.f32 %v2642, %v2812
  %v2814 = vpop.f32.mrb[0].mxu0
  %v2815 = vadd.f32 %v2644, %v2814
  %2816 = vmatprep.mubr.f32.mxu0 0.0
  %2817 = vmatmul.mubr.f32.gmra.mrb[0].mxu0 %v1693
  %v2818 = vpop.f32.mrb[0].mxu0
  %v2819 = vadd.f32 %v2648, %v2818
  %v2820 = vpop.f32.mrb[0].mxu0
  %v2821 = vadd.f32 %v2650, %v2820
  %2822 = vmatprep.mubr.f32.mxu0 0.0
  %2823 = vmatmul.mubr.f32.gmra.mrb[0].mxu0 %v1695
  %v2824 = vpop.f32.mrb[0].mxu0
  %v2825 = vadd.f32 %v2654, %v2824
  %v2826 = vpop.f32.mrb[0].mxu0
  %v2827 = vadd.f32 %v2656, %v2826
  %2828 = vmatprep.mubr.f32.mxu0 0.0
  %2829 = vmatmul.mubr.f32.gmra.mrb[0].mxu0 %v1967
  %v2830 = vpop.f32.mrb[0].mxu0
  %v2831 = vadd.f32 %v2660, %v2830
  %v2832 = vpop.f32.mrb[0].mxu0
  %v2833 = vadd.f32 %v2662, %v2832
  %2834 = vmatprep.mubr.f32.mxu0 0.0
  %2835 = vmatmul.mubr.f32.gmra.mrb[0].mxu0 %v1969
  %v2836 = vpop.f32.mrb[0].mxu0
  %v2837 = vadd.f32 %v2666, %v2836
  %v2838 = vpop.f32.mrb[0].mxu0
  %v2839 = vadd.f32 %v2668, %v2838
  %2840 = vmatprep.mubr.f32.mxu0 0.0
  %2841 = vmatmul.mubr.f32.gmra.mrb[0].mxu0 %v2241
  %v2842 = vpop.f32.mrb[0].mxu0
  %v2843 = vadd.f32 %v2672, %v2842
  %v2844 = vpop.f32.mrb[0].mxu0
  %v2845 = vadd.f32 %v2674, %v2844
  %2846 = vmatprep.mubr.f32.mxu0 0.0
  %2847 = vmatmul.mubr.f32.gmra.mrb[0].mxu0 %v2243
  %v2848 = vpop.f32.mrb[0].mxu0
  %v2849 = vadd.f32 %v2678, %v2848
  %v2850 = vpop.f32.mrb[0].mxu0
  %v2851 = vadd.f32 %v2680, %v2850
  %2852 = vmatprep.mubr.f32.mxu0 0.0
  %2853 = vmatmul.mubr.f32.gmra.mrb[0].mxu0 %v2700
  %v2854 = vpop.f32.mrb[0].mxu0
  %v2855 = vadd.f32 %v2684, %v2854
  %v2856 = vpop.f32.mrb[0].mxu0
  %v2857 = vadd.f32 %v2686, %v2856
  %2858 = vmatprep.mubr.f32.mxu0 0.0
  %2859 = vmatmul.mubr.f32.gmra.mrb[0].mxu0 %v2702
  %v2860 = vpop.f32.mrb[0].mxu0
  %v2861 = vadd.f32 %v2690, %v2860
  %v2862 = vpop.f32.mrb[0].mxu0
  %v2863 = vadd.f32 %v2692, %v2862
  %2864 = vdwg.mxu0
  %v2865 = vld [vmem:[%s8] sm:$0x3]
  %v2867 = vlaneseq
  %v2868 = vshrl.u32 %v2867, 7
  %v2869 = vsub.s32 0, %v2868
  %v2870 = vrot.slane %v2865, %v2869
  %v2871 = vlaneseq
  %v2872 = vshrl.u32 %v2871, 7
  %v2873 = vsub.s32 1, %v2872
  %v2874 = vrot.slane %v2865, %v2873
  %v2877 = vadd.f32 %v2771, %v2870
  %v2878 = vadd.f32 %v2773, %v2874
  %v2879 = vadd.f32 %v2777, %v2870
  %v2880 = vadd.f32 %v2779, %v2874
  %v2881 = vadd.f32 %v2783, %v2870
  %v2882 = vadd.f32 %v2785, %v2874
  %v2883 = vadd.f32 %v2789, %v2870
  %v2884 = vadd.f32 %v2791, %v2874
  %v2885 = vadd.f32 %v2795, %v2870
  %v2886 = vadd.f32 %v2797, %v2874
  %v2887 = vadd.f32 %v2801, %v2870
  %v2888 = vadd.f32 %v2803, %v2874
  %v2889 = vadd.f32 %v2807, %v2870
  %v2890 = vadd.f32 %v2809, %v2874
  %v2891 = vadd.f32 %v2813, %v2870
  %v2892 = vadd.f32 %v2815, %v2874
  %v2893 = vadd.f32 %v2819, %v2870
  %v2894 = vadd.f32 %v2821, %v2874
  %v2895 = vadd.f32 %v2825, %v2870
  %v2896 = vadd.f32 %v2827, %v2874
  %v2897 = vadd.f32 %v2831, %v2870
  %v2898 = vadd.f32 %v2833, %v2874
  %v2899 = vadd.f32 %v2837, %v2870
  %v2900 = vadd.f32 %v2839, %v2874
  %v2901 = vadd.f32 %v2843, %v2870
  %v2902 = vadd.f32 %v2845, %v2874
  %v2903 = vadd.f32 %v2849, %v2870
  %v2904 = vadd.f32 %v2851, %v2874
  %v2905 = vadd.f32 %v2855, %v2870
  %v2906 = vadd.f32 %v2857, %v2874
  %v2907 = vadd.f32 %v2861, %v2870
  %v2908 = vadd.f32 %v2863, %v2874
  %2909 = vst [vmem:[#allocation2] sm:$0xff] %v2877
  %2910 = vst [vmem:[#allocation2 + $0x8] sm:$0xff] %v2878
  %2911 = vst [vmem:[#allocation2 + $0x10] sm:$0xff] %v2879
  %2912 = vst [vmem:[#allocation2 + $0x18] sm:$0xff] %v2880
  %2913 = vst [vmem:[#allocation2 + $0x20] sm:$0xff] %v2881
  %2914 = vst [vmem:[#allocation2 + $0x28] sm:$0xff] %v2882
  %2915 = vst [vmem:[#allocation2 + $0x30] sm:$0xff] %v2883
  %2916 = vst [vmem:[#allocation2 + $0x38] sm:$0xff] %v2884
  %2917 = vst [vmem:[#allocation2 + $0x40] sm:$0xff] %v2885
  %2918 = vst [vmem:[#allocation2 + $0x48] sm:$0xff] %v2886
  %2919 = vst [vmem:[#allocation2 + $0x50] sm:$0xff] %v2887
  %2920 = vst [vmem:[#allocation2 + $0x58] sm:$0xff] %v2888
  %2921 = vst [vmem:[#allocation2 + $0x60] sm:$0xff] %v2889
  %2922 = vst [vmem:[#allocation2 + $0x68] sm:$0xff] %v2890
  %2923 = vst [vmem:[#allocation2 + $0x70] sm:$0xff] %v2891
  %2924 = vst [vmem:[#allocation2 + $0x78] sm:$0xff] %v2892
  %2925 = vst [vmem:[#allocation2 + $0x80] sm:$0xff] %v2893
  %2926 = vst [vmem:[#allocation2 + $0x88] sm:$0xff] %v2894
  %2927 = vst [vmem:[#allocation2 + $0x90] sm:$0xff] %v2895
  %2928 = vst [vmem:[#allocation2 + $0x98] sm:$0xff] %v2896
  %2929 = vst [vmem:[#allocation2 + $0xa0] sm:$0xff] %v2897
  %2930 = vst [vmem:[#allocation2 + $0xa8] sm:$0xff] %v2898
  %2931 = vst [vmem:[#allocation2 + $0xb0] sm:$0xff] %v2899
  %2932 = vst [vmem:[#allocation2 + $0xb8] sm:$0xff] %v2900
  %2933 = vst [vmem:[#allocation2 + $0xc0] sm:$0xff] %v2901
  %2934 = vst [vmem:[#allocation2 + $0xc8] sm:$0xff] %v2902
  %2935 = vst [vmem:[#allocation2 + $0xd0] sm:$0xff] %v2903
  %2936 = vst [vmem:[#allocation2 + $0xd8] sm:$0xff] %v2904
  %2937 = vst [vmem:[#allocation2 + $0xe0] sm:$0xff] %v2905
  %2938 = vst [vmem:[#allocation2 + $0xe8] sm:$0xff] %v2906
  %2939 = vst [vmem:[#allocation2 + $0xf0] sm:$0xff] %v2907
  %2940 = vst [vmem:[#allocation2 + $0xf8] sm:$0xff] %v2908
  %v2941 = vld [vmem:[%s6] sm:$0xff]
  %v2942 = vld [vmem:[%s6 + $0x8] sm:$0xff]
  %v2943 = vld [vmem:[%s6 + $0x10] sm:$0xff]
  %v2944 = vld [vmem:[%s6 + $0x18] sm:$0xff]
  %v2945 = vld [vmem:[%s7] sm:$0xff]
  %v2946 = vld [vmem:[%s7 + $0x8] sm:$0xff]
  %v2947 = vld [vmem:[%s7 + $0x10] sm:$0xff]
  %v2948 = vld [vmem:[%s7 + $0x18] sm:$0xff]
  %v2949 = vld [vmem:[#allocation2] sm:$0xff]
  %v2950 = vld [vmem:[#allocation2 + $0x10] sm:$0xff]
  %2951 = vmatprep.subr.mxu0 0.0
  %2952 = vmatpush1.msra.mxu0 %v2941
  %2953 = vmatprep.subr.mxu0 0.0
  %2954 = vmatpush1.msra.mxu0 %v2942
  %2955 = vmatprep.subr.mxu0 0.0
  %2956 = vmatpush1.msra.mxu0 %v2943
  %2957 = vmatprep.subr.mxu0 0.0
  %2958 = vmatpush1.msra.mxu0 %v2944
  %2959 = vmatprep.subr.mxu0 0.0
  %2960 = vmatpush1.msra.mxu0 0.0
  %2961 = vmatprep.subr.mxu0 0.0
  %2962 = vmatpush1.msra.mxu0 0.0
  %2963 = vmatprep.subr.mxu0 0.0
  %2964 = vmatpush1.msra.mxu0 0.0
  %2965 = vmatprep.subr.mxu0 0.0
  %2966 = vmatpush1.msra.mxu0 0.0
  %2967 = vmatprep.subr.mxu0 0.0
  %2968 = vmatpush1.msra.mxu0 0.0
  %2969 = vmatprep.subr.mxu0 0.0
  %2970 = vmatpush1.msra.mxu0 0.0
  %2971 = vmatprep.subr.mxu0 0.0
  %2972 = vmatpush1.msra.mxu0 0.0
  %2973 = vmatprep.subr.mxu0 0.0
  %2974 = vmatpush1.msra.mxu0 0.0
  %2975 = vmatprep.subr.mxu0 0.0
  %2976 = vmatpush1.msra.mxu0 0.0
  %2977 = vmatprep.subr.mxu0 0.0
  %2978 = vmatpush1.msra.mxu0 0.0
  %2979 = vmatprep.subr.mxu0 0.0
  %2980 = vmatpush1.msra.mxu0 0.0
  %2981 = vmatprep.subr.mxu0 0.0
  %2982 = vmatpush1.msra.mxu0 0.0
  %2983 = vmatprep.subr.mxu0 0.0
  %2984 = vmatpush1.msra.mxu0 0.0
  %2985 = vmatprep.subr.mxu0 0.0
  %2986 = vmatpush1.msra.mxu0 0.0
  %2987 = vmatprep.subr.mxu0 0.0
  %2988 = vmatpush1.msra.mxu0 0.0
  %2989 = vmatprep.subr.mxu0 0.0
  %2990 = vmatpush1.msra.mxu0 0.0
  %2991 = vmatprep.subr.mxu0 0.0
  %2992 = vmatpush1.msra.mxu0 0.0
  %2993 = vmatprep.subr.mxu0 0.0
  %2994 = vmatpush1.msra.mxu0 0.0
  %2995 = vmatprep.subr.mxu0 0.0
  %2996 = vmatpush1.msra.mxu0 0.0
  %2997 = vmatprep.subr.mxu0 0.0
  %2998 = vmatpush1.msra.mxu0 0.0
  %2999 = vmatprep.subr.mxu0 0.0
  %3000 = vmatpush1.msra.mxu0 0.0
  %3001 = vmatprep.subr.mxu0 0.0
  %3002 = vmatpush1.msra.mxu0 0.0
  %3003 = vmatprep.subr.mxu0 0.0
  %3004 = vmatpush1.msra.mxu0 0.0
  %3005 = vmatprep.subr.mxu0 0.0
  %3006 = vmatpush1.msra.mxu0 0.0
  %3007 = vmatprep.subr.mxu0 0.0
  %3008 = vmatpush1.msra.mxu0 0.0
  %3009 = vmatprep.subr.mxu0 0.0
  %3010 = vmatpush1.msra.mxu0 0.0
  %3011 = vmatprep.subr.mxu0 0.0
  %3012 = vmatpush1.msra.mxu0 0.0
  %3013 = vmatprep.subr.mxu0 0.0
  %3014 = vmatpush1.msra.mxu0 0.0
  %3015 = vmatprep.mubr.f32.mxu0 0.0
  %3016 = vmatmul.mubr.f32.gmra.mrb[0].mxu0 %v335
  %v3017 = vpop.f32.mrb[0].mxu0
  %v3018 = vadd.f32 0.0, %v3017
  %v3019 = vpop.f32.mrb[0].mxu0
  %3020 = vmatprep.mubr.f32.mxu0 0.0
  %3021 = vmatmul.mubr.f32.gmra.mrb[0].mxu0 %v335
  %v3022 = vpop.f32.mrb[0].mxu0
  %v3023 = vadd.f32 0.0, %v3022
  %v3024 = vpop.f32.mrb[0].mxu0
  %3025 = vdwg.mxu0
  %v3026 = vadd.f32 %v2949, %v3018
  %v3027 = vadd.f32 %v2950, %v3023
  %v3028 = vld [vmem:[#allocation2 + $0xe8] sm:$0xff]
  %v3029 = vld [vmem:[#allocation2 + $0xf8] sm:$0xff]
  %3030 = vmatprep.subr.mxu0 0.0
  %3031 = vmatpush1.msra.mxu0 %v2945
  %3032 = vmatprep.subr.mxu0 0.0
  %3033 = vmatpush1.msra.mxu0 %v2946
  %3034 = vmatprep.subr.mxu0 0.0
  %3035 = vmatpush1.msra.mxu0 %v2947
  %3036 = vmatprep.subr.mxu0 0.0
  %3037 = vmatpush1.msra.mxu0 %v2948
  %3038 = vmatprep.subr.mxu0 0.0
  %3039 = vmatpush1.msra.mxu0 0.0
  %3040 = vmatprep.subr.mxu0 0.0
  %3041 = vmatpush1.msra.mxu0 0.0
  %3042 = vmatprep.subr.mxu0 0.0
  %3043 = vmatpush1.msra.mxu0 0.0
  %3044 = vmatprep.subr.mxu0 0.0
  %3045 = vmatpush1.msra.mxu0 0.0
  %3046 = vmatprep.subr.mxu0 0.0
  %3047 = vmatpush1.msra.mxu0 0.0
  %3048 = vmatprep.subr.mxu0 0.0
  %3049 = vmatpush1.msra.mxu0 0.0
  %3050 = vmatprep.subr.mxu0 0.0
  %3051 = vmatpush1.msra.mxu0 0.0
  %3052 = vmatprep.subr.mxu0 0.0
  %3053 = vmatpush1.msra.mxu0 0.0
  %3054 = vmatprep.subr.mxu0 0.0
  %3055 = vmatpush1.msra.mxu0 0.0
  %3056 = vmatprep.subr.mxu0 0.0
  %3057 = vmatpush1.msra.mxu0 0.0
  %3058 = vmatprep.subr.mxu0 0.0
  %3059 = vmatpush1.msra.mxu0 0.0
  %3060 = vmatprep.subr.mxu0 0.0
  %3061 = vmatpush1.msra.mxu0 0.0
  %3062 = vmatprep.subr.mxu0 0.0
  %3063 = vmatpush1.msra.mxu0 0.0
  %3064 = vmatprep.subr.mxu0 0.0
  %3065 = vmatpush1.msra.mxu0 0.0
  %3066 = vmatprep.subr.mxu0 0.0
  %3067 = vmatpush1.msra.mxu0 0.0
  %3068 = vmatprep.subr.mxu0 0.0
  %3069 = vmatpush1.msra.mxu0 0.0
  %3070 = vmatprep.subr.mxu0 0.0
  %3071 = vmatpush1.msra.mxu0 0.0
  %3072 = vmatprep.subr.mxu0 0.0
  %3073 = vmatpush1.msra.mxu0 0.0
  %3074 = vmatprep.subr.mxu0 0.0
  %3075 = vmatpush1.msra.mxu0 0.0
  %3076 = vmatprep.subr.mxu0 0.0
  %3077 = vmatpush1.msra.mxu0 0.0
  %3078 = vmatprep.subr.mxu0 0.0
  %3079 = vmatpush1.msra.mxu0 0.0
  %3080 = vmatprep.subr.mxu0 0.0
  %3081 = vmatpush1.msra.mxu0 0.0
  %3082 = vmatprep.subr.mxu0 0.0
  %3083 = vmatpush1.msra.mxu0 0.0
  %3084 = vmatprep.subr.mxu0 0.0
  %3085 = vmatpush1.msra.mxu0 0.0
  %3086 = vmatprep.subr.mxu0 0.0
  %3087 = vmatpush1.msra.mxu0 0.0
  %3088 = vmatprep.subr.mxu0 0.0
  %3089 = vmatpush1.msra.mxu0 0.0
  %3090 = vmatprep.subr.mxu0 0.0
  %3091 = vmatpush1.msra.mxu0 0.0
  %3092 = vmatprep.subr.mxu0 0.0
  %3093 = vmatpush1.msra.mxu0 0.0
  %3094 = vmatprep.mubr.f32.mxu0 0.0
  %3095 = vmatmul.mubr.f32.gmra.mrb[0].mxu0 %v335
  %v3096 = vpop.f32.mrb[0].mxu0
  %v3097 = vadd.f32 0.0, %v3096
  %v3098 = vpop.f32.mrb[0].mxu0
  %3099 = vmatprep.mubr.f32.mxu0 0.0
  %3100 = vmatmul.mubr.f32.gmra.mrb[0].mxu0 %v335
  %v3101 = vpop.f32.mrb[0].mxu0
  %v3102 = vadd.f32 0.0, %v3101
  %v3103 = vpop.f32.mrb[0].mxu0
  %3104 = vdwg.mxu0
  %v3105 = vadd.f32 %v3028, %v3097
  %v3106 = vadd.f32 %v3029, %v3102
  %v3107 = vxor.u32 %v3026, 2147483648
  %v3108 = vxor.u32 %v3027, 2147483648
  %v3109 = vmul.f32 %v3107, 1.442695
  %v3110 = vpow.pop %v3109
  %v3111 = vmul.f32 %v3108, 1.442695
  %v3112 = vpow.pop %v3111
  %v3113 = vadd.f32 %v3110, 1.0
  %v3114 = vadd.f32 %v3112, 1.0
  %v3115 = vrcp.pop %v3113
  %v3116 = vmul.f32 1.0, %v3115
  %v3117 = vrcp.pop %v3114
  %v3118 = vmul.f32 1.0, %v3117
  %v3119 = vtanh.pop %v3026
  %v3120 = vtanh.pop %v3027
  %v3121 = vmul.f32 %v3116, 0.0
  %v3122 = vmul.f32 %v3118, 0.0
  %3125 = vrot.lane.b32.xlu0 %v3119, 64
  %v3126 = vpop.permute.xlu0 %3125
  %3127 = vrot.lane.b32.xlu0 %v3120, 64
  %v3128 = vpop.permute.xlu0 %3127
  %v3131 = vmul.f32 %v3116, %v3126
  %v3132 = vmul.f32 %v3118, %v3128
  %3135 = vrot.lane.b32.xlu0 %v3131, 32
  %v3136 = vpop.permute.xlu0 %3135
  %3137 = vrot.lane.b32.xlu0 %v3132, 32
  %v3138 = vpop.permute.xlu0 %3137
  %v3141 = vadd.f32 %v3121, %v3136
  %v3142 = vadd.f32 %v3122, %v3138
  %v3143 = vtanh.pop %v3141
  %v3144 = vtanh.pop %v3142
  %3147 = vrot.lane.b32.xlu0 %v3143, 64
  %v3148 = vpop.permute.xlu0 %3147
  %3149 = vrot.lane.b32.xlu0 %v3144, 64
  %v3150 = vpop.permute.xlu0 %3149
  %v3153 = vmul.f32 %v3116, %v3148
  %v3154 = vmul.f32 %v3118, %v3150
  %v3155 = vxor.u32 %v3105, 2147483648
  %v3156 = vxor.u32 %v3106, 2147483648
  %v3157 = vmul.f32 %v3155, 1.442695
  %v3158 = vpow.pop %v3157
  %v3159 = vmul.f32 %v3156, 1.442695
  %v3160 = vpow.pop %v3159
  %v3161 = vadd.f32 %v3158, 1.0
  %v3162 = vadd.f32 %v3160, 1.0
  %v3163 = vrcp.pop %v3161
  %v3164 = vmul.f32 1.0, %v3163
  %v3165 = vrcp.pop %v3162
  %v3166 = vmul.f32 1.0, %v3165
  %v3167 = vtanh.pop %v3105
  %v3168 = vtanh.pop %v3106
  %v3169 = vmul.f32 %v3164, 0.0
  %v3170 = vmul.f32 %v3166, 0.0
  %3173 = vrot.lane.b32.xlu0 %v3167, 64
  %v3174 = vpop.permute.xlu0 %3173
  %3175 = vrot.lane.b32.xlu0 %v3168, 64
  %v3176 = vpop.permute.xlu0 %3175
  %v3179 = vmul.f32 %v3164, %v3174
  %v3180 = vmul.f32 %v3166, %v3176
  %3183 = vrot.lane.b32.xlu0 %v3179, 32
  %v3184 = vpop.permute.xlu0 %3183
  %3185 = vrot.lane.b32.xlu0 %v3180, 32
  %v3186 = vpop.permute.xlu0 %3185
  %v3189 = vadd.f32 %v3169, %v3184
  %v3190 = vadd.f32 %v3170, %v3186
  %v3191 = vtanh.pop %v3189
  %v3192 = vtanh.pop %v3190
  %3195 = vrot.lane.b32.xlu0 %v3191, 64
  %v3196 = vpop.permute.xlu0 %3195
  %3197 = vrot.lane.b32.xlu0 %v3192, 64
  %v3198 = vpop.permute.xlu0 %3197
  %v3201 = vmul.f32 %v3164, %v3196
  %v3202 = vmul.f32 %v3166, %v3198
  %v3203 = vld [vmem:[#allocation2 + $0x20] sm:$0xff]
  %v3204 = vld [vmem:[#allocation2 + $0x30] sm:$0xff]
  %3207 = vrot.lane.b32.xlu0 %v3153, 32
  %v3208 = vpop.permute.xlu0 %3207
  %3209 = vrot.lane.b32.xlu0 %v3154, 32
  %v3210 = vpop.permute.xlu0 %3209
  %v3211 = vsel %vm82, %v3208, 0
  %v3213 = vsel %vm82, %v3210, 0
  %3215 = vmatprep.subr.mxu0 0.0
  %3216 = vmatpush1.msra.mxu0 %v2941
  %3217 = vmatprep.subr.mxu0 0.0
  %3218 = vmatpush1.msra.mxu0 %v2942
  %3219 = vmatprep.subr.mxu0 0.0
  %3220 = vmatpush1.msra.mxu0 %v2943
  %3221 = vmatprep.subr.mxu0 0.0
  %3222 = vmatpush1.msra.mxu0 %v2944
  %3223 = vmatprep.subr.mxu0 0.0
  %3224 = vmatpush1.msra.mxu0 0.0
  %3225 = vmatprep.subr.mxu0 0.0
  %3226 = vmatpush1.msra.mxu0 0.0
  %3227 = vmatprep.subr.mxu0 0.0
  %3228 = vmatpush1.msra.mxu0 0.0
  %3229 = vmatprep.subr.mxu0 0.0
  %3230 = vmatpush1.msra.mxu0 0.0
  %3231 = vmatprep.subr.mxu0 0.0
  %3232 = vmatpush1.msra.mxu0 0.0
  %3233 = vmatprep.subr.mxu0 0.0
  %3234 = vmatpush1.msra.mxu0 0.0
  %3235 = vmatprep.subr.mxu0 0.0
  %3236 = vmatpush1.msra.mxu0 0.0
  %3237 = vmatprep.subr.mxu0 0.0
  %3238 = vmatpush1.msra.mxu0 0.0
  %3239 = vmatprep.subr.mxu0 0.0
  %3240 = vmatpush1.msra.mxu0 0.0
  %3241 = vmatprep.subr.mxu0 0.0
  %3242 = vmatpush1.msra.mxu0 0.0
  %3243 = vmatprep.subr.mxu0 0.0
  %3244 = vmatpush1.msra.mxu0 0.0
  %3245 = vmatprep.subr.mxu0 0.0
  %3246 = vmatpush1.msra.mxu0 0.0
  %3247 = vmatprep.subr.mxu0 0.0
  %3248 = vmatpush1.msra.mxu0 0.0
  %3249 = vmatprep.subr.mxu0 0.0
  %3250 = vmatpush1.msra.mxu0 0.0
  %3251 = vmatprep.subr.mxu0 0.0
  %3252 = vmatpush1.msra.mxu0 0.0
  %3253 = vmatprep.subr.mxu0 0.0
  %3254 = vmatpush1.msra.mxu0 0.0
  %3255 = vmatprep.subr.mxu0 0.0
  %3256 = vmatpush1.msra.mxu0 0.0
  %3257 = vmatprep.subr.mxu0 0.0
  %3258 = vmatpush1.msra.mxu0 0.0
  %3259 = vmatprep.subr.mxu0 0.0
  %3260 = vmatpush1.msra.mxu0 0.0
  %3261 = vmatprep.subr.mxu0 0.0
  %3262 = vmatpush1.msra.mxu0 0.0
  %3263 = vmatprep.subr.mxu0 0.0
  %3264 = vmatpush1.msra.mxu0 0.0
  %3265 = vmatprep.subr.mxu0 0.0
  %3266 = vmatpush1.msra.mxu0 0.0
  %3267 = vmatprep.subr.mxu0 0.0
  %3268 = vmatpush1.msra.mxu0 0.0
  %3269 = vmatprep.subr.mxu0 0.0
  %3270 = vmatpush1.msra.mxu0 0.0
  %3271 = vmatprep.subr.mxu0 0.0
  %3272 = vmatpush1.msra.mxu0 0.0
  %3273 = vmatprep.subr.mxu0 0.0
  %3274 = vmatpush1.msra.mxu0 0.0
  %3275 = vmatprep.subr.mxu0 0.0
  %3276 = vmatpush1.msra.mxu0 0.0
  %3277 = vmatprep.subr.mxu0 0.0
  %3278 = vmatpush1.msra.mxu0 0.0
  %3279 = vmatprep.mubr.f32.mxu0 0.0
  %3280 = vmatmul.mubr.f32.gmra.mrb[0].mxu0 %v3211
  %v3281 = vpop.f32.mrb[0].mxu0
  %v3282 = vadd.f32 0.0, %v3281
  %v3283 = vpop.f32.mrb[0].mxu0
  %3284 = vmatprep.mubr.f32.mxu0 0.0
  %3285 = vmatmul.mubr.f32.gmra.mrb[0].mxu0 %v3213
  %v3286 = vpop.f32.mrb[0].mxu0
  %v3287 = vadd.f32 0.0, %v3286
  %v3288 = vpop.f32.mrb[0].mxu0
  %3289 = vdwg.mxu0
  %v3290 = vadd.f32 %v3203, %v3282
  %v3291 = vadd.f32 %v3204, %v3287
  %v3292 = vld [vmem:[#allocation2 + $0xc8] sm:$0xff]
  %v3293 = vld [vmem:[#allocation2 + $0xd8] sm:$0xff]
  %3296 = vrot.lane.b32.xlu0 %v3201, 32
  %v3297 = vpop.permute.xlu0 %3296
  %3298 = vrot.lane.b32.xlu0 %v3202, 32
  %v3299 = vpop.permute.xlu0 %3298
  %v3300 = vsel %vm82, %v3297, 0
  %v3302 = vsel %vm82, %v3299, 0
  %3304 = vmatprep.subr.mxu0 0.0
  %3305 = vmatpush1.msra.mxu0 %v2945
  %3306 = vmatprep.subr.mxu0 0.0
  %3307 = vmatpush1.msra.mxu0 %v2946
  %3308 = vmatprep.subr.mxu0 0.0
  %3309 = vmatpush1.msra.mxu0 %v2947
  %3310 = vmatprep.subr.mxu0 0.0
  %3311 = vmatpush1.msra.mxu0 %v2948
  %3312 = vmatprep.subr.mxu0 0.0
  %3313 = vmatpush1.msra.mxu0 0.0
  %3314 = vmatprep.subr.mxu0 0.0
  %3315 = vmatpush1.msra.mxu0 0.0
  %3316 = vmatprep.subr.mxu0 0.0
  %3317 = vmatpush1.msra.mxu0 0.0
  %3318 = vmatprep.subr.mxu0 0.0
  %3319 = vmatpush1.msra.mxu0 0.0
  %3320 = vmatprep.subr.mxu0 0.0
  %3321 = vmatpush1.msra.mxu0 0.0
  %3322 = vmatprep.subr.mxu0 0.0
  %3323 = vmatpush1.msra.mxu0 0.0
  %3324 = vmatprep.subr.mxu0 0.0
  %3325 = vmatpush1.msra.mxu0 0.0
  %3326 = vmatprep.subr.mxu0 0.0
  %3327 = vmatpush1.msra.mxu0 0.0
  %3328 = vmatprep.subr.mxu0 0.0
  %3329 = vmatpush1.msra.mxu0 0.0
  %3330 = vmatprep.subr.mxu0 0.0
  %3331 = vmatpush1.msra.mxu0 0.0
  %3332 = vmatprep.subr.mxu0 0.0
  %3333 = vmatpush1.msra.mxu0 0.0
  %3334 = vmatprep.subr.mxu0 0.0
  %3335 = vmatpush1.msra.mxu0 0.0
  %3336 = vmatprep.subr.mxu0 0.0
  %3337 = vmatpush1.msra.mxu0 0.0
  %3338 = vmatprep.subr.mxu0 0.0
  %3339 = vmatpush1.msra.mxu0 0.0
  %3340 = vmatprep.subr.mxu0 0.0
  %3341 = vmatpush1.msra.mxu0 0.0
  %3342 = vmatprep.subr.mxu0 0.0
  %3343 = vmatpush1.msra.mxu0 0.0
  %3344 = vmatprep.subr.mxu0 0.0
  %3345 = vmatpush1.msra.mxu0 0.0
  %3346 = vmatprep.subr.mxu0 0.0
  %3347 = vmatpush1.msra.mxu0 0.0
  %3348 = vmatprep.subr.mxu0 0.0
  %3349 = vmatpush1.msra.mxu0 0.0
  %3350 = vmatprep.subr.mxu0 0.0
  %3351 = vmatpush1.msra.mxu0 0.0
  %3352 = vmatprep.subr.mxu0 0.0
  %3353 = vmatpush1.msra.mxu0 0.0
  %3354 = vmatprep.subr.mxu0 0.0
  %3355 = vmatpush1.msra.mxu0 0.0
  %3356 = vmatprep.subr.mxu0 0.0
  %3357 = vmatpush1.msra.mxu0 0.0
  %3358 = vmatprep.subr.mxu0 0.0
  %3359 = vmatpush1.msra.mxu0 0.0
  %3360 = vmatprep.subr.mxu0 0.0
  %3361 = vmatpush1.msra.mxu0 0.0
  %3362 = vmatprep.subr.mxu0 0.0
  %3363 = vmatpush1.msra.mxu0 0.0
  %3364 = vmatprep.subr.mxu0 0.0
  %3365 = vmatpush1.msra.mxu0 0.0
  %3366 = vmatprep.subr.mxu0 0.0
  %3367 = vmatpush1.msra.mxu0 0.0
  %3368 = vmatprep.mubr.f32.mxu0 0.0
  %3369 = vmatmul.mubr.f32.gmra.mrb[0].mxu0 %v3300
  %v3370 = vpop.f32.mrb[0].mxu0
  %v3371 = vadd.f32 0.0, %v3370
  %v3372 = vpop.f32.mrb[0].mxu0
  %3373 = vmatprep.mubr.f32.mxu0 0.0
  %3374 = vmatmul.mubr.f32.gmra.mrb[0].mxu0 %v3302
  %v3375 = vpop.f32.mrb[0].mxu0
  %v3376 = vadd.f32 0.0, %v3375
  %v3377 = vpop.f32.mrb[0].mxu0
  %3378 = vdwg.mxu0
  %v3379 = vadd.f32 %v3292, %v3371
  %v3380 = vadd.f32 %v3293, %v3376
  %v3381 = vxor.u32 %v3290, 2147483648
  %v3382 = vxor.u32 %v3291, 2147483648
  %v3383 = vmul.f32 %v3381, 1.442695
  %v3384 = vpow.pop %v3383
  %v3385 = vmul.f32 %v3382, 1.442695
  %v3386 = vpow.pop %v3385
  %v3387 = vadd.f32 %v3384, 1.0
  %v3388 = vadd.f32 %v3386, 1.0
  %v3389 = vrcp.pop %v3387
  %v3390 = vmul.f32 1.0, %v3389
  %v3391 = vrcp.pop %v3388
  %v3392 = vmul.f32 1.0, %v3391
  %v3393 = vtanh.pop %v3290
  %v3394 = vtanh.pop %v3291
  %v3395 = vmul.f32 %v3390, %v3141
  %v3396 = vmul.f32 %v3392, %v3142
  %3399 = vrot.lane.b32.xlu0 %v3393, 64
  %v3400 = vpop.permute.xlu0 %3399
  %3401 = vrot.lane.b32.xlu0 %v3394, 64
  %v3402 = vpop.permute.xlu0 %3401
  %v3405 = vmul.f32 %v3390, %v3400
  %v3406 = vmul.f32 %v3392, %v3402
  %3409 = vrot.lane.b32.xlu0 %v3405, 32
  %v3410 = vpop.permute.xlu0 %3409
  %3411 = vrot.lane.b32.xlu0 %v3406, 32
  %v3412 = vpop.permute.xlu0 %3411
  %v3415 = vadd.f32 %v3395, %v3410
  %v3416 = vadd.f32 %v3396, %v3412
  %v3417 = vtanh.pop %v3415
  %v3418 = vtanh.pop %v3416
  %3421 = vrot.lane.b32.xlu0 %v3417, 64
  %v3422 = vpop.permute.xlu0 %3421
  %3423 = vrot.lane.b32.xlu0 %v3418, 64
  %v3424 = vpop.permute.xlu0 %3423
  %v3427 = vmul.f32 %v3390, %v3422
  %v3428 = vmul.f32 %v3392, %v3424
  %v3429 = vxor.u32 %v3379, 2147483648
  %v3430 = vxor.u32 %v3380, 2147483648
  %v3431 = vmul.f32 %v3429, 1.442695
  %v3432 = vpow.pop %v3431
  %v3433 = vmul.f32 %v3430, 1.442695
  %v3434 = vpow.pop %v3433
  %v3435 = vadd.f32 %v3432, 1.0
  %v3436 = vadd.f32 %v3434, 1.0
  %v3437 = vrcp.pop %v3435
  %v3438 = vmul.f32 1.0, %v3437
  %v3439 = vrcp.pop %v3436
  %v3440 = vmul.f32 1.0, %v3439
  %v3441 = vtanh.pop %v3379
  %v3442 = vtanh.pop %v3380
  %v3443 = vmul.f32 %v3438, %v3189
  %v3444 = vmul.f32 %v3440, %v3190
  %3447 = vrot.lane.b32.xlu0 %v3441, 64
  %v3448 = vpop.permute.xlu0 %3447
  %3449 = vrot.lane.b32.xlu0 %v3442, 64
  %v3450 = vpop.permute.xlu0 %3449
  %v3453 = vmul.f32 %v3438, %v3448
  %v3454 = vmul.f32 %v3440, %v3450
  %3457 = vrot.lane.b32.xlu0 %v3453, 32
  %v3458 = vpop.permute.xlu0 %3457
  %3459 = vrot.lane.b32.xlu0 %v3454, 32
  %v3460 = vpop.permute.xlu0 %3459
  %v3463 = vadd.f32 %v3443, %v3458
  %v3464 = vadd.f32 %v3444, %v3460
  %v3465 = vtanh.pop %v3463
  %v3466 = vtanh.pop %v3464
  %3469 = vrot.lane.b32.xlu0 %v3465, 64
  %v3470 = vpop.permute.xlu0 %3469
  %3471 = vrot.lane.b32.xlu0 %v3466, 64
  %v3472 = vpop.permute.xlu0 %3471
  %v3475 = vmul.f32 %v3438, %v3470
  %v3476 = vmul.f32 %v3440, %v3472
  %v3477 = vld [vmem:[#allocation2 + $0x40] sm:$0xff]
  %v3478 = vld [vmem:[#allocation2 + $0x50] sm:$0xff]
  %3481 = vrot.lane.b32.xlu0 %v3427, 32
  %v3482 = vpop.permute.xlu0 %3481
  %3483 = vrot.lane.b32.xlu0 %v3428, 32
  %v3484 = vpop.permute.xlu0 %3483
  %v3485 = vsel %vm82, %v3482, 0
  %v3487 = vsel %vm82, %v3484, 0
  %3489 = vmatprep.subr.mxu0 0.0
  %3490 = vmatpush1.msra.mxu0 %v2941
  %3491 = vmatprep.subr.mxu0 0.0
  %3492 = vmatpush1.msra.mxu0 %v2942
  %3493 = vmatprep.subr.mxu0 0.0
  %3494 = vmatpush1.msra.mxu0 %v2943
  %3495 = vmatprep.subr.mxu0 0.0
  %3496 = vmatpush1.msra.mxu0 %v2944
  %3497 = vmatprep.subr.mxu0 0.0
  %3498 = vmatpush1.msra.mxu0 0.0
  %3499 = vmatprep.subr.mxu0 0.0
  %3500 = vmatpush1.msra.mxu0 0.0
  %3501 = vmatprep.subr.mxu0 0.0
  %3502 = vmatpush1.msra.mxu0 0.0
  %3503 = vmatprep.subr.mxu0 0.0
  %3504 = vmatpush1.msra.mxu0 0.0
  %3505 = vmatprep.subr.mxu0 0.0
  %3506 = vmatpush1.msra.mxu0 0.0
  %3507 = vmatprep.subr.mxu0 0.0
  %3508 = vmatpush1.msra.mxu0 0.0
  %3509 = vmatprep.subr.mxu0 0.0
  %3510 = vmatpush1.msra.mxu0 0.0
  %3511 = vmatprep.subr.mxu0 0.0
  %3512 = vmatpush1.msra.mxu0 0.0
  %3513 = vmatprep.subr.mxu0 0.0
  %3514 = vmatpush1.msra.mxu0 0.0
  %3515 = vmatprep.subr.mxu0 0.0
  %3516 = vmatpush1.msra.mxu0 0.0
  %3517 = vmatprep.subr.mxu0 0.0
  %3518 = vmatpush1.msra.mxu0 0.0
  %3519 = vmatprep.subr.mxu0 0.0
  %3520 = vmatpush1.msra.mxu0 0.0
  %3521 = vmatprep.subr.mxu0 0.0
  %3522 = vmatpush1.msra.mxu0 0.0
  %3523 = vmatprep.subr.mxu0 0.0
  %3524 = vmatpush1.msra.mxu0 0.0
  %3525 = vmatprep.subr.mxu0 0.0
  %3526 = vmatpush1.msra.mxu0 0.0
  %3527 = vmatprep.subr.mxu0 0.0
  %3528 = vmatpush1.msra.mxu0 0.0
  %3529 = vmatprep.subr.mxu0 0.0
  %3530 = vmatpush1.msra.mxu0 0.0
  %3531 = vmatprep.subr.mxu0 0.0
  %3532 = vmatpush1.msra.mxu0 0.0
  %3533 = vmatprep.subr.mxu0 0.0
  %3534 = vmatpush1.msra.mxu0 0.0
  %3535 = vmatprep.subr.mxu0 0.0
  %3536 = vmatpush1.msra.mxu0 0.0
  %3537 = vmatprep.subr.mxu0 0.0
  %3538 = vmatpush1.msra.mxu0 0.0
  %3539 = vmatprep.subr.mxu0 0.0
  %3540 = vmatpush1.msra.mxu0 0.0
  %3541 = vmatprep.subr.mxu0 0.0
  %3542 = vmatpush1.msra.mxu0 0.0
  %3543 = vmatprep.subr.mxu0 0.0
  %3544 = vmatpush1.msra.mxu0 0.0
  %3545 = vmatprep.subr.mxu0 0.0
  %3546 = vmatpush1.msra.mxu0 0.0
  %3547 = vmatprep.subr.mxu0 0.0
  %3548 = vmatpush1.msra.mxu0 0.0
  %3549 = vmatprep.subr.mxu0 0.0
  %3550 = vmatpush1.msra.mxu0 0.0
  %3551 = vmatprep.subr.mxu0 0.0
  %3552 = vmatpush1.msra.mxu0 0.0
  %3553 = vmatprep.mubr.f32.mxu0 0.0
  %3554 = vmatmul.mubr.f32.gmra.mrb[0].mxu0 %v3485
  %v3555 = vpop.f32.mrb[0].mxu0
  %v3556 = vadd.f32 0.0, %v3555
  %v3557 = vpop.f32.mrb[0].mxu0
  %3558 = vmatprep.mubr.f32.mxu0 0.0
  %3559 = vmatmul.mubr.f32.gmra.mrb[0].mxu0 %v3487
  %v3560 = vpop.f32.mrb[0].mxu0
  %v3561 = vadd.f32 0.0, %v3560
  %v3562 = vpop.f32.mrb[0].mxu0
  %3563 = vdwg.mxu0
  %v3564 = vadd.f32 %v3477, %v3556
  %v3565 = vadd.f32 %v3478, %v3561
  %v3566 = vld [vmem:[#allocation2 + $0xa8] sm:$0xff]
  %v3567 = vld [vmem:[#allocation2 + $0xb8] sm:$0xff]
  %3570 = vrot.lane.b32.xlu0 %v3475, 32
  %v3571 = vpop.permute.xlu0 %3570
  %3572 = vrot.lane.b32.xlu0 %v3476, 32
  %v3573 = vpop.permute.xlu0 %3572
  %v3574 = vsel %vm82, %v3571, 0
  %v3576 = vsel %vm82, %v3573, 0
  %3578 = vmatprep.subr.mxu0 0.0
  %3579 = vmatpush1.msra.mxu0 %v2945
  %3580 = vmatprep.subr.mxu0 0.0
  %3581 = vmatpush1.msra.mxu0 %v2946
  %3582 = vmatprep.subr.mxu0 0.0
  %3583 = vmatpush1.msra.mxu0 %v2947
  %3584 = vmatprep.subr.mxu0 0.0
  %3585 = vmatpush1.msra.mxu0 %v2948
  %3586 = vmatprep.subr.mxu0 0.0
  %3587 = vmatpush1.msra.mxu0 0.0
  %3588 = vmatprep.subr.mxu0 0.0
  %3589 = vmatpush1.msra.mxu0 0.0
  %3590 = vmatprep.subr.mxu0 0.0
  %3591 = vmatpush1.msra.mxu0 0.0
  %3592 = vmatprep.subr.mxu0 0.0
  %3593 = vmatpush1.msra.mxu0 0.0
  %3594 = vmatprep.subr.mxu0 0.0
  %3595 = vmatpush1.msra.mxu0 0.0
  %3596 = vmatprep.subr.mxu0 0.0
  %3597 = vmatpush1.msra.mxu0 0.0
  %3598 = vmatprep.subr.mxu0 0.0
  %3599 = vmatpush1.msra.mxu0 0.0
  %3600 = vmatprep.subr.mxu0 0.0
  %3601 = vmatpush1.msra.mxu0 0.0
  %3602 = vmatprep.subr.mxu0 0.0
  %3603 = vmatpush1.msra.mxu0 0.0
  %3604 = vmatprep.subr.mxu0 0.0
  %3605 = vmatpush1.msra.mxu0 0.0
  %3606 = vmatprep.subr.mxu0 0.0
  %3607 = vmatpush1.msra.mxu0 0.0
  %3608 = vmatprep.subr.mxu0 0.0
  %3609 = vmatpush1.msra.mxu0 0.0
  %3610 = vmatprep.subr.mxu0 0.0
  %3611 = vmatpush1.msra.mxu0 0.0
  %3612 = vmatprep.subr.mxu0 0.0
  %3613 = vmatpush1.msra.mxu0 0.0
  %3614 = vmatprep.subr.mxu0 0.0
  %3615 = vmatpush1.msra.mxu0 0.0
  %3616 = vmatprep.subr.mxu0 0.0
  %3617 = vmatpush1.msra.mxu0 0.0
  %3618 = vmatprep.subr.mxu0 0.0
  %3619 = vmatpush1.msra.mxu0 0.0
  %3620 = vmatprep.subr.mxu0 0.0
  %3621 = vmatpush1.msra.mxu0 0.0
  %3622 = vmatprep.subr.mxu0 0.0
  %3623 = vmatpush1.msra.mxu0 0.0
  %3624 = vmatprep.subr.mxu0 0.0
  %3625 = vmatpush1.msra.mxu0 0.0
  %3626 = vmatprep.subr.mxu0 0.0
  %3627 = vmatpush1.msra.mxu0 0.0
  %3628 = vmatprep.subr.mxu0 0.0
  %3629 = vmatpush1.msra.mxu0 0.0
  %3630 = vmatprep.subr.mxu0 0.0
  %3631 = vmatpush1.msra.mxu0 0.0
  %3632 = vmatprep.subr.mxu0 0.0
  %3633 = vmatpush1.msra.mxu0 0.0
  %3634 = vmatprep.subr.mxu0 0.0
  %3635 = vmatpush1.msra.mxu0 0.0
  %3636 = vmatprep.subr.mxu0 0.0
  %3637 = vmatpush1.msra.mxu0 0.0
  %3638 = vmatprep.subr.mxu0 0.0
  %3639 = vmatpush1.msra.mxu0 0.0
  %3640 = vmatprep.subr.mxu0 0.0
  %3641 = vmatpush1.msra.mxu0 0.0
  %3642 = vmatprep.mubr.f32.mxu0 0.0
  %3643 = vmatmul.mubr.f32.gmra.mrb[0].mxu0 %v3574
  %v3644 = vpop.f32.mrb[0].mxu0
  %v3645 = vadd.f32 0.0, %v3644
  %v3646 = vpop.f32.mrb[0].mxu0
  %3647 = vmatprep.mubr.f32.mxu0 0.0
  %3648 = vmatmul.mubr.f32.gmra.mrb[0].mxu0 %v3576
  %v3649 = vpop.f32.mrb[0].mxu0
  %v3650 = vadd.f32 0.0, %v3649
  %v3651 = vpop.f32.mrb[0].mxu0
  %3652 = vdwg.mxu0
  %v3653 = vadd.f32 %v3566, %v3645
  %v3654 = vadd.f32 %v3567, %v3650
  %v3655 = vxor.u32 %v3564, 2147483648
  %v3656 = vxor.u32 %v3565, 2147483648
  %v3657 = vmul.f32 %v3655, 1.442695
  %v3658 = vpow.pop %v3657
  %v3659 = vmul.f32 %v3656, 1.442695
  %v3660 = vpow.pop %v3659
  %v3661 = vadd.f32 %v3658, 1.0
  %v3662 = vadd.f32 %v3660, 1.0
  %v3663 = vrcp.pop %v3661
  %v3664 = vmul.f32 1.0, %v3663
  %v3665 = vrcp.pop %v3662
  %v3666 = vmul.f32 1.0, %v3665
  %v3667 = vtanh.pop %v3564
  %v3668 = vtanh.pop %v3565
  %v3669 = vmul.f32 %v3664, %v3415
  %v3670 = vmul.f32 %v3666, %v3416
  %3673 = vrot.lane.b32.xlu0 %v3667, 64
  %v3674 = vpop.permute.xlu0 %3673
  %3675 = vrot.lane.b32.xlu0 %v3668, 64
  %v3676 = vpop.permute.xlu0 %3675
  %v3679 = vmul.f32 %v3664, %v3674
  %v3680 = vmul.f32 %v3666, %v3676
  %3683 = vrot.lane.b32.xlu0 %v3679, 32
  %v3684 = vpop.permute.xlu0 %3683
  %3685 = vrot.lane.b32.xlu0 %v3680, 32
  %v3686 = vpop.permute.xlu0 %3685
  %v3689 = vadd.f32 %v3669, %v3684
  %v3690 = vadd.f32 %v3670, %v3686
  %v3691 = vtanh.pop %v3689
  %v3692 = vtanh.pop %v3690
  %3695 = vrot.lane.b32.xlu0 %v3691, 64
  %v3696 = vpop.permute.xlu0 %3695
  %3697 = vrot.lane.b32.xlu0 %v3692, 64
  %v3698 = vpop.permute.xlu0 %3697
  %v3701 = vmul.f32 %v3664, %v3696
  %v3702 = vmul.f32 %v3666, %v3698
  %v3703 = vxor.u32 %v3653, 2147483648
  %v3704 = vxor.u32 %v3654, 2147483648
  %v3705 = vmul.f32 %v3703, 1.442695
  %v3706 = vpow.pop %v3705
  %v3707 = vmul.f32 %v3704, 1.442695
  %v3708 = vpow.pop %v3707
  %v3709 = vadd.f32 %v3706, 1.0
  %v3710 = vadd.f32 %v3708, 1.0
  %v3711 = vrcp.pop %v3709
  %v3712 = vmul.f32 1.0, %v3711
  %v3713 = vrcp.pop %v3710
  %v3714 = vmul.f32 1.0, %v3713
  %v3715 = vtanh.pop %v3653
  %v3716 = vtanh.pop %v3654
  %v3717 = vmul.f32 %v3712, %v3463
  %v3718 = vmul.f32 %v3714, %v3464
  %3721 = vrot.lane.b32.xlu0 %v3715, 64
  %v3722 = vpop.permute.xlu0 %3721
  %3723 = vrot.lane.b32.xlu0 %v3716, 64
  %v3724 = vpop.permute.xlu0 %3723
  %v3727 = vmul.f32 %v3712, %v3722
  %v3728 = vmul.f32 %v3714, %v3724
  %3731 = vrot.lane.b32.xlu0 %v3727, 32
  %v3732 = vpop.permute.xlu0 %3731
  %3733 = vrot.lane.b32.xlu0 %v3728, 32
  %v3734 = vpop.permute.xlu0 %3733
  %v3737 = vadd.f32 %v3717, %v3732
  %v3738 = vadd.f32 %v3718, %v3734
  %v3739 = vtanh.pop %v3737
  %v3740 = vtanh.pop %v3738
  %3743 = vrot.lane.b32.xlu0 %v3739, 64
  %v3744 = vpop.permute.xlu0 %3743
  %3745 = vrot.lane.b32.xlu0 %v3740, 64
  %v3746 = vpop.permute.xlu0 %3745
  %v3749 = vmul.f32 %v3712, %v3744
  %v3750 = vmul.f32 %v3714, %v3746
  %v3751 = vld [vmem:[#allocation2 + $0x60] sm:$0xff]
  %v3752 = vld [vmem:[#allocation2 + $0x70] sm:$0xff]
  %3755 = vrot.lane.b32.xlu0 %v3701, 32
  %v3756 = vpop.permute.xlu0 %3755
  %3757 = vrot.lane.b32.xlu0 %v3702, 32
  %v3758 = vpop.permute.xlu0 %3757
  %v3759 = vsel %vm82, %v3756, 0
  %v3761 = vsel %vm82, %v3758, 0
  %3763 = vmatprep.subr.mxu0 0.0
  %3764 = vmatpush1.msra.mxu0 %v2941
  %3765 = vmatprep.subr.mxu0 0.0
  %3766 = vmatpush1.msra.mxu0 %v2942
  %3767 = vmatprep.subr.mxu0 0.0
  %3768 = vmatpush1.msra.mxu0 %v2943
  %3769 = vmatprep.subr.mxu0 0.0
  %3770 = vmatpush1.msra.mxu0 %v2944
  %3771 = vmatprep.subr.mxu0 0.0
  %3772 = vmatpush1.msra.mxu0 0.0
  %3773 = vmatprep.subr.mxu0 0.0
  %3774 = vmatpush1.msra.mxu0 0.0
  %3775 = vmatprep.subr.mxu0 0.0
  %3776 = vmatpush1.msra.mxu0 0.0
  %3777 = vmatprep.subr.mxu0 0.0
  %3778 = vmatpush1.msra.mxu0 0.0
  %3779 = vmatprep.subr.mxu0 0.0
  %3780 = vmatpush1.msra.mxu0 0.0
  %3781 = vmatprep.subr.mxu0 0.0
  %3782 = vmatpush1.msra.mxu0 0.0
  %3783 = vmatprep.subr.mxu0 0.0
  %3784 = vmatpush1.msra.mxu0 0.0
  %3785 = vmatprep.subr.mxu0 0.0
  %3786 = vmatpush1.msra.mxu0 0.0
  %3787 = vmatprep.subr.mxu0 0.0
  %3788 = vmatpush1.msra.mxu0 0.0
  %3789 = vmatprep.subr.mxu0 0.0
  %3790 = vmatpush1.msra.mxu0 0.0
  %3791 = vmatprep.subr.mxu0 0.0
  %3792 = vmatpush1.msra.mxu0 0.0
  %3793 = vmatprep.subr.mxu0 0.0
  %3794 = vmatpush1.msra.mxu0 0.0
  %3795 = vmatprep.subr.mxu0 0.0
  %3796 = vmatpush1.msra.mxu0 0.0
  %3797 = vmatprep.subr.mxu0 0.0
  %3798 = vmatpush1.msra.mxu0 0.0
  %3799 = vmatprep.subr.mxu0 0.0
  %3800 = vmatpush1.msra.mxu0 0.0
  %3801 = vmatprep.subr.mxu0 0.0
  %3802 = vmatpush1.msra.mxu0 0.0
  %3803 = vmatprep.subr.mxu0 0.0
  %3804 = vmatpush1.msra.mxu0 0.0
  %3805 = vmatprep.subr.mxu0 0.0
  %3806 = vmatpush1.msra.mxu0 0.0
  %3807 = vmatprep.subr.mxu0 0.0
  %3808 = vmatpush1.msra.mxu0 0.0
  %3809 = vmatprep.subr.mxu0 0.0
  %3810 = vmatpush1.msra.mxu0 0.0
  %3811 = vmatprep.subr.mxu0 0.0
  %3812 = vmatpush1.msra.mxu0 0.0
  %3813 = vmatprep.subr.mxu0 0.0
  %3814 = vmatpush1.msra.mxu0 0.0
  %3815 = vmatprep.subr.mxu0 0.0
  %3816 = vmatpush1.msra.mxu0 0.0
  %3817 = vmatprep.subr.mxu0 0.0
  %3818 = vmatpush1.msra.mxu0 0.0
  %3819 = vmatprep.subr.mxu0 0.0
  %3820 = vmatpush1.msra.mxu0 0.0
  %3821 = vmatprep.subr.mxu0 0.0
  %3822 = vmatpush1.msra.mxu0 0.0
  %3823 = vmatprep.subr.mxu0 0.0
  %3824 = vmatpush1.msra.mxu0 0.0
  %3825 = vmatprep.subr.mxu0 0.0
  %3826 = vmatpush1.msra.mxu0 0.0
  %3827 = vmatprep.mubr.f32.mxu0 0.0
  %3828 = vmatmul.mubr.f32.gmra.mrb[0].mxu0 %v3759
  %v3829 = vpop.f32.mrb[0].mxu0
  %v3830 = vadd.f32 0.0, %v3829
  %v3831 = vpop.f32.mrb[0].mxu0
  %3832 = vmatprep.mubr.f32.mxu0 0.0
  %3833 = vmatmul.mubr.f32.gmra.mrb[0].mxu0 %v3761
  %v3834 = vpop.f32.mrb[0].mxu0
  %v3835 = vadd.f32 0.0, %v3834
  %v3836 = vpop.f32.mrb[0].mxu0
  %3837 = vdwg.mxu0
  %v3838 = vadd.f32 %v3751, %v3830
  %v3839 = vadd.f32 %v3752, %v3835
  %v3840 = vld [vmem:[#allocation2 + $0x88] sm:$0xff]
  %v3841 = vld [vmem:[#allocation2 + $0x98] sm:$0xff]
  %3844 = vrot.lane.b32.xlu0 %v3749, 32
  %v3845 = vpop.permute.xlu0 %3844
  %3846 = vrot.lane.b32.xlu0 %v3750, 32
  %v3847 = vpop.permute.xlu0 %3846
  %v3848 = vsel %vm82, %v3845, 0
  %v3850 = vsel %vm82, %v3847, 0
  %3852 = vmatprep.subr.mxu0 0.0
  %3853 = vmatpush1.msra.mxu0 %v2945
  %3854 = vmatprep.subr.mxu0 0.0
  %3855 = vmatpush1.msra.mxu0 %v2946
  %3856 = vmatprep.subr.mxu0 0.0
  %3857 = vmatpush1.msra.mxu0 %v2947
  %3858 = vmatprep.subr.mxu0 0.0
  %3859 = vmatpush1.msra.mxu0 %v2948
  %3860 = vmatprep.subr.mxu0 0.0
  %3861 = vmatpush1.msra.mxu0 0.0
  %3862 = vmatprep.subr.mxu0 0.0
  %3863 = vmatpush1.msra.mxu0 0.0
  %3864 = vmatprep.subr.mxu0 0.0
  %3865 = vmatpush1.msra.mxu0 0.0
  %3866 = vmatprep.subr.mxu0 0.0
  %3867 = vmatpush1.msra.mxu0 0.0
  %3868 = vmatprep.subr.mxu0 0.0
  %3869 = vmatpush1.msra.mxu0 0.0
  %3870 = vmatprep.subr.mxu0 0.0
  %3871 = vmatpush1.msra.mxu0 0.0
  %3872 = vmatprep.subr.mxu0 0.0
  %3873 = vmatpush1.msra.mxu0 0.0
  %3874 = vmatprep.subr.mxu0 0.0
  %3875 = vmatpush1.msra.mxu0 0.0
  %3876 = vmatprep.subr.mxu0 0.0
  %3877 = vmatpush1.msra.mxu0 0.0
  %3878 = vmatprep.subr.mxu0 0.0
  %3879 = vmatpush1.msra.mxu0 0.0
  %3880 = vmatprep.subr.mxu0 0.0
  %3881 = vmatpush1.msra.mxu0 0.0
  %3882 = vmatprep.subr.mxu0 0.0
  %3883 = vmatpush1.msra.mxu0 0.0
  %3884 = vmatprep.subr.mxu0 0.0
  %3885 = vmatpush1.msra.mxu0 0.0
  %3886 = vmatprep.subr.mxu0 0.0
  %3887 = vmatpush1.msra.mxu0 0.0
  %3888 = vmatprep.subr.mxu0 0.0
  %3889 = vmatpush1.msra.mxu0 0.0
  %3890 = vmatprep.subr.mxu0 0.0
  %3891 = vmatpush1.msra.mxu0 0.0
  %3892 = vmatprep.subr.mxu0 0.0
  %3893 = vmatpush1.msra.mxu0 0.0
  %3894 = vmatprep.subr.mxu0 0.0
  %3895 = vmatpush1.msra.mxu0 0.0
  %3896 = vmatprep.subr.mxu0 0.0
  %3897 = vmatpush1.msra.mxu0 0.0
  %3898 = vmatprep.subr.mxu0 0.0
  %3899 = vmatpush1.msra.mxu0 0.0
  %3900 = vmatprep.subr.mxu0 0.0
  %3901 = vmatpush1.msra.mxu0 0.0
  %3902 = vmatprep.subr.mxu0 0.0
  %3903 = vmatpush1.msra.mxu0 0.0
  %3904 = vmatprep.subr.mxu0 0.0
  %3905 = vmatpush1.msra.mxu0 0.0
  %3906 = vmatprep.subr.mxu0 0.0
  %3907 = vmatpush1.msra.mxu0 0.0
  %3908 = vmatprep.subr.mxu0 0.0
  %3909 = vmatpush1.msra.mxu0 0.0
  %3910 = vmatprep.subr.mxu0 0.0
  %3911 = vmatpush1.msra.mxu0 0.0
  %3912 = vmatprep.subr.mxu0 0.0
  %3913 = vmatpush1.msra.mxu0 0.0
  %3914 = vmatprep.subr.mxu0 0.0
  %3915 = vmatpush1.msra.mxu0 0.0
  %3916 = vmatprep.mubr.f32.mxu0 0.0
  %3917 = vmatmul.mubr.f32.gmra.mrb[0].mxu0 %v3848
  %v3918 = vpop.f32.mrb[0].mxu0
  %v3919 = vadd.f32 0.0, %v3918
  %v3920 = vpop.f32.mrb[0].mxu0
  %3921 = vmatprep.mubr.f32.mxu0 0.0
  %3922 = vmatmul.mubr.f32.gmra.mrb[0].mxu0 %v3850
  %v3923 = vpop.f32.mrb[0].mxu0
  %v3924 = vadd.f32 0.0, %v3923
  %v3925 = vpop.f32.mrb[0].mxu0
  %3926 = vdwg.mxu0
  %v3927 = vadd.f32 %v3840, %v3919
  %v3928 = vadd.f32 %v3841, %v3924
  %v3929 = vxor.u32 %v3838, 2147483648
  %v3930 = vxor.u32 %v3839, 2147483648
  %v3931 = vmul.f32 %v3929, 1.442695
  %v3932 = vpow.pop %v3931
  %v3933 = vmul.f32 %v3930, 1.442695
  %v3934 = vpow.pop %v3933
  %v3935 = vadd.f32 %v3932, 1.0
  %v3936 = vadd.f32 %v3934, 1.0
  %v3937 = vrcp.pop %v3935
  %v3938 = vmul.f32 1.0, %v3937
  %v3939 = vrcp.pop %v3936
  %v3940 = vmul.f32 1.0, %v3939
  %v3941 = vtanh.pop %v3838
  %v3942 = vtanh.pop %v3839
  %v3943 = vmul.f32 %v3938, %v3689
  %v3944 = vmul.f32 %v3940, %v3690
  %3947 = vrot.lane.b32.xlu0 %v3941, 64
  %v3948 = vpop.permute.xlu0 %3947
  %3949 = vrot.lane.b32.xlu0 %v3942, 64
  %v3950 = vpop.permute.xlu0 %3949
  %v3953 = vmul.f32 %v3938, %v3948
  %v3954 = vmul.f32 %v3940, %v3950
  %3957 = vrot.lane.b32.xlu0 %v3953, 32
  %v3958 = vpop.permute.xlu0 %3957
  %3959 = vrot.lane.b32.xlu0 %v3954, 32
  %v3960 = vpop.permute.xlu0 %3959
  %v3963 = vadd.f32 %v3943, %v3958
  %v3964 = vadd.f32 %v3944, %v3960
  %v3965 = vtanh.pop %v3963
  %v3966 = vtanh.pop %v3964
  %3969 = vrot.lane.b32.xlu0 %v3965, 64
  %v3970 = vpop.permute.xlu0 %3969
  %3971 = vrot.lane.b32.xlu0 %v3966, 64
  %v3972 = vpop.permute.xlu0 %3971
  %v3975 = vmul.f32 %v3938, %v3970
  %v3976 = vmul.f32 %v3940, %v3972
  %v3977 = vxor.u32 %v3927, 2147483648
  %v3978 = vxor.u32 %v3928, 2147483648
  %v3979 = vmul.f32 %v3977, 1.442695
  %v3980 = vpow.pop %v3979
  %v3981 = vmul.f32 %v3978, 1.442695
  %v3982 = vpow.pop %v3981
  %v3983 = vadd.f32 %v3980, 1.0
  %v3984 = vadd.f32 %v3982, 1.0
  %v3985 = vrcp.pop %v3983
  %v3986 = vmul.f32 1.0, %v3985
  %v3987 = vrcp.pop %v3984
  %v3988 = vmul.f32 1.0, %v3987
  %v3989 = vtanh.pop %v3927
  %v3990 = vtanh.pop %v3928
  %v3991 = vmul.f32 %v3986, %v3737
  %v3992 = vmul.f32 %v3988, %v3738
  %3995 = vrot.lane.b32.xlu0 %v3989, 64
  %v3996 = vpop.permute.xlu0 %3995
  %3997 = vrot.lane.b32.xlu0 %v3990, 64
  %v3998 = vpop.permute.xlu0 %3997
  %v4001 = vmul.f32 %v3986, %v3996
  %v4002 = vmul.f32 %v3988, %v3998
  %4005 = vrot.lane.b32.xlu0 %v4001, 32
  %v4006 = vpop.permute.xlu0 %4005
  %4007 = vrot.lane.b32.xlu0 %v4002, 32
  %v4008 = vpop.permute.xlu0 %4007
  %v4011 = vadd.f32 %v3991, %v4006
  %v4012 = vadd.f32 %v3992, %v4008
  %v4013 = vtanh.pop %v4011
  %v4014 = vtanh.pop %v4012
  %4017 = vrot.lane.b32.xlu0 %v4013, 64
  %v4018 = vpop.permute.xlu0 %4017
  %4019 = vrot.lane.b32.xlu0 %v4014, 64
  %v4020 = vpop.permute.xlu0 %4019
  %v4023 = vmul.f32 %v3986, %v4018
  %v4024 = vmul.f32 %v3988, %v4020
  %v4025 = vld [vmem:[#allocation2 + $0x80] sm:$0xff]
  %v4026 = vld [vmem:[#allocation2 + $0x90] sm:$0xff]
  %4029 = vrot.lane.b32.xlu0 %v3975, 32
  %v4030 = vpop.permute.xlu0 %4029
  %4031 = vrot.lane.b32.xlu0 %v3976, 32
  %v4032 = vpop.permute.xlu0 %4031
  %v4033 = vsel %vm82, %v4030, 0
  %v4035 = vsel %vm82, %v4032, 0
  %4037 = vmatprep.subr.mxu0 0.0
  %4038 = vmatpush1.msra.mxu0 %v2941
  %4039 = vmatprep.subr.mxu0 0.0
  %4040 = vmatpush1.msra.mxu0 %v2942
  %4041 = vmatprep.subr.mxu0 0.0
  %4042 = vmatpush1.msra.mxu0 %v2943
  %4043 = vmatprep.subr.mxu0 0.0
  %4044 = vmatpush1.msra.mxu0 %v2944
  %4045 = vmatprep.subr.mxu0 0.0
  %4046 = vmatpush1.msra.mxu0 0.0
  %4047 = vmatprep.subr.mxu0 0.0
  %4048 = vmatpush1.msra.mxu0 0.0
  %4049 = vmatprep.subr.mxu0 0.0
  %4050 = vmatpush1.msra.mxu0 0.0
  %4051 = vmatprep.subr.mxu0 0.0
  %4052 = vmatpush1.msra.mxu0 0.0
  %4053 = vmatprep.subr.mxu0 0.0
  %4054 = vmatpush1.msra.mxu0 0.0
  %4055 = vmatprep.subr.mxu0 0.0
  %4056 = vmatpush1.msra.mxu0 0.0
  %4057 = vmatprep.subr.mxu0 0.0
  %4058 = vmatpush1.msra.mxu0 0.0
  %4059 = vmatprep.subr.mxu0 0.0
  %4060 = vmatpush1.msra.mxu0 0.0
  %4061 = vmatprep.subr.mxu0 0.0
  %4062 = vmatpush1.msra.mxu0 0.0
  %4063 = vmatprep.subr.mxu0 0.0
  %4064 = vmatpush1.msra.mxu0 0.0
  %4065 = vmatprep.subr.mxu0 0.0
  %4066 = vmatpush1.msra.mxu0 0.0
  %4067 = vmatprep.subr.mxu0 0.0
  %4068 = vmatpush1.msra.mxu0 0.0
  %4069 = vmatprep.subr.mxu0 0.0
  %4070 = vmatpush1.msra.mxu0 0.0
  %4071 = vmatprep.subr.mxu0 0.0
  %4072 = vmatpush1.msra.mxu0 0.0
  %4073 = vmatprep.subr.mxu0 0.0
  %4074 = vmatpush1.msra.mxu0 0.0
  %4075 = vmatprep.subr.mxu0 0.0
  %4076 = vmatpush1.msra.mxu0 0.0
  %4077 = vmatprep.subr.mxu0 0.0
  %4078 = vmatpush1.msra.mxu0 0.0
  %4079 = vmatprep.subr.mxu0 0.0
  %4080 = vmatpush1.msra.mxu0 0.0
  %4081 = vmatprep.subr.mxu0 0.0
  %4082 = vmatpush1.msra.mxu0 0.0
  %4083 = vmatprep.subr.mxu0 0.0
  %4084 = vmatpush1.msra.mxu0 0.0
  %4085 = vmatprep.subr.mxu0 0.0
  %4086 = vmatpush1.msra.mxu0 0.0
  %4087 = vmatprep.subr.mxu0 0.0
  %4088 = vmatpush1.msra.mxu0 0.0
  %4089 = vmatprep.subr.mxu0 0.0
  %4090 = vmatpush1.msra.mxu0 0.0
  %4091 = vmatprep.subr.mxu0 0.0
  %4092 = vmatpush1.msra.mxu0 0.0
  %4093 = vmatprep.subr.mxu0 0.0
  %4094 = vmatpush1.msra.mxu0 0.0
  %4095 = vmatprep.subr.mxu0 0.0
  %4096 = vmatpush1.msra.mxu0 0.0
  %4097 = vmatprep.subr.mxu0 0.0
  %4098 = vmatpush1.msra.mxu0 0.0
  %4099 = vmatprep.subr.mxu0 0.0
  %4100 = vmatpush1.msra.mxu0 0.0
  %4101 = vmatprep.mubr.f32.mxu0 0.0
  %4102 = vmatmul.mubr.f32.gmra.mrb[0].mxu0 %v4033
  %v4103 = vpop.f32.mrb[0].mxu0
  %v4104 = vadd.f32 0.0, %v4103
  %v4105 = vpop.f32.mrb[0].mxu0
  %4106 = vmatprep.mubr.f32.mxu0 0.0
  %4107 = vmatmul.mubr.f32.gmra.mrb[0].mxu0 %v4035
  %v4108 = vpop.f32.mrb[0].mxu0
  %v4109 = vadd.f32 0.0, %v4108
  %v4110 = vpop.f32.mrb[0].mxu0
  %4111 = vdwg.mxu0
  %v4112 = vadd.f32 %v4025, %v4104
  %v4113 = vadd.f32 %v4026, %v4109
  %v4114 = vld [vmem:[#allocation2 + $0x68] sm:$0xff]
  %v4115 = vld [vmem:[#allocation2 + $0x78] sm:$0xff]
  %4118 = vrot.lane.b32.xlu0 %v4023, 32
  %v4119 = vpop.permute.xlu0 %4118
  %4120 = vrot.lane.b32.xlu0 %v4024, 32
  %v4121 = vpop.permute.xlu0 %4120
  %v4122 = vsel %vm82, %v4119, 0
  %v4124 = vsel %vm82, %v4121, 0
  %4126 = vmatprep.subr.mxu0 0.0
  %4127 = vmatpush1.msra.mxu0 %v2945
  %4128 = vmatprep.subr.mxu0 0.0
  %4129 = vmatpush1.msra.mxu0 %v2946
  %4130 = vmatprep.subr.mxu0 0.0
  %4131 = vmatpush1.msra.mxu0 %v2947
  %4132 = vmatprep.subr.mxu0 0.0
  %4133 = vmatpush1.msra.mxu0 %v2948
  %4134 = vmatprep.subr.mxu0 0.0
  %4135 = vmatpush1.msra.mxu0 0.0
  %4136 = vmatprep.subr.mxu0 0.0
  %4137 = vmatpush1.msra.mxu0 0.0
  %4138 = vmatprep.subr.mxu0 0.0
  %4139 = vmatpush1.msra.mxu0 0.0
  %4140 = vmatprep.subr.mxu0 0.0
  %4141 = vmatpush1.msra.mxu0 0.0
  %4142 = vmatprep.subr.mxu0 0.0
  %4143 = vmatpush1.msra.mxu0 0.0
  %4144 = vmatprep.subr.mxu0 0.0
  %4145 = vmatpush1.msra.mxu0 0.0
  %4146 = vmatprep.subr.mxu0 0.0
  %4147 = vmatpush1.msra.mxu0 0.0
  %4148 = vmatprep.subr.mxu0 0.0
  %4149 = vmatpush1.msra.mxu0 0.0
  %4150 = vmatprep.subr.mxu0 0.0
  %4151 = vmatpush1.msra.mxu0 0.0
  %4152 = vmatprep.subr.mxu0 0.0
  %4153 = vmatpush1.msra.mxu0 0.0
  %4154 = vmatprep.subr.mxu0 0.0
  %4155 = vmatpush1.msra.mxu0 0.0
  %4156 = vmatprep.subr.mxu0 0.0
  %4157 = vmatpush1.msra.mxu0 0.0
  %4158 = vmatprep.subr.mxu0 0.0
  %4159 = vmatpush1.msra.mxu0 0.0
  %4160 = vmatprep.subr.mxu0 0.0
  %4161 = vmatpush1.msra.mxu0 0.0
  %4162 = vmatprep.subr.mxu0 0.0
  %4163 = vmatpush1.msra.mxu0 0.0
  %4164 = vmatprep.subr.mxu0 0.0
  %4165 = vmatpush1.msra.mxu0 0.0
  %4166 = vmatprep.subr.mxu0 0.0
  %4167 = vmatpush1.msra.mxu0 0.0
  %4168 = vmatprep.subr.mxu0 0.0
  %4169 = vmatpush1.msra.mxu0 0.0
  %4170 = vmatprep.subr.mxu0 0.0
  %4171 = vmatpush1.msra.mxu0 0.0
  %4172 = vmatprep.subr.mxu0 0.0
  %4173 = vmatpush1.msra.mxu0 0.0
  %4174 = vmatprep.subr.mxu0 0.0
  %4175 = vmatpush1.msra.mxu0 0.0
  %4176 = vmatprep.subr.mxu0 0.0
  %4177 = vmatpush1.msra.mxu0 0.0
  %4178 = vmatprep.subr.mxu0 0.0
  %4179 = vmatpush1.msra.mxu0 0.0
  %4180 = vmatprep.subr.mxu0 0.0
  %4181 = vmatpush1.msra.mxu0 0.0
  %4182 = vmatprep.subr.mxu0 0.0
  %4183 = vmatpush1.msra.mxu0 0.0
  %4184 = vmatprep.subr.mxu0 0.0
  %4185 = vmatpush1.msra.mxu0 0.0
  %4186 = vmatprep.subr.mxu0 0.0
  %4187 = vmatpush1.msra.mxu0 0.0
  %4188 = vmatprep.subr.mxu0 0.0
  %4189 = vmatpush1.msra.mxu0 0.0
  %4190 = vmatprep.mubr.f32.mxu0 0.0
  %4191 = vmatmul.mubr.f32.gmra.mrb[0].mxu0 %v4122
  %v4192 = vpop.f32.mrb[0].mxu0
  %v4193 = vadd.f32 0.0, %v4192
  %v4194 = vpop.f32.mrb[0].mxu0
  %4195 = vmatprep.mubr.f32.mxu0 0.0
  %4196 = vmatmul.mubr.f32.gmra.mrb[0].mxu0 %v4124
  %v4197 = vpop.f32.mrb[0].mxu0
  %v4198 = vadd.f32 0.0, %v4197
  %v4199 = vpop.f32.mrb[0].mxu0
  %4200 = vdwg.mxu0
  %v4201 = vadd.f32 %v4114, %v4193
  %v4202 = vadd.f32 %v4115, %v4198
  %v4203 = vxor.u32 %v4112, 2147483648
  %v4204 = vxor.u32 %v4113, 2147483648
  %v4205 = vmul.f32 %v4203, 1.442695
  %v4206 = vpow.pop %v4205
  %v4207 = vmul.f32 %v4204, 1.442695
  %v4208 = vpow.pop %v4207
  %v4209 = vadd.f32 %v4206, 1.0
  %v4210 = vadd.f32 %v4208, 1.0
  %v4211 = vrcp.pop %v4209
  %v4212 = vmul.f32 1.0, %v4211
  %v4213 = vrcp.pop %v4210
  %v4214 = vmul.f32 1.0, %v4213
  %v4215 = vtanh.pop %v4112
  %v4216 = vtanh.pop %v4113
  %v4217 = vmul.f32 %v4212, %v3963
  %v4218 = vmul.f32 %v4214, %v3964
  %4221 = vrot.lane.b32.xlu0 %v4215, 64
  %v4222 = vpop.permute.xlu0 %4221
  %4223 = vrot.lane.b32.xlu0 %v4216, 64
  %v4224 = vpop.permute.xlu0 %4223
  %v4227 = vmul.f32 %v4212, %v4222
  %v4228 = vmul.f32 %v4214, %v4224
  %4231 = vrot.lane.b32.xlu0 %v4227, 32
  %v4232 = vpop.permute.xlu0 %4231
  %4233 = vrot.lane.b32.xlu0 %v4228, 32
  %v4234 = vpop.permute.xlu0 %4233
  %v4237 = vadd.f32 %v4217, %v4232
  %v4238 = vadd.f32 %v4218, %v4234
  %v4239 = vtanh.pop %v4237
  %v4240 = vtanh.pop %v4238
  %4243 = vrot.lane.b32.xlu0 %v4239, 64
  %v4244 = vpop.permute.xlu0 %4243
  %4245 = vrot.lane.b32.xlu0 %v4240, 64
  %v4246 = vpop.permute.xlu0 %4245
  %v4249 = vmul.f32 %v4212, %v4244
  %v4250 = vmul.f32 %v4214, %v4246
  %v4251 = vxor.u32 %v4201, 2147483648
  %v4252 = vxor.u32 %v4202, 2147483648
  %v4253 = vmul.f32 %v4251, 1.442695
  %v4254 = vpow.pop %v4253
  %v4255 = vmul.f32 %v4252, 1.442695
  %v4256 = vpow.pop %v4255
  %v4257 = vadd.f32 %v4254, 1.0
  %v4258 = vadd.f32 %v4256, 1.0
  %v4259 = vrcp.pop %v4257
  %v4260 = vmul.f32 1.0, %v4259
  %v4261 = vrcp.pop %v4258
  %v4262 = vmul.f32 1.0, %v4261
  %v4263 = vtanh.pop %v4201
  %v4264 = vtanh.pop %v4202
  %v4265 = vmul.f32 %v4260, %v4011
  %v4266 = vmul.f32 %v4262, %v4012
  %4269 = vrot.lane.b32.xlu0 %v4263, 64
  %v4270 = vpop.permute.xlu0 %4269
  %4271 = vrot.lane.b32.xlu0 %v4264, 64
  %v4272 = vpop.permute.xlu0 %4271
  %v4275 = vmul.f32 %v4260, %v4270
  %v4276 = vmul.f32 %v4262, %v4272
  %4279 = vrot.lane.b32.xlu0 %v4275, 32
  %v4280 = vpop.permute.xlu0 %4279
  %4281 = vrot.lane.b32.xlu0 %v4276, 32
  %v4282 = vpop.permute.xlu0 %4281
  %v4285 = vadd.f32 %v4265, %v4280
  %v4286 = vadd.f32 %v4266, %v4282
  %v4287 = vtanh.pop %v4285
  %v4288 = vtanh.pop %v4286
  %4291 = vrot.lane.b32.xlu0 %v4287, 64
  %v4292 = vpop.permute.xlu0 %4291
  %4293 = vrot.lane.b32.xlu0 %v4288, 64
  %v4294 = vpop.permute.xlu0 %4293
  %v4297 = vmul.f32 %v4260, %v4292
  %v4298 = vmul.f32 %v4262, %v4294
  %v4299 = vld [vmem:[#allocation2 + $0xa0] sm:$0xff]
  %v4300 = vld [vmem:[#allocation2 + $0xb0] sm:$0xff]
  %4303 = vrot.lane.b32.xlu0 %v4249, 32
  %v4304 = vpop.permute.xlu0 %4303
  %4305 = vrot.lane.b32.xlu0 %v4250, 32
  %v4306 = vpop.permute.xlu0 %4305
  %v4307 = vsel %vm82, %v4304, 0
  %v4309 = vsel %vm82, %v4306, 0
  %4311 = vmatprep.subr.mxu0 0.0
  %4312 = vmatpush1.msra.mxu0 %v2941
  %4313 = vmatprep.subr.mxu0 0.0
  %4314 = vmatpush1.msra.mxu0 %v2942
  %4315 = vmatprep.subr.mxu0 0.0
  %4316 = vmatpush1.msra.mxu0 %v2943
  %4317 = vmatprep.subr.mxu0 0.0
  %4318 = vmatpush1.msra.mxu0 %v2944
  %4319 = vmatprep.subr.mxu0 0.0
  %4320 = vmatpush1.msra.mxu0 0.0
  %4321 = vmatprep.subr.mxu0 0.0
  %4322 = vmatpush1.msra.mxu0 0.0
  %4323 = vmatprep.subr.mxu0 0.0
  %4324 = vmatpush1.msra.mxu0 0.0
  %4325 = vmatprep.subr.mxu0 0.0
  %4326 = vmatpush1.msra.mxu0 0.0
  %4327 = vmatprep.subr.mxu0 0.0
  %4328 = vmatpush1.msra.mxu0 0.0
  %4329 = vmatprep.subr.mxu0 0.0
  %4330 = vmatpush1.msra.mxu0 0.0
  %4331 = vmatprep.subr.mxu0 0.0
  %4332 = vmatpush1.msra.mxu0 0.0
  %4333 = vmatprep.subr.mxu0 0.0
  %4334 = vmatpush1.msra.mxu0 0.0
  %4335 = vmatprep.subr.mxu0 0.0
  %4336 = vmatpush1.msra.mxu0 0.0
  %4337 = vmatprep.subr.mxu0 0.0
  %4338 = vmatpush1.msra.mxu0 0.0
  %4339 = vmatprep.subr.mxu0 0.0
  %4340 = vmatpush1.msra.mxu0 0.0
  %4341 = vmatprep.subr.mxu0 0.0
  %4342 = vmatpush1.msra.mxu0 0.0
  %4343 = vmatprep.subr.mxu0 0.0
  %4344 = vmatpush1.msra.mxu0 0.0
  %4345 = vmatprep.subr.mxu0 0.0
  %4346 = vmatpush1.msra.mxu0 0.0
  %4347 = vmatprep.subr.mxu0 0.0
  %4348 = vmatpush1.msra.mxu0 0.0
  %4349 = vmatprep.subr.mxu0 0.0
  %4350 = vmatpush1.msra.mxu0 0.0
  %4351 = vmatprep.subr.mxu0 0.0
  %4352 = vmatpush1.msra.mxu0 0.0
  %4353 = vmatprep.subr.mxu0 0.0
  %4354 = vmatpush1.msra.mxu0 0.0
  %4355 = vmatprep.subr.mxu0 0.0
  %4356 = vmatpush1.msra.mxu0 0.0
  %4357 = vmatprep.subr.mxu0 0.0
  %4358 = vmatpush1.msra.mxu0 0.0
  %4359 = vmatprep.subr.mxu0 0.0
  %4360 = vmatpush1.msra.mxu0 0.0
  %4361 = vmatprep.subr.mxu0 0.0
  %4362 = vmatpush1.msra.mxu0 0.0
  %4363 = vmatprep.subr.mxu0 0.0
  %4364 = vmatpush1.msra.mxu0 0.0
  %4365 = vmatprep.subr.mxu0 0.0
  %4366 = vmatpush1.msra.mxu0 0.0
  %4367 = vmatprep.subr.mxu0 0.0
  %4368 = vmatpush1.msra.mxu0 0.0
  %4369 = vmatprep.subr.mxu0 0.0
  %4370 = vmatpush1.msra.mxu0 0.0
  %4371 = vmatprep.subr.mxu0 0.0
  %4372 = vmatpush1.msra.mxu0 0.0
  %4373 = vmatprep.subr.mxu0 0.0
  %4374 = vmatpush1.msra.mxu0 0.0
  %4375 = vmatprep.mubr.f32.mxu0 0.0
  %4376 = vmatmul.mubr.f32.gmra.mrb[0].mxu0 %v4307
  %v4377 = vpop.f32.mrb[0].mxu0
  %v4378 = vadd.f32 0.0, %v4377
  %v4379 = vpop.f32.mrb[0].mxu0
  %4380 = vmatprep.mubr.f32.mxu0 0.0
  %4381 = vmatmul.mubr.f32.gmra.mrb[0].mxu0 %v4309
  %v4382 = vpop.f32.mrb[0].mxu0
  %v4383 = vadd.f32 0.0, %v4382
  %v4384 = vpop.f32.mrb[0].mxu0
  %4385 = vdwg.mxu0
  %v4386 = vadd.f32 %v4299, %v4378
  %v4387 = vadd.f32 %v4300, %v4383
  %v4388 = vld [vmem:[#allocation2 + $0x48] sm:$0xff]
  %v4389 = vld [vmem:[#allocation2 + $0x58] sm:$0xff]
  %4392 = vrot.lane.b32.xlu0 %v4297, 32
  %v4393 = vpop.permute.xlu0 %4392
  %4394 = vrot.lane.b32.xlu0 %v4298, 32
  %v4395 = vpop.permute.xlu0 %4394
  %v4396 = vsel %vm82, %v4393, 0
  %v4398 = vsel %vm82, %v4395, 0
  %4400 = vmatprep.subr.mxu0 0.0
  %4401 = vmatpush1.msra.mxu0 %v2945
  %4402 = vmatprep.subr.mxu0 0.0
  %4403 = vmatpush1.msra.mxu0 %v2946
  %4404 = vmatprep.subr.mxu0 0.0
  %4405 = vmatpush1.msra.mxu0 %v2947
  %4406 = vmatprep.subr.mxu0 0.0
  %4407 = vmatpush1.msra.mxu0 %v2948
  %4408 = vmatprep.subr.mxu0 0.0
  %4409 = vmatpush1.msra.mxu0 0.0
  %4410 = vmatprep.subr.mxu0 0.0
  %4411 = vmatpush1.msra.mxu0 0.0
  %4412 = vmatprep.subr.mxu0 0.0
  %4413 = vmatpush1.msra.mxu0 0.0
  %4414 = vmatprep.subr.mxu0 0.0
  %4415 = vmatpush1.msra.mxu0 0.0
  %4416 = vmatprep.subr.mxu0 0.0
  %4417 = vmatpush1.msra.mxu0 0.0
  %4418 = vmatprep.subr.mxu0 0.0
  %4419 = vmatpush1.msra.mxu0 0.0
  %4420 = vmatprep.subr.mxu0 0.0
  %4421 = vmatpush1.msra.mxu0 0.0
  %4422 = vmatprep.subr.mxu0 0.0
  %4423 = vmatpush1.msra.mxu0 0.0
  %4424 = vmatprep.subr.mxu0 0.0
  %4425 = vmatpush1.msra.mxu0 0.0
  %4426 = vmatprep.subr.mxu0 0.0
  %4427 = vmatpush1.msra.mxu0 0.0
  %4428 = vmatprep.subr.mxu0 0.0
  %4429 = vmatpush1.msra.mxu0 0.0
  %4430 = vmatprep.subr.mxu0 0.0
  %4431 = vmatpush1.msra.mxu0 0.0
  %4432 = vmatprep.subr.mxu0 0.0
  %4433 = vmatpush1.msra.mxu0 0.0
  %4434 = vmatprep.subr.mxu0 0.0
  %4435 = vmatpush1.msra.mxu0 0.0
  %4436 = vmatprep.subr.mxu0 0.0
  %4437 = vmatpush1.msra.mxu0 0.0
  %4438 = vmatprep.subr.mxu0 0.0
  %4439 = vmatpush1.msra.mxu0 0.0
  %4440 = vmatprep.subr.mxu0 0.0
  %4441 = vmatpush1.msra.mxu0 0.0
  %4442 = vmatprep.subr.mxu0 0.0
  %4443 = vmatpush1.msra.mxu0 0.0
  %4444 = vmatprep.subr.mxu0 0.0
  %4445 = vmatpush1.msra.mxu0 0.0
  %4446 = vmatprep.subr.mxu0 0.0
  %4447 = vmatpush1.msra.mxu0 0.0
  %4448 = vmatprep.subr.mxu0 0.0
  %4449 = vmatpush1.msra.mxu0 0.0
  %4450 = vmatprep.subr.mxu0 0.0
  %4451 = vmatpush1.msra.mxu0 0.0
  %4452 = vmatprep.subr.mxu0 0.0
  %4453 = vmatpush1.msra.mxu0 0.0
  %4454 = vmatprep.subr.mxu0 0.0
  %4455 = vmatpush1.msra.mxu0 0.0
  %4456 = vmatprep.subr.mxu0 0.0
  %4457 = vmatpush1.msra.mxu0 0.0
  %4458 = vmatprep.subr.mxu0 0.0
  %4459 = vmatpush1.msra.mxu0 0.0
  %4460 = vmatprep.subr.mxu0 0.0
  %4461 = vmatpush1.msra.mxu0 0.0
  %4462 = vmatprep.subr.mxu0 0.0
  %4463 = vmatpush1.msra.mxu0 0.0
  %4464 = vmatprep.mubr.f32.mxu0 0.0
  %4465 = vmatmul.mubr.f32.gmra.mrb[0].mxu0 %v4396
  %v4466 = vpop.f32.mrb[0].mxu0
  %v4467 = vadd.f32 0.0, %v4466
  %v4468 = vpop.f32.mrb[0].mxu0
  %4469 = vmatprep.mubr.f32.mxu0 0.0
  %4470 = vmatmul.mubr.f32.gmra.mrb[0].mxu0 %v4398
  %v4471 = vpop.f32.mrb[0].mxu0
  %v4472 = vadd.f32 0.0, %v4471
  %v4473 = vpop.f32.mrb[0].mxu0
  %4474 = vdwg.mxu0
  %v4475 = vadd.f32 %v4388, %v4467
  %v4476 = vadd.f32 %v4389, %v4472
  %v4477 = vxor.u32 %v4386, 2147483648
  %v4478 = vxor.u32 %v4387, 2147483648
  %v4479 = vmul.f32 %v4477, 1.442695
  %v4480 = vpow.pop %v4479
  %v4481 = vmul.f32 %v4478, 1.442695
  %v4482 = vpow.pop %v4481
  %v4483 = vadd.f32 %v4480, 1.0
  %v4484 = vadd.f32 %v4482, 1.0
  %v4485 = vrcp.pop %v4483
  %v4486 = vmul.f32 1.0, %v4485
  %v4487 = vrcp.pop %v4484
  %v4488 = vmul.f32 1.0, %v4487
  %v4489 = vtanh.pop %v4386
  %v4490 = vtanh.pop %v4387
  %v4491 = vmul.f32 %v4486, %v4237
  %v4492 = vmul.f32 %v4488, %v4238
  %4495 = vrot.lane.b32.xlu0 %v4489, 64
  %v4496 = vpop.permute.xlu0 %4495
  %4497 = vrot.lane.b32.xlu0 %v4490, 64
  %v4498 = vpop.permute.xlu0 %4497
  %v4501 = vmul.f32 %v4486, %v4496
  %v4502 = vmul.f32 %v4488, %v4498
  %4505 = vrot.lane.b32.xlu0 %v4501, 32
  %v4506 = vpop.permute.xlu0 %4505
  %4507 = vrot.lane.b32.xlu0 %v4502, 32
  %v4508 = vpop.permute.xlu0 %4507
  %v4511 = vadd.f32 %v4491, %v4506
  %v4512 = vadd.f32 %v4492, %v4508
  %v4513 = vtanh.pop %v4511
  %v4514 = vtanh.pop %v4512
  %4517 = vrot.lane.b32.xlu0 %v4513, 64
  %v4518 = vpop.permute.xlu0 %4517
  %4519 = vrot.lane.b32.xlu0 %v4514, 64
  %v4520 = vpop.permute.xlu0 %4519
  %v4523 = vmul.f32 %v4486, %v4518
  %v4524 = vmul.f32 %v4488, %v4520
  %v4525 = vxor.u32 %v4475, 2147483648
  %v4526 = vxor.u32 %v4476, 2147483648
  %v4527 = vmul.f32 %v4525, 1.442695
  %v4528 = vpow.pop %v4527
  %v4529 = vmul.f32 %v4526, 1.442695
  %v4530 = vpow.pop %v4529
  %v4531 = vadd.f32 %v4528, 1.0
  %v4532 = vadd.f32 %v4530, 1.0
  %v4533 = vrcp.pop %v4531
  %v4534 = vmul.f32 1.0, %v4533
  %v4535 = vrcp.pop %v4532
  %v4536 = vmul.f32 1.0, %v4535
  %v4537 = vtanh.pop %v4475
  %v4538 = vtanh.pop %v4476
  %v4539 = vmul.f32 %v4534, %v4285
  %v4540 = vmul.f32 %v4536, %v4286
  %4543 = vrot.lane.b32.xlu0 %v4537, 64
  %v4544 = vpop.permute.xlu0 %4543
  %4545 = vrot.lane.b32.xlu0 %v4538, 64
  %v4546 = vpop.permute.xlu0 %4545
  %v4549 = vmul.f32 %v4534, %v4544
  %v4550 = vmul.f32 %v4536, %v4546
  %4553 = vrot.lane.b32.xlu0 %v4549, 32
  %v4554 = vpop.permute.xlu0 %4553
  %4555 = vrot.lane.b32.xlu0 %v4550, 32
  %v4556 = vpop.permute.xlu0 %4555
  %v4559 = vadd.f32 %v4539, %v4554
  %v4560 = vadd.f32 %v4540, %v4556
  %v4561 = vtanh.pop %v4559
  %v4562 = vtanh.pop %v4560
  %4565 = vrot.lane.b32.xlu0 %v4561, 64
  %v4566 = vpop.permute.xlu0 %4565
  %4567 = vrot.lane.b32.xlu0 %v4562, 64
  %v4568 = vpop.permute.xlu0 %4567
  %v4571 = vmul.f32 %v4534, %v4566
  %v4572 = vmul.f32 %v4536, %v4568
  %v4573 = vld [vmem:[#allocation2 + $0xc0] sm:$0xff]
  %v4574 = vld [vmem:[#allocation2 + $0xd0] sm:$0xff]
  %4577 = vrot.lane.b32.xlu0 %v4523, 32
  %v4578 = vpop.permute.xlu0 %4577
  %4579 = vrot.lane.b32.xlu0 %v4524, 32
  %v4580 = vpop.permute.xlu0 %4579
  %v4581 = vsel %vm82, %v4578, 0
  %v4583 = vsel %vm82, %v4580, 0
  %4585 = vmatprep.subr.mxu0 0.0
  %4586 = vmatpush1.msra.mxu0 %v2941
  %4587 = vmatprep.subr.mxu0 0.0
  %4588 = vmatpush1.msra.mxu0 %v2942
  %4589 = vmatprep.subr.mxu0 0.0
  %4590 = vmatpush1.msra.mxu0 %v2943
  %4591 = vmatprep.subr.mxu0 0.0
  %4592 = vmatpush1.msra.mxu0 %v2944
  %4593 = vmatprep.subr.mxu0 0.0
  %4594 = vmatpush1.msra.mxu0 0.0
  %4595 = vmatprep.subr.mxu0 0.0
  %4596 = vmatpush1.msra.mxu0 0.0
  %4597 = vmatprep.subr.mxu0 0.0
  %4598 = vmatpush1.msra.mxu0 0.0
  %4599 = vmatprep.subr.mxu0 0.0
  %4600 = vmatpush1.msra.mxu0 0.0
  %4601 = vmatprep.subr.mxu0 0.0
  %4602 = vmatpush1.msra.mxu0 0.0
  %4603 = vmatprep.subr.mxu0 0.0
  %4604 = vmatpush1.msra.mxu0 0.0
  %4605 = vmatprep.subr.mxu0 0.0
  %4606 = vmatpush1.msra.mxu0 0.0
  %4607 = vmatprep.subr.mxu0 0.0
  %4608 = vmatpush1.msra.mxu0 0.0
  %4609 = vmatprep.subr.mxu0 0.0
  %4610 = vmatpush1.msra.mxu0 0.0
  %4611 = vmatprep.subr.mxu0 0.0
  %4612 = vmatpush1.msra.mxu0 0.0
  %4613 = vmatprep.subr.mxu0 0.0
  %4614 = vmatpush1.msra.mxu0 0.0
  %4615 = vmatprep.subr.mxu0 0.0
  %4616 = vmatpush1.msra.mxu0 0.0
  %4617 = vmatprep.subr.mxu0 0.0
  %4618 = vmatpush1.msra.mxu0 0.0
  %4619 = vmatprep.subr.mxu0 0.0
  %4620 = vmatpush1.msra.mxu0 0.0
  %4621 = vmatprep.subr.mxu0 0.0
  %4622 = vmatpush1.msra.mxu0 0.0
  %4623 = vmatprep.subr.mxu0 0.0
  %4624 = vmatpush1.msra.mxu0 0.0
  %4625 = vmatprep.subr.mxu0 0.0
  %4626 = vmatpush1.msra.mxu0 0.0
  %4627 = vmatprep.subr.mxu0 0.0
  %4628 = vmatpush1.msra.mxu0 0.0
  %4629 = vmatprep.subr.mxu0 0.0
  %4630 = vmatpush1.msra.mxu0 0.0
  %4631 = vmatprep.subr.mxu0 0.0
  %4632 = vmatpush1.msra.mxu0 0.0
  %4633 = vmatprep.subr.mxu0 0.0
  %4634 = vmatpush1.msra.mxu0 0.0
  %4635 = vmatprep.subr.mxu0 0.0
  %4636 = vmatpush1.msra.mxu0 0.0
  %4637 = vmatprep.subr.mxu0 0.0
  %4638 = vmatpush1.msra.mxu0 0.0
  %4639 = vmatprep.subr.mxu0 0.0
  %4640 = vmatpush1.msra.mxu0 0.0
  %4641 = vmatprep.subr.mxu0 0.0
  %4642 = vmatpush1.msra.mxu0 0.0
  %4643 = vmatprep.subr.mxu0 0.0
  %4644 = vmatpush1.msra.mxu0 0.0
  %4645 = vmatprep.subr.mxu0 0.0
  %4646 = vmatpush1.msra.mxu0 0.0
  %4647 = vmatprep.subr.mxu0 0.0
  %4648 = vmatpush1.msra.mxu0 0.0
  %4649 = vmatprep.mubr.f32.mxu0 0.0
  %4650 = vmatmul.mubr.f32.gmra.mrb[0].mxu0 %v4581
  %v4651 = vpop.f32.mrb[0].mxu0
  %v4652 = vadd.f32 0.0, %v4651
  %v4653 = vpop.f32.mrb[0].mxu0
  %4654 = vmatprep.mubr.f32.mxu0 0.0
  %4655 = vmatmul.mubr.f32.gmra.mrb[0].mxu0 %v4583
  %v4656 = vpop.f32.mrb[0].mxu0
  %v4657 = vadd.f32 0.0, %v4656
  %v4658 = vpop.f32.mrb[0].mxu0
  %4659 = vdwg.mxu0
  %v4660 = vadd.f32 %v4573, %v4652
  %v4661 = vadd.f32 %v4574, %v4657
  %v4662 = vld [vmem:[#allocation2 + $0x28] sm:$0xff]
  %v4663 = vld [vmem:[#allocation2 + $0x38] sm:$0xff]
  %4666 = vrot.lane.b32.xlu0 %v4571, 32
  %v4667 = vpop.permute.xlu0 %4666
  %4668 = vrot.lane.b32.xlu0 %v4572, 32
  %v4669 = vpop.permute.xlu0 %4668
  %v4670 = vsel %vm82, %v4667, 0
  %v4672 = vsel %vm82, %v4669, 0
  %4674 = vmatprep.subr.mxu0 0.0
  %4675 = vmatpush1.msra.mxu0 %v2945
  %4676 = vmatprep.subr.mxu0 0.0
  %4677 = vmatpush1.msra.mxu0 %v2946
  %4678 = vmatprep.subr.mxu0 0.0
  %4679 = vmatpush1.msra.mxu0 %v2947
  %4680 = vmatprep.subr.mxu0 0.0
  %4681 = vmatpush1.msra.mxu0 %v2948
  %4682 = vmatprep.subr.mxu0 0.0
  %4683 = vmatpush1.msra.mxu0 0.0
  %4684 = vmatprep.subr.mxu0 0.0
  %4685 = vmatpush1.msra.mxu0 0.0
  %4686 = vmatprep.subr.mxu0 0.0
  %4687 = vmatpush1.msra.mxu0 0.0
  %4688 = vmatprep.subr.mxu0 0.0
  %4689 = vmatpush1.msra.mxu0 0.0
  %4690 = vmatprep.subr.mxu0 0.0
  %4691 = vmatpush1.msra.mxu0 0.0
  %4692 = vmatprep.subr.mxu0 0.0
  %4693 = vmatpush1.msra.mxu0 0.0
  %4694 = vmatprep.subr.mxu0 0.0
  %4695 = vmatpush1.msra.mxu0 0.0
  %4696 = vmatprep.subr.mxu0 0.0
  %4697 = vmatpush1.msra.mxu0 0.0
  %4698 = vmatprep.subr.mxu0 0.0
  %4699 = vmatpush1.msra.mxu0 0.0
  %4700 = vmatprep.subr.mxu0 0.0
  %4701 = vmatpush1.msra.mxu0 0.0
  %4702 = vmatprep.subr.mxu0 0.0
  %4703 = vmatpush1.msra.mxu0 0.0
  %4704 = vmatprep.subr.mxu0 0.0
  %4705 = vmatpush1.msra.mxu0 0.0
  %4706 = vmatprep.subr.mxu0 0.0
  %4707 = vmatpush1.msra.mxu0 0.0
  %4708 = vmatprep.subr.mxu0 0.0
  %4709 = vmatpush1.msra.mxu0 0.0
  %4710 = vmatprep.subr.mxu0 0.0
  %4711 = vmatpush1.msra.mxu0 0.0
  %4712 = vmatprep.subr.mxu0 0.0
  %4713 = vmatpush1.msra.mxu0 0.0
  %4714 = vmatprep.subr.mxu0 0.0
  %4715 = vmatpush1.msra.mxu0 0.0
  %4716 = vmatprep.subr.mxu0 0.0
  %4717 = vmatpush1.msra.mxu0 0.0
  %4718 = vmatprep.subr.mxu0 0.0
  %4719 = vmatpush1.msra.mxu0 0.0
  %4720 = vmatprep.subr.mxu0 0.0
  %4721 = vmatpush1.msra.mxu0 0.0
  %4722 = vmatprep.subr.mxu0 0.0
  %4723 = vmatpush1.msra.mxu0 0.0
  %4724 = vmatprep.subr.mxu0 0.0
  %4725 = vmatpush1.msra.mxu0 0.0
  %4726 = vmatprep.subr.mxu0 0.0
  %4727 = vmatpush1.msra.mxu0 0.0
  %4728 = vmatprep.subr.mxu0 0.0
  %4729 = vmatpush1.msra.mxu0 0.0
  %4730 = vmatprep.subr.mxu0 0.0
  %4731 = vmatpush1.msra.mxu0 0.0
  %4732 = vmatprep.subr.mxu0 0.0
  %4733 = vmatpush1.msra.mxu0 0.0
  %4734 = vmatprep.subr.mxu0 0.0
  %4735 = vmatpush1.msra.mxu0 0.0
  %4736 = vmatprep.subr.mxu0 0.0
  %4737 = vmatpush1.msra.mxu0 0.0
  %4738 = vmatprep.mubr.f32.mxu0 0.0
  %4739 = vmatmul.mubr.f32.gmra.mrb[0].mxu0 %v4670
  %v4740 = vpop.f32.mrb[0].mxu0
  %v4741 = vadd.f32 0.0, %v4740
  %v4742 = vpop.f32.mrb[0].mxu0
  %4743 = vmatprep.mubr.f32.mxu0 0.0
  %4744 = vmatmul.mubr.f32.gmra.mrb[0].mxu0 %v4672
  %v4745 = vpop.f32.mrb[0].mxu0
  %v4746 = vadd.f32 0.0, %v4745
  %v4747 = vpop.f32.mrb[0].mxu0
  %4748 = vdwg.mxu0
  %v4749 = vadd.f32 %v4662, %v4741
  %v4750 = vadd.f32 %v4663, %v4746
  %v4751 = vxor.u32 %v4660, 2147483648
  %v4752 = vxor.u32 %v4661, 2147483648
  %v4753 = vmul.f32 %v4751, 1.442695
  %v4754 = vpow.pop %v4753
  %v4755 = vmul.f32 %v4752, 1.442695
  %v4756 = vpow.pop %v4755
  %v4757 = vadd.f32 %v4754, 1.0
  %v4758 = vadd.f32 %v4756, 1.0
  %v4759 = vrcp.pop %v4757
  %v4760 = vmul.f32 1.0, %v4759
  %v4761 = vrcp.pop %v4758
  %v4762 = vmul.f32 1.0, %v4761
  %v4763 = vtanh.pop %v4660
  %v4764 = vtanh.pop %v4661
  %v4765 = vmul.f32 %v4760, %v4511
  %v4766 = vmul.f32 %v4762, %v4512
  %4769 = vrot.lane.b32.xlu0 %v4763, 64
  %v4770 = vpop.permute.xlu0 %4769
  %4771 = vrot.lane.b32.xlu0 %v4764, 64
  %v4772 = vpop.permute.xlu0 %4771
  %v4775 = vmul.f32 %v4760, %v4770
  %v4776 = vmul.f32 %v4762, %v4772
  %4779 = vrot.lane.b32.xlu0 %v4775, 32
  %v4780 = vpop.permute.xlu0 %4779
  %4781 = vrot.lane.b32.xlu0 %v4776, 32
  %v4782 = vpop.permute.xlu0 %4781
  %v4785 = vadd.f32 %v4765, %v4780
  %v4786 = vadd.f32 %v4766, %v4782
  %v4787 = vtanh.pop %v4785
  %v4788 = vtanh.pop %v4786
  %4791 = vrot.lane.b32.xlu0 %v4787, 64
  %v4792 = vpop.permute.xlu0 %4791
  %4793 = vrot.lane.b32.xlu0 %v4788, 64
  %v4794 = vpop.permute.xlu0 %4793
  %v4797 = vmul.f32 %v4760, %v4792
  %v4798 = vmul.f32 %v4762, %v4794
  %v4799 = vxor.u32 %v4749, 2147483648
  %v4800 = vxor.u32 %v4750, 2147483648
  %v4801 = vmul.f32 %v4799, 1.442695
  %v4802 = vpow.pop %v4801
  %v4803 = vmul.f32 %v4800, 1.442695
  %v4804 = vpow.pop %v4803
  %v4805 = vadd.f32 %v4802, 1.0
  %v4806 = vadd.f32 %v4804, 1.0
  %v4807 = vrcp.pop %v4805
  %v4808 = vmul.f32 1.0, %v4807
  %v4809 = vrcp.pop %v4806
  %v4810 = vmul.f32 1.0, %v4809
  %v4811 = vtanh.pop %v4749
  %v4812 = vtanh.pop %v4750
  %v4813 = vmul.f32 %v4808, %v4559
  %v4814 = vmul.f32 %v4810, %v4560
  %4817 = vrot.lane.b32.xlu0 %v4811, 64
  %v4818 = vpop.permute.xlu0 %4817
  %4819 = vrot.lane.b32.xlu0 %v4812, 64
  %v4820 = vpop.permute.xlu0 %4819
  %v4823 = vmul.f32 %v4808, %v4818
  %v4824 = vmul.f32 %v4810, %v4820
  %4827 = vrot.lane.b32.xlu0 %v4823, 32
  %v4828 = vpop.permute.xlu0 %4827
  %4829 = vrot.lane.b32.xlu0 %v4824, 32
  %v4830 = vpop.permute.xlu0 %4829
  %v4833 = vadd.f32 %v4813, %v4828
  %v4834 = vadd.f32 %v4814, %v4830
  %v4835 = vtanh.pop %v4833
  %v4836 = vtanh.pop %v4834
  %4839 = vrot.lane.b32.xlu0 %v4835, 64
  %v4840 = vpop.permute.xlu0 %4839
  %4841 = vrot.lane.b32.xlu0 %v4836, 64
  %v4842 = vpop.permute.xlu0 %4841
  %v4845 = vmul.f32 %v4808, %v4840
  %v4846 = vmul.f32 %v4810, %v4842
  %v4847 = vld [vmem:[#allocation2 + $0xf0] sm:$0xff]
  %4850 = vrot.lane.b32.xlu0 %v4797, 32
  %v4851 = vpop.permute.xlu0 %4850
  %4852 = vrot.lane.b32.xlu0 %v4798, 32
  %v4853 = vpop.permute.xlu0 %4852
  %v4854 = vsel %vm82, %v4851, 0
  %v4856 = vsel %vm82, %v4853, 0
  %4858 = vmatprep.subr.mxu0 0.0
  %4859 = vmatpush1.msra.mxu0 %v2941
  %4860 = vmatprep.subr.mxu0 0.0
  %4861 = vmatpush1.msra.mxu0 %v2942
  %4862 = vmatprep.subr.mxu0 0.0
  %4863 = vmatpush1.msra.mxu0 %v2943
  %4864 = vmatprep.subr.mxu0 0.0
  %4865 = vmatpush1.msra.mxu0 %v2944
  %4866 = vmatprep.subr.mxu0 0.0
  %4867 = vmatpush1.msra.mxu0 0.0
  %4868 = vmatprep.subr.mxu0 0.0
  %4869 = vmatpush1.msra.mxu0 0.0
  %4870 = vmatprep.subr.mxu0 0.0
  %4871 = vmatpush1.msra.mxu0 0.0
  %4872 = vmatprep.subr.mxu0 0.0
  %4873 = vmatpush1.msra.mxu0 0.0
  %4874 = vmatprep.subr.mxu0 0.0
  %4875 = vmatpush1.msra.mxu0 0.0
  %4876 = vmatprep.subr.mxu0 0.0
  %4877 = vmatpush1.msra.mxu0 0.0
  %4878 = vmatprep.subr.mxu0 0.0
  %4879 = vmatpush1.msra.mxu0 0.0
  %4880 = vmatprep.subr.mxu0 0.0
  %4881 = vmatpush1.msra.mxu0 0.0
  %4882 = vmatprep.subr.mxu0 0.0
  %4883 = vmatpush1.msra.mxu0 0.0
  %4884 = vmatprep.subr.mxu0 0.0
  %4885 = vmatpush1.msra.mxu0 0.0
  %4886 = vmatprep.subr.mxu0 0.0
  %4887 = vmatpush1.msra.mxu0 0.0
  %4888 = vmatprep.subr.mxu0 0.0
  %4889 = vmatpush1.msra.mxu0 0.0
  %4890 = vmatprep.subr.mxu0 0.0
  %4891 = vmatpush1.msra.mxu0 0.0
  %4892 = vmatprep.subr.mxu0 0.0
  %4893 = vmatpush1.msra.mxu0 0.0
  %4894 = vmatprep.subr.mxu0 0.0
  %4895 = vmatpush1.msra.mxu0 0.0
  %4896 = vmatprep.subr.mxu0 0.0
  %4897 = vmatpush1.msra.mxu0 0.0
  %4898 = vmatprep.subr.mxu0 0.0
  %4899 = vmatpush1.msra.mxu0 0.0
  %4900 = vmatprep.subr.mxu0 0.0
  %4901 = vmatpush1.msra.mxu0 0.0
  %4902 = vmatprep.subr.mxu0 0.0
  %4903 = vmatpush1.msra.mxu0 0.0
  %4904 = vmatprep.subr.mxu0 0.0
  %4905 = vmatpush1.msra.mxu0 0.0
  %4906 = vmatprep.subr.mxu0 0.0
  %4907 = vmatpush1.msra.mxu0 0.0
  %4908 = vmatprep.subr.mxu0 0.0
  %4909 = vmatpush1.msra.mxu0 0.0
  %4910 = vmatprep.subr.mxu0 0.0
  %4911 = vmatpush1.msra.mxu0 0.0
  %4912 = vmatprep.subr.mxu0 0.0
  %4913 = vmatpush1.msra.mxu0 0.0
  %4914 = vmatprep.subr.mxu0 0.0
  %4915 = vmatpush1.msra.mxu0 0.0
  %4916 = vmatprep.subr.mxu0 0.0
  %4917 = vmatpush1.msra.mxu0 0.0
  %4918 = vmatprep.subr.mxu0 0.0
  %4919 = vmatpush1.msra.mxu0 0.0
  %4920 = vmatprep.subr.mxu0 0.0
  %4921 = vmatpush1.msra.mxu0 0.0
  %4922 = vmatprep.mubr.f32.mxu0 0.0
  %4923 = vmatmul.mubr.f32.gmra.mrb[0].mxu0 %v4854
  %v4924 = vpop.f32.mrb[0].mxu0
  %v4925 = vpop.f32.mrb[0].mxu0
  %4926 = vmatprep.mubr.f32.mxu0 0.0
  %4927 = vmatmul.mubr.f32.gmra.mrb[0].mxu0 %v4856
  %v4928 = vpop.f32.mrb[0].mxu0
  %v4929 = vadd.f32 0.0, %v4928
  %v4930 = vpop.f32.mrb[0].mxu0
  %4931 = vdwg.mxu0
  %v4932 = vadd.f32 %v4847, %v4929
  %v4933 = vld [vmem:[#allocation2 + $0x18] sm:$0xff]
  %4936 = vrot.lane.b32.xlu0 %v4845, 32
  %v4937 = vpop.permute.xlu0 %4936
  %4938 = vrot.lane.b32.xlu0 %v4846, 32
  %v4939 = vpop.permute.xlu0 %4938
  %v4940 = vsel %vm82, %v4937, 0
  %v4942 = vsel %vm82, %v4939, 0
  %4944 = vmatprep.subr.mxu0 0.0
  %4945 = vmatpush1.msra.mxu0 %v2945
  %4946 = vmatprep.subr.mxu0 0.0
  %4947 = vmatpush1.msra.mxu0 %v2946
  %4948 = vmatprep.subr.mxu0 0.0
  %4949 = vmatpush1.msra.mxu0 %v2947
  %4950 = vmatprep.subr.mxu0 0.0
  %4951 = vmatpush1.msra.mxu0 %v2948
  %4952 = vmatprep.subr.mxu0 0.0
  %4953 = vmatpush1.msra.mxu0 0.0
  %4954 = vmatprep.subr.mxu0 0.0
  %4955 = vmatpush1.msra.mxu0 0.0
  %4956 = vmatprep.subr.mxu0 0.0
  %4957 = vmatpush1.msra.mxu0 0.0
  %4958 = vmatprep.subr.mxu0 0.0
  %4959 = vmatpush1.msra.mxu0 0.0
  %4960 = vmatprep.subr.mxu0 0.0
  %4961 = vmatpush1.msra.mxu0 0.0
  %4962 = vmatprep.subr.mxu0 0.0
  %4963 = vmatpush1.msra.mxu0 0.0
  %4964 = vmatprep.subr.mxu0 0.0
  %4965 = vmatpush1.msra.mxu0 0.0
  %4966 = vmatprep.subr.mxu0 0.0
  %4967 = vmatpush1.msra.mxu0 0.0
  %4968 = vmatprep.subr.mxu0 0.0
  %4969 = vmatpush1.msra.mxu0 0.0
  %4970 = vmatprep.subr.mxu0 0.0
  %4971 = vmatpush1.msra.mxu0 0.0
  %4972 = vmatprep.subr.mxu0 0.0
  %4973 = vmatpush1.msra.mxu0 0.0
  %4974 = vmatprep.subr.mxu0 0.0
  %4975 = vmatpush1.msra.mxu0 0.0
  %4976 = vmatprep.subr.mxu0 0.0
  %4977 = vmatpush1.msra.mxu0 0.0
  %4978 = vmatprep.subr.mxu0 0.0
  %4979 = vmatpush1.msra.mxu0 0.0
  %4980 = vmatprep.subr.mxu0 0.0
  %4981 = vmatpush1.msra.mxu0 0.0
  %4982 = vmatprep.subr.mxu0 0.0
  %4983 = vmatpush1.msra.mxu0 0.0
  %4984 = vmatprep.subr.mxu0 0.0
  %4985 = vmatpush1.msra.mxu0 0.0
  %4986 = vmatprep.subr.mxu0 0.0
  %4987 = vmatpush1.msra.mxu0 0.0
  %4988 = vmatprep.subr.mxu0 0.0
  %4989 = vmatpush1.msra.mxu0 0.0
  %4990 = vmatprep.subr.mxu0 0.0
  %4991 = vmatpush1.msra.mxu0 0.0
  %4992 = vmatprep.subr.mxu0 0.0
  %4993 = vmatpush1.msra.mxu0 0.0
  %4994 = vmatprep.subr.mxu0 0.0
  %4995 = vmatpush1.msra.mxu0 0.0
  %4996 = vmatprep.subr.mxu0 0.0
  %4997 = vmatpush1.msra.mxu0 0.0
  %4998 = vmatprep.subr.mxu0 0.0
  %4999 = vmatpush1.msra.mxu0 0.0
  %5000 = vmatprep.subr.mxu0 0.0
  %5001 = vmatpush1.msra.mxu0 0.0
  %5002 = vmatprep.subr.mxu0 0.0
  %5003 = vmatpush1.msra.mxu0 0.0
  %5004 = vmatprep.subr.mxu0 0.0
  %5005 = vmatpush1.msra.mxu0 0.0
  %5006 = vmatprep.subr.mxu0 0.0
  %5007 = vmatpush1.msra.mxu0 0.0
  %5008 = vmatprep.mubr.f32.mxu0 0.0
  %5009 = vmatmul.mubr.f32.gmra.mrb[0].mxu0 %v4940
  %v5010 = vpop.f32.mrb[0].mxu0
  %v5011 = vpop.f32.mrb[0].mxu0
  %5012 = vmatprep.mubr.f32.mxu0 0.0
  %5013 = vmatmul.mubr.f32.gmra.mrb[0].mxu0 %v4942
  %v5014 = vpop.f32.mrb[0].mxu0
  %v5015 = vadd.f32 0.0, %v5014
  %v5016 = vpop.f32.mrb[0].mxu0
  %5017 = vdwg.mxu0
  %v5018 = vadd.f32 %v4933, %v5015
  %v5019 = vxor.u32 %v4932, 2147483648
  %v5020 = vmul.f32 %v5019, 1.442695
  %v5021 = vpow.pop %v5020
  %v5022 = vadd.f32 %v5021, 1.0
  %v5023 = vrcp.pop %v5022
  %v5024 = vmul.f32 1.0, %v5023
  %v5025 = vtanh.pop %v4932
  %v5026 = vmul.f32 %v5024, %v4786
  %5028 = vrot.lane.b32.xlu0 %v5025, 64
  %v5029 = vpop.permute.xlu0 %5028
  %v5031 = vmul.f32 %v5024, %v5029
  %5033 = vrot.lane.b32.xlu0 %v5031, 32
  %v5034 = vpop.permute.xlu0 %5033
  %v5036 = vadd.f32 %v5026, %v5034
  %v5037 = vtanh.pop %v5036
  %5039 = vrot.lane.b32.xlu0 %v5037, 64
  %v5040 = vpop.permute.xlu0 %5039
  %v5042 = vmul.f32 %v5024, %v5040
  %v5043 = vxor.u32 %v5018, 2147483648
  %v5044 = vmul.f32 %v5043, 1.442695
  %v5045 = vpow.pop %v5044
  %v5046 = vadd.f32 %v5045, 1.0
  %v5047 = vrcp.pop %v5046
  %v5048 = vmul.f32 1.0, %v5047
  %v5049 = vtanh.pop %v5018
  %v5050 = vmul.f32 %v5048, %v4834
  %5052 = vrot.lane.b32.xlu0 %v5049, 64
  %v5053 = vpop.permute.xlu0 %5052
  %v5055 = vmul.f32 %v5048, %v5053
  %5057 = vrot.lane.b32.xlu0 %v5055, 32
  %v5058 = vpop.permute.xlu0 %5057
  %v5060 = vadd.f32 %v5050, %v5058
  %v5061 = vtanh.pop %v5060
  %5063 = vrot.lane.b32.xlu0 %v5061, 64
  %v5064 = vpop.permute.xlu0 %5063
  %v5066 = vmul.f32 %v5048, %v5064
  %v5067 = vrot.slane %v3154, 7
  %v5069 = vrot.slane %v3428, 6
  %v5071 = vrot.slane %v3702, 5
  %v5073 = vrot.slane %v3976, 4
  %v5075 = vrot.slane %v4250, 3
  %v5077 = vrot.slane %v4524, 2
  %v5079 = vrot.slane %v4798, 1
  %vm5081 = vcmask 1040384
  %v5082 = vsel %vm5081, %v5067, %v5069
  %vm5083 = vcmask 1041408
  %v5084 = vsel %vm5083, %v5082, %v5071
  %vm5085 = vcmask 1042432
  %v5086 = vsel %vm5085, %v5084, %v5073
  %vm5087 = vcmask 1043456
  %v5088 = vsel %vm5087, %v5086, %v5075
  %vm5089 = vcmask 1044480
  %v5090 = vsel %vm5089, %v5088, %v5077
  %vm5091 = vcmask 1045504
  %v5092 = vsel %vm5091, %v5090, %v5079
  %vm5093 = vcmask 1046528
  %v5094 = vsel %vm5093, %v5092, %v5042
  %v5096 = vrot.slane %v5066, 7
  %v5098 = vrot.slane %v4846, 6
  %v5100 = vrot.slane %v4572, 5
  %v5102 = vrot.slane %v4298, 4
  %v5104 = vrot.slane %v4024, 3
  %v5106 = vrot.slane %v3750, 2
  %v5108 = vrot.slane %v3476, 1
  %v5110 = vsel %vm5081, %v5096, %v5098
  %v5111 = vsel %vm5083, %v5110, %v5100
  %v5112 = vsel %vm5085, %v5111, %v5102
  %v5113 = vsel %vm5087, %v5112, %v5104
  %v5114 = vsel %vm5089, %v5113, %v5106
  %v5115 = vsel %vm5091, %v5114, %v5108
  %v5116 = vsel %vm5093, %v5115, %v3202
  %v5117 = vld [vmem:[%s9] sm:$0xff]
  %v5118 = vld [vmem:[%s9 + $0x8] sm:$0xff]
  %v5119 = vld [vmem:[%s9 + $0x10] sm:$0xff]
  %v5120 = vld [vmem:[%s9 + $0x18] sm:$0xff]
  %v5121 = vld [vmem:[%s9 + $0x20] sm:$0xff]
  %v5122 = vld [vmem:[%s9 + $0x28] sm:$0xff]
  %v5123 = vld [vmem:[%s9 + $0x30] sm:$0xff]
  %v5124 = vld [vmem:[%s9 + $0x38] sm:$0xff]
  %5126 = vrot.lane.b32.xlu0 %v5116, 32
  %v5127 = vpop.permute.xlu0 %5126
  %v5128 = vsel %vm82, %v5127, 0
  %5130 = vmatprep.subr.mxu0 0.0
  %5131 = vmatpush1.msra.mxu0 %v5121
  %5132 = vmatprep.subr.mxu0 0.0
  %5133 = vmatpush1.msra.mxu0 %v5122
  %5134 = vmatprep.subr.mxu0 0.0
  %5135 = vmatpush1.msra.mxu0 %v5123
  %5136 = vmatprep.subr.mxu0 0.0
  %5137 = vmatpush1.msra.mxu0 %v5124
  %5138 = vmatprep.subr.mxu0 0.0
  %5139 = vmatpush1.msra.mxu0 0.0
  %5140 = vmatprep.subr.mxu0 0.0
  %5141 = vmatpush1.msra.mxu0 0.0
  %5142 = vmatprep.subr.mxu0 0.0
  %5143 = vmatpush1.msra.mxu0 0.0
  %5144 = vmatprep.subr.mxu0 0.0
  %5145 = vmatpush1.msra.mxu0 0.0
  %5146 = vmatprep.subr.mxu0 0.0
  %5147 = vmatpush1.msra.mxu0 0.0
  %5148 = vmatprep.subr.mxu0 0.0
  %5149 = vmatpush1.msra.mxu0 0.0
  %5150 = vmatprep.subr.mxu0 0.0
  %5151 = vmatpush1.msra.mxu0 0.0
  %5152 = vmatprep.subr.mxu0 0.0
  %5153 = vmatpush1.msra.mxu0 0.0
  %5154 = vmatprep.subr.mxu0 0.0
  %5155 = vmatpush1.msra.mxu0 0.0
  %5156 = vmatprep.subr.mxu0 0.0
  %5157 = vmatpush1.msra.mxu0 0.0
  %5158 = vmatprep.subr.mxu0 0.0
  %5159 = vmatpush1.msra.mxu0 0.0
  %5160 = vmatprep.subr.mxu0 0.0
  %5161 = vmatpush1.msra.mxu0 0.0
  %5162 = vmatprep.subr.mxu0 0.0
  %5163 = vmatpush1.msra.mxu0 0.0
  %5164 = vmatprep.subr.mxu0 0.0
  %5165 = vmatpush1.msra.mxu0 0.0
  %5166 = vmatprep.subr.mxu0 0.0
  %5167 = vmatpush1.msra.mxu0 0.0
  %5168 = vmatprep.subr.mxu0 0.0
  %5169 = vmatpush1.msra.mxu0 0.0
  %5170 = vmatprep.subr.mxu0 0.0
  %5171 = vmatpush1.msra.mxu0 0.0
  %5172 = vmatprep.subr.mxu0 0.0
  %5173 = vmatpush1.msra.mxu0 0.0
  %5174 = vmatprep.subr.mxu0 0.0
  %5175 = vmatpush1.msra.mxu0 0.0
  %5176 = vmatprep.subr.mxu0 0.0
  %5177 = vmatpush1.msra.mxu0 0.0
  %5178 = vmatprep.subr.mxu0 0.0
  %5179 = vmatpush1.msra.mxu0 0.0
  %5180 = vmatprep.subr.mxu0 0.0
  %5181 = vmatpush1.msra.mxu0 0.0
  %5182 = vmatprep.subr.mxu0 0.0
  %5183 = vmatpush1.msra.mxu0 0.0
  %5184 = vmatprep.subr.mxu0 0.0
  %5185 = vmatpush1.msra.mxu0 0.0
  %5186 = vmatprep.subr.mxu0 0.0
  %5187 = vmatpush1.msra.mxu0 0.0
  %5188 = vmatprep.subr.mxu0 0.0
  %5189 = vmatpush1.msra.mxu0 0.0
  %5190 = vmatprep.subr.mxu0 0.0
  %5191 = vmatpush1.msra.mxu0 0.0
  %5192 = vmatprep.subr.mxu0 0.0
  %5193 = vmatpush1.msra.mxu0 0.0
  %5194 = vmatprep.mubr.f32.mxu0 0.0
  %5195 = vmatmul.mubr.f32.gmra.mrb[0].mxu0 %v5128
  %v5196 = vpop.f32.mrb[0].mxu0
  %v5197 = vadd.f32 0.0, %v5196
  %v5198 = vpop.f32.mrb[0].mxu0
  %5199 = vdwg.mxu0
  %5201 = vrot.lane.b32.xlu0 %v5094, 32
  %v5202 = vpop.permute.xlu0 %5201
  %v5203 = vsel %vm82, %v5202, 0
  %5205 = vmatprep.subr.mxu0 0.0
  %5206 = vmatpush1.msra.mxu0 %v5117
  %5207 = vmatprep.subr.mxu0 0.0
  %5208 = vmatpush1.msra.mxu0 %v5118
  %5209 = vmatprep.subr.mxu0 0.0
  %5210 = vmatpush1.msra.mxu0 %v5119
  %5211 = vmatprep.subr.mxu0 0.0
  %5212 = vmatpush1.msra.mxu0 %v5120
  %5213 = vmatprep.subr.mxu0 0.0
  %5214 = vmatpush1.msra.mxu0 0.0
  %5215 = vmatprep.subr.mxu0 0.0
  %5216 = vmatpush1.msra.mxu0 0.0
  %5217 = vmatprep.subr.mxu0 0.0
  %5218 = vmatpush1.msra.mxu0 0.0
  %5219 = vmatprep.subr.mxu0 0.0
  %5220 = vmatpush1.msra.mxu0 0.0
  %5221 = vmatprep.subr.mxu0 0.0
  %5222 = vmatpush1.msra.mxu0 0.0
  %5223 = vmatprep.subr.mxu0 0.0
  %5224 = vmatpush1.msra.mxu0 0.0
  %5225 = vmatprep.subr.mxu0 0.0
  %5226 = vmatpush1.msra.mxu0 0.0
  %5227 = vmatprep.subr.mxu0 0.0
  %5228 = vmatpush1.msra.mxu0 0.0
  %5229 = vmatprep.subr.mxu0 0.0
  %5230 = vmatpush1.msra.mxu0 0.0
  %5231 = vmatprep.subr.mxu0 0.0
  %5232 = vmatpush1.msra.mxu0 0.0
  %5233 = vmatprep.subr.mxu0 0.0
  %5234 = vmatpush1.msra.mxu0 0.0
  %5235 = vmatprep.subr.mxu0 0.0
  %5236 = vmatpush1.msra.mxu0 0.0
  %5237 = vmatprep.subr.mxu0 0.0
  %5238 = vmatpush1.msra.mxu0 0.0
  %5239 = vmatprep.subr.mxu0 0.0
  %5240 = vmatpush1.msra.mxu0 0.0
  %5241 = vmatprep.subr.mxu0 0.0
  %5242 = vmatpush1.msra.mxu0 0.0
  %5243 = vmatprep.subr.mxu0 0.0
  %5244 = vmatpush1.msra.mxu0 0.0
  %5245 = vmatprep.subr.mxu0 0.0
  %5246 = vmatpush1.msra.mxu0 0.0
  %5247 = vmatprep.subr.mxu0 0.0
  %5248 = vmatpush1.msra.mxu0 0.0
  %5249 = vmatprep.subr.mxu0 0.0
  %5250 = vmatpush1.msra.mxu0 0.0
  %5251 = vmatprep.subr.mxu0 0.0
  %5252 = vmatpush1.msra.mxu0 0.0
  %5253 = vmatprep.subr.mxu0 0.0
  %5254 = vmatpush1.msra.mxu0 0.0
  %5255 = vmatprep.subr.mxu0 0.0
  %5256 = vmatpush1.msra.mxu0 0.0
  %5257 = vmatprep.subr.mxu0 0.0
  %5258 = vmatpush1.msra.mxu0 0.0
  %5259 = vmatprep.subr.mxu0 0.0
  %5260 = vmatpush1.msra.mxu0 0.0
  %5261 = vmatprep.subr.mxu0 0.0
  %5262 = vmatpush1.msra.mxu0 0.0
  %5263 = vmatprep.subr.mxu0 0.0
  %5264 = vmatpush1.msra.mxu0 0.0
  %5265 = vmatprep.subr.mxu0 0.0
  %5266 = vmatpush1.msra.mxu0 0.0
  %5267 = vmatprep.subr.mxu0 0.0
  %5268 = vmatpush1.msra.mxu0 0.0
  %5269 = vmatprep.mubr.f32.mxu0 0.0
  %5270 = vmatmul.mubr.f32.gmra.mrb[0].mxu0 %v5203
  %v5271 = vpop.f32.mrb[0].mxu0
  %v5272 = vadd.f32 %v5197, %v5271
  %v5273 = vpop.f32.mrb[0].mxu0
  %5274 = vdwg.mxu0
  %v5275 = vld [vmem:[%s10] sm:$0x1]
  %v5277 = vlaneseq
  %v5278 = vshrl.u32 %v5277, 7
  %v5279 = vsub.s32 0, %v5278
  %v5280 = vrot.slane %v5275, %v5279
  %v5282 = vadd.f32 %v5272, %v5280
  %vm5283 = vcmp.ge.f32.partialorder %v5282, 0.0
  %v5284 = vmul.f32 %v5282, 0.01
  %v5285 = vsel %vm5283, %v5282, %v5284
  %v5286 = vld [vmem:[%s11] sm:$0x1]
  %v5288 = vlaneseq
  %v5289 = vshrl.u32 %v5288, 7
  %v5290 = vsub.s32 0, %v5289
  %v5291 = vrot.slane %v5286, %v5290
  %v5293 = vmul.f32 %v5285, %v5291
  %v5294 = vsel %vm82, %v5293, 0.0
  %5295 = vadd.xlane.f32.xlu0 %v5294
  %v5296 = vpop.xlane.xlu0 %5295
  %v5297 = vld [vmem:[#allocation3] sm:$0x1]
  %v5299 = vlaneseq
  %v5300 = vshrl.u32 %v5299, 7
  %v5301 = vsub.s32 0, %v5300
  %v5302 = vrot.slane %v5297, %v5301
  %v5304 = vadd.f32 %v5296, %v5302
  %v5305 = vxor.u32 %v5304, 2147483648
  %v5306 = vmul.f32 %v5305, 1.442695
  %v5307 = vpow.pop %v5306
  %v5308 = vadd.f32 %v5307, 1.0
  %v5309 = vrcp.pop %v5308
  %v5310 = vmul.f32 1.0, %v5309
  %vm5311 = vcmask 7168
  %5312 = vst.msk [vmem:[%s13] sm:$0xff] %vm5311, %v5310
  // Predicated region
  $region54: #{lstm_classifier_forward.1} parent=0 // pred_check
    _
  $region55: #{lstm_classifier_forward.1} parent=0 // pred_check_branch
    %5314 = sbr.rel (0) target = $region57
  $region56: #{lstm_classifier_forward.1} parent=0 // pred_region
    _
  $region57: #{lstm_classifier_forward.1} parent=0 // pred_fallthru
    _
  // Predicated region
  $region58: #{lstm_classifier_forward.1} parent=0 // pred_check
    _
  $region59: #{lstm_classifier_forward.1} parent=0 // pred_check_branch
    %5316 = sbr.rel (0) target = $region61
  $region60: #{lstm_classifier_forward.1} parent=0 // pred_region
    _
  $region61: #{lstm_classifier_forward.1} parent=0 // pred_fallthru
    _

</llo_original>
